<compile_context>
chip_gen: v5e
topology: v5e:2x2
jax: 0.10.0
libtpu: 0.0.40
codegen_flags: <defaults>
</compile_context>

<pallas_src>
import jax
import jax.numpy as jnp
from jax.experimental import pallas as pl
from jax.experimental.pallas import tpu as pltpu

# ---- hyperparameters (consistent with the hardcoded AvgPool1d(58) and the
# ---- default filter_widths / dilation_sizes of FallNetBase) ---------------
NUM_JOINTS = 4
NUM_XYZ = 3
CIN = NUM_JOINTS * NUM_XYZ            # first_conv input channels = 12
CONV_CHANNELS = 32
FILTER_WIDTHS = (3, 3, 3, 3, 3)
DILATIONS = (3, 9, 27, 81, 27)
NUM_FRAMES = 300                      # 300 -> final temporal length 58 (pool window)
NUM_CLASS = 2
BATCH = 2
POOL = 58
BN_EPS = 1e-5


# ---------------------------------------------------------------------------
# Pallas kernel: whole _forward_blocks + avg-pool + fc for one batch element.
# ---------------------------------------------------------------------------
def fallnet_kernel(x_ref, wf_ref, s0_ref, wconv_ref, w1x1_ref, sh_ref,
                   fcw_ref, fcb_ref, out_ref):
    x = x_ref[0]                                  # (F, CIN) f32, time-major
    L = x.shape[0]
    kw0 = FILTER_WIDTHS[0]
    L0 = L - (kw0 - 1)

    # ---- first_conv: 3 taps fused along K -> (L0, 3*CIN) @ (3*CIN, C) ------
    x_cat = jnp.concatenate([x[k:k + L0, :] for k in range(kw0)], axis=1)
    h = jnp.dot(x_cat.astype(jnp.bfloat16), wf_ref[...],
                preferred_element_type=jnp.float32)
    h = jnp.maximum(h + s0_ref[...], 0.0)         # BN scale folded into weights

    # ---- residual dilated blocks -------------------------------------------
    for i in range(len(FILTER_WIDTHS) - 1):
        d = DILATIONS[i]
        kw = FILTER_WIDTHS[i]
        Lres = h.shape[0] - (kw - 1) * d
        taps = [h[k * d:k * d + Lres, :] for k in range(kw)]
        res = taps[1]                             # == h[d:d+Lres]  (reuse slice)
        x_cat = jnp.concatenate(taps, axis=1).astype(jnp.bfloat16)   # (Lres, kw*C)

        t = jnp.dot(x_cat, wconv_ref[i], preferred_element_type=jnp.float32)
        t = jnp.maximum(t + sh_ref[2 * i:2 * i + 1, :], 0.0)

        t = jnp.dot(t.astype(jnp.bfloat16), w1x1_ref[i],
                    preferred_element_type=jnp.float32)
        t = jnp.maximum(t + sh_ref[2 * i + 1:2 * i + 2, :], 0.0)

        h = t + res

    # ---- AvgPool1d(58): single window over the first 58 frames -------------
    pooled = jnp.mean(h[:POOL, :], axis=0, keepdims=True)            # (1, C)

    # ---- fc -----------------------------------------------------------------
    logits = jnp.dot(pooled, fcw_ref[...],
                     preferred_element_type=jnp.float32) + fcb_ref[...]
    out_ref[0] = logits


# ---------------------------------------------------------------------------
# Host-side parameter preparation (trace-time): fold BN scale into weights,
# fuse conv taps along K, cast matmul weights to bf16.
# ---------------------------------------------------------------------------
def _prep_params(params):
    wf, bn0s, bn0b, wconv, w1x1, bns, bnb, fcw, fcb = params
    c = CONV_CHANNELS
    wf_cat = (wf.reshape(FILTER_WIDTHS[0] * CIN, c) * bn0s).astype(jnp.bfloat16)
    wconv_cat = (wconv.reshape(wconv.shape[0], -1, c)
                 * bns[0::2][:, None, :]).astype(jnp.bfloat16)        # (4, 96, 32)
    w1x1_f = (w1x1 * bns[1::2][:, None, :]).astype(jnp.bfloat16)      # (4, 32, 32)
    return (wf_cat, bn0b.astype(jnp.float32),
            wconv_cat, w1x1_f, bnb.astype(jnp.float32),
            fcw.astype(jnp.float32), fcb.astype(jnp.float32))


# ---------------------------------------------------------------------------
# Wrapper: reshape + pallas_call plumbing.  Batch is a parallel grid axis.
# ---------------------------------------------------------------------------
def fallnet_forward(x, params):
    B, F, J, C = x.shape
    x2 = x.reshape(B, F, J * C).astype(jnp.float32)   # channels-last (== NCL transposed)
    weights = _prep_params(params)

    def rep_spec(a):
        n = a.ndim
        return pl.BlockSpec(a.shape, lambda b, n=n: (0,) * n)

    out = pl.pallas_call(
        fallnet_kernel,
        out_shape=jax.ShapeDtypeStruct((B, 1, NUM_CLASS), jnp.float32),
        grid=(B,),
        in_specs=[pl.BlockSpec((1, F, J * C), lambda b: (b, 0, 0))]
                 + [rep_spec(a) for a in weights],
        out_specs=pl.BlockSpec((1, 1, NUM_CLASS), lambda b: (b, 0, 0)),
        compiler_params=pltpu.CompilerParams(
            dimension_semantics=("parallel",)),
    )(x2, *weights)
    return out.reshape(B, NUM_CLASS)


# ---------------------------------------------------------------------------
# Deterministic synthetic parameters (shapes from FallNetBase.__init__)
# ---------------------------------------------------------------------------
def init_params(key):
    c = CONV_CHANNELS
    ks = jax.random.split(key, 12)
    wf = 0.1 * jax.random.normal(ks[0], (3, CIN, c), jnp.float32)        # first_conv (kw, Cin, Cout)
    wconv = 0.1 * jax.random.normal(ks[1], (4, 3, c, c), jnp.float32)    # dilated convs (i, kw, Cin, Cout)
    w1x1 = 0.1 * jax.random.normal(ks[2], (4, c, c), jnp.float32)        # 1x1 convs

    def bn_fold(kg, kb, km, kv, n):
        gamma = 1.0 + 0.1 * jax.random.normal(kg, (n, c), jnp.float32)
        beta = 0.1 * jax.random.normal(kb, (n, c), jnp.float32)
        mean = 0.1 * jax.random.normal(km, (n, c), jnp.float32)
        var = 1.0 + 0.5 * jax.random.uniform(kv, (n, c), jnp.float32)
        scale = gamma * jax.lax.rsqrt(var + BN_EPS)
        shift = beta - mean * scale
        return scale, shift

    bn0s, bn0b = bn_fold(ks[3], ks[4], ks[5], ks[6], 1)                  # first_bn
    bns, bnb = bn_fold(ks[7], ks[8], ks[9], ks[10], 8)                   # layers_bn (8 of them)

    kf1, kf2 = jax.random.split(ks[11])
    fcw = 0.1 * jax.random.normal(kf1, (c, NUM_CLASS), jnp.float32)      # Linear weight (transposed)
    fcb = 0.1 * jax.random.normal(kf2, (1, NUM_CLASS), jnp.float32)      # Linear bias
    return (wf, bn0s, bn0b, wconv, w1x1, bns, bnb, fcw, fcb)


# ---------------------------------------------------------------------------
# Pure-JAX f32 reference (original eval-mode semantics) for validation
# ---------------------------------------------------------------------------
def reference_forward(x, params):
    wf, bn0s, bn0b, wconv, w1x1, bns, bnb, fcw, fcb = params
    B, F, J, C = x.shape
    h = x.reshape(B, F, J * C).astype(jnp.float32)
    L0 = F - 2
    acc = jnp.zeros((B, L0, CONV_CHANNELS), jnp.float32)
    for k in range(3):
        acc = acc + jnp.einsum('blc,cd->bld', h[:, k:k + L0, :], wf[k])
    h = jnp.maximum(acc * bn0s + bn0b, 0.0)
    for i in range(4):
        d = DILATIONS[i]
        Lres = h.shape[1] - 2 * d
        res = h[:, d:d + Lres, :]
        acc = jnp.zeros((B, Lres, CONV_CHANNELS), jnp.float32)
        for k in range(3):
            acc = acc + jnp.einsum('blc,cd->bld', h[:, k * d:k * d + Lres, :], wconv[i, k])
        t = jnp.maximum(acc * bns[2 * i] + bnb[2 * i], 0.0)
        t = jnp.einsum('blc,cd->bld', t, w1x1[i])
        t = jnp.maximum(t * bns[2 * i + 1] + bnb[2 * i + 1], 0.0)
        h = t + res
    pooled = jnp.mean(h[:, :POOL, :], axis=1)
    return pooled @ fcw + fcb


if __name__ == "__main__":
    key = jax.random.PRNGKey(0)
    kx, kp = jax.random.split(key)
    x = jax.random.normal(kx, (BATCH, NUM_FRAMES, NUM_JOINTS, NUM_XYZ), jnp.float32)
    params = init_params(kp)

    out = jax.block_until_ready(fallnet_forward(x, params))
    ref = reference_forward(x, params)

    assert out.shape == (BATCH, NUM_CLASS), out.shape
    # bf16 MXU inputs (f32 accumulation) vs pure-f32 reference -> slightly
    # looser tolerance than the all-f32 version; expected error is ~1e-3.
    assert jnp.allclose(out, ref, atol=2e-2, rtol=2e-2), (out, ref)
    print("KERNEL_OK")
</pallas_src>

<mosaic_0001>
module attributes {stable_mosaic.version = 11 : i64} {
  func.func @fallnet_kernel(%arg0: i32, %arg1: memref<1x300x12xf32, #tpu.memory_space<vmem>>, %arg2: memref<36x32xbf16, #tpu.memory_space<vmem>>, %arg3: memref<1x32xf32, #tpu.memory_space<vmem>>, %arg4: memref<4x96x32xbf16, #tpu.memory_space<vmem>>, %arg5: memref<4x32x32xbf16, #tpu.memory_space<vmem>>, %arg6: memref<8x32xf32, #tpu.memory_space<vmem>>, %arg7: memref<32x2xf32, #tpu.memory_space<vmem>>, %arg8: memref<1x2xf32, #tpu.memory_space<vmem>>, %arg9: memref<1x1x2xf32, #tpu.memory_space<vmem>>) attributes {dimension_semantics = [#tpu.dimension_semantics<parallel>], iteration_bounds = array<i64: 2>, scalar_prefetch = 0 : i64, scratch_operands = 0 : i64, tpu.core_type = #tpu.core_type<tc>, window_params = [{transform_indices = @transform_0, window_bounds = array<i64: 1, 300, 12>}, {pipeline_mode = #tpu.pipeline_mode<synchronous>, transform_indices = @transform_1, window_bounds = array<i64: 36, 32>}, {pipeline_mode = #tpu.pipeline_mode<synchronous>, transform_indices = @transform_2, window_bounds = array<i64: 1, 32>}, {pipeline_mode = #tpu.pipeline_mode<synchronous>, transform_indices = @transform_3, window_bounds = array<i64: 4, 96, 32>}, {pipeline_mode = #tpu.pipeline_mode<synchronous>, transform_indices = @transform_4, window_bounds = array<i64: 4, 32, 32>}, {pipeline_mode = #tpu.pipeline_mode<synchronous>, transform_indices = @transform_5, window_bounds = array<i64: 8, 32>}, {pipeline_mode = #tpu.pipeline_mode<synchronous>, transform_indices = @transform_6, window_bounds = array<i64: 32, 2>}, {pipeline_mode = #tpu.pipeline_mode<synchronous>, transform_indices = @transform_7, window_bounds = array<i64: 1, 2>}, {transform_indices = @transform_8, window_bounds = array<i64: 1, 1, 2>}]} {
    %c0 = arith.constant 0 : index
    %c0_0 = arith.constant 0 : index
    %c0_1 = arith.constant 0 : index
    %0 = vector.load %arg1[%c0, %c0_0, %c0_1] : memref<1x300x12xf32, #tpu.memory_space<vmem>>, vector<1x300x12xf32>
    %1 = vector.shape_cast %0 : vector<1x300x12xf32> to vector<300x12xf32>
    %2 = vector.extract_strided_slice %1 {offsets = [0, 0], sizes = [298, 12], strides = [1, 1]} : vector<300x12xf32> to vector<298x12xf32>
    %3 = vector.extract_strided_slice %1 {offsets = [1, 0], sizes = [298, 12], strides = [1, 1]} : vector<300x12xf32> to vector<298x12xf32>
    %4 = vector.extract_strided_slice %1 {offsets = [2, 0], sizes = [298, 12], strides = [1, 1]} : vector<300x12xf32> to vector<298x12xf32>
    %5 = tpu.concatenate %2, %3, %4 in 1 : vector<298x12xf32>, vector<298x12xf32>, vector<298x12xf32> -> vector<298x36xf32>
    %6 = arith.truncf %5 : vector<298x36xf32> to vector<298x36xbf16>
    %c0_2 = arith.constant 0 : index
    %c0_3 = arith.constant 0 : index
    %7 = vector.load %arg2[%c0_2, %c0_3] : memref<36x32xbf16, #tpu.memory_space<vmem>>, vector<36x32xbf16>
    %cst = arith.constant dense<0.000000e+00> : vector<298x32xf32>
    %8 = tpu.matmul %6, %7, %cst {dimension_numbers = #tpu.dot_dimension_numbers<[1], [0], [0], [1], [0, 0, 1, 1], [], []>} : vector<298x36xbf16>, vector<36x32xbf16>, vector<298x32xf32> -> vector<298x32xf32>
    %c0_4 = arith.constant 0 : index
    %c0_5 = arith.constant 0 : index
    %9 = vector.load %arg3[%c0_4, %c0_5] : memref<1x32xf32, #tpu.memory_space<vmem>>, vector<1x32xf32>
    %10 = vector.broadcast %9 : vector<1x32xf32> to vector<298x32xf32>
    %11 = arith.addf %8, %10 : vector<298x32xf32>
    %cst_6 = arith.constant 0.000000e+00 : f32
    %12 = vector.broadcast %cst_6 : f32 to vector<298x32xf32>
    %13 = arith.maximumf %11, %12 : vector<298x32xf32>
    %14 = vector.extract_strided_slice %13 {offsets = [0, 0], sizes = [292, 32], strides = [1, 1]} : vector<298x32xf32> to vector<292x32xf32>
    %15 = vector.extract_strided_slice %13 {offsets = [3, 0], sizes = [292, 32], strides = [1, 1]} : vector<298x32xf32> to vector<292x32xf32>
    %16 = vector.extract_strided_slice %13 {offsets = [6, 0], sizes = [292, 32], strides = [1, 1]} : vector<298x32xf32> to vector<292x32xf32>
    %17 = tpu.concatenate %14, %15, %16 in 1 : vector<292x32xf32>, vector<292x32xf32>, vector<292x32xf32> -> vector<292x96xf32>
    %18 = arith.truncf %17 : vector<292x96xf32> to vector<292x96xbf16>
    %c0_7 = arith.constant 0 : index
    %c0_8 = arith.constant 0 : index
    %c0_9 = arith.constant 0 : index
    %19 = vector.load %arg4[%c0_7, %c0_8, %c0_9] : memref<4x96x32xbf16, #tpu.memory_space<vmem>>, vector<1x96x32xbf16>
    %20 = vector.shape_cast %19 : vector<1x96x32xbf16> to vector<96x32xbf16>
    %cst_10 = arith.constant dense<0.000000e+00> : vector<292x32xf32>
    %21 = tpu.matmul %18, %20, %cst_10 {dimension_numbers = #tpu.dot_dimension_numbers<[1], [0], [0], [1], [0, 0, 1, 1], [], []>} : vector<292x96xbf16>, vector<96x32xbf16>, vector<292x32xf32> -> vector<292x32xf32>
    %c0_11 = arith.constant 0 : index
    %c0_12 = arith.constant 0 : index
    %22 = vector.load %arg6[%c0_11, %c0_12] : memref<8x32xf32, #tpu.memory_space<vmem>>, vector<1x32xf32>
    %23 = vector.broadcast %22 : vector<1x32xf32> to vector<292x32xf32>
    %24 = arith.addf %21, %23 : vector<292x32xf32>
    %cst_13 = arith.constant 0.000000e+00 : f32
    %25 = vector.broadcast %cst_13 : f32 to vector<292x32xf32>
    %26 = arith.maximumf %24, %25 : vector<292x32xf32>
    %27 = arith.truncf %26 : vector<292x32xf32> to vector<292x32xbf16>
    %c0_14 = arith.constant 0 : index
    %c0_15 = arith.constant 0 : index
    %c0_16 = arith.constant 0 : index
    %28 = vector.load %arg5[%c0_14, %c0_15, %c0_16] : memref<4x32x32xbf16, #tpu.memory_space<vmem>>, vector<1x32x32xbf16>
    %29 = vector.shape_cast %28 : vector<1x32x32xbf16> to vector<32x32xbf16>
    %cst_17 = arith.constant dense<0.000000e+00> : vector<292x32xf32>
    %30 = tpu.matmul %27, %29, %cst_17 {dimension_numbers = #tpu.dot_dimension_numbers<[1], [0], [0], [1], [0, 0, 1, 1], [], []>} : vector<292x32xbf16>, vector<32x32xbf16>, vector<292x32xf32> -> vector<292x32xf32>
    %c1 = arith.constant 1 : index
    %c0_18 = arith.constant 0 : index
    %31 = vector.load %arg6[%c1, %c0_18] : memref<8x32xf32, #tpu.memory_space<vmem>>, vector<1x32xf32>
    %32 = vector.broadcast %31 : vector<1x32xf32> to vector<292x32xf32>
    %33 = arith.addf %30, %32 : vector<292x32xf32>
    %cst_19 = arith.constant 0.000000e+00 : f32
    %34 = vector.broadcast %cst_19 : f32 to vector<292x32xf32>
    %35 = arith.maximumf %33, %34 : vector<292x32xf32>
    %36 = arith.addf %35, %15 : vector<292x32xf32>
    %37 = vector.extract_strided_slice %36 {offsets = [0, 0], sizes = [274, 32], strides = [1, 1]} : vector<292x32xf32> to vector<274x32xf32>
    %38 = vector.extract_strided_slice %36 {offsets = [9, 0], sizes = [274, 32], strides = [1, 1]} : vector<292x32xf32> to vector<274x32xf32>
    %39 = vector.extract_strided_slice %36 {offsets = [18, 0], sizes = [274, 32], strides = [1, 1]} : vector<292x32xf32> to vector<274x32xf32>
    %40 = tpu.concatenate %37, %38, %39 in 1 : vector<274x32xf32>, vector<274x32xf32>, vector<274x32xf32> -> vector<274x96xf32>
    %41 = arith.truncf %40 : vector<274x96xf32> to vector<274x96xbf16>
    %c1_20 = arith.constant 1 : index
    %c0_21 = arith.constant 0 : index
    %c0_22 = arith.constant 0 : index
    %42 = vector.load %arg4[%c1_20, %c0_21, %c0_22] : memref<4x96x32xbf16, #tpu.memory_space<vmem>>, vector<1x96x32xbf16>
    %43 = vector.shape_cast %42 : vector<1x96x32xbf16> to vector<96x32xbf16>
    %cst_23 = arith.constant dense<0.000000e+00> : vector<274x32xf32>
    %44 = tpu.matmul %41, %43, %cst_23 {dimension_numbers = #tpu.dot_dimension_numbers<[1], [0], [0], [1], [0, 0, 1, 1], [], []>} : vector<274x96xbf16>, vector<96x32xbf16>, vector<274x32xf32> -> vector<274x32xf32>
    %c2 = arith.constant 2 : index
    %c0_24 = arith.constant 0 : index
    %45 = vector.load %arg6[%c2, %c0_24] : memref<8x32xf32, #tpu.memory_space<vmem>>, vector<1x32xf32>
    %46 = vector.broadcast %45 : vector<1x32xf32> to vector<274x32xf32>
    %47 = arith.addf %44, %46 : vector<274x32xf32>
    %cst_25 = arith.constant 0.000000e+00 : f32
    %48 = vector.broadcast %cst_25 : f32 to vector<274x32xf32>
    %49 = arith.maximumf %47, %48 : vector<274x32xf32>
    %50 = arith.truncf %49 : vector<274x32xf32> to vector<274x32xbf16>
    %c1_26 = arith.constant 1 : index
    %c0_27 = arith.constant 0 : index
    %c0_28 = arith.constant 0 : index
    %51 = vector.load %arg5[%c1_26, %c0_27, %c0_28] : memref<4x32x32xbf16, #tpu.memory_space<vmem>>, vector<1x32x32xbf16>
    %52 = vector.shape_cast %51 : vector<1x32x32xbf16> to vector<32x32xbf16>
    %cst_29 = arith.constant dense<0.000000e+00> : vector<274x32xf32>
    %53 = tpu.matmul %50, %52, %cst_29 {dimension_numbers = #tpu.dot_dimension_numbers<[1], [0], [0], [1], [0, 0, 1, 1], [], []>} : vector<274x32xbf16>, vector<32x32xbf16>, vector<274x32xf32> -> vector<274x32xf32>
    %c3 = arith.constant 3 : index
    %c0_30 = arith.constant 0 : index
    %54 = vector.load %arg6[%c3, %c0_30] : memref<8x32xf32, #tpu.memory_space<vmem>>, vector<1x32xf32>
    %55 = vector.broadcast %54 : vector<1x32xf32> to vector<274x32xf32>
    %56 = arith.addf %53, %55 : vector<274x32xf32>
    %cst_31 = arith.constant 0.000000e+00 : f32
    %57 = vector.broadcast %cst_31 : f32 to vector<274x32xf32>
    %58 = arith.maximumf %56, %57 : vector<274x32xf32>
    %59 = arith.addf %58, %38 : vector<274x32xf32>
    %60 = vector.extract_strided_slice %59 {offsets = [0, 0], sizes = [220, 32], strides = [1, 1]} : vector<274x32xf32> to vector<220x32xf32>
    %61 = vector.extract_strided_slice %59 {offsets = [27, 0], sizes = [220, 32], strides = [1, 1]} : vector<274x32xf32> to vector<220x32xf32>
    %62 = vector.extract_strided_slice %59 {offsets = [54, 0], sizes = [220, 32], strides = [1, 1]} : vector<274x32xf32> to vector<220x32xf32>
    %63 = tpu.concatenate %60, %61, %62 in 1 : vector<220x32xf32>, vector<220x32xf32>, vector<220x32xf32> -> vector<220x96xf32>
    %64 = arith.truncf %63 : vector<220x96xf32> to vector<220x96xbf16>
    %c2_32 = arith.constant 2 : index
    %c0_33 = arith.constant 0 : index
    %c0_34 = arith.constant 0 : index
    %65 = vector.load %arg4[%c2_32, %c0_33, %c0_34] : memref<4x96x32xbf16, #tpu.memory_space<vmem>>, vector<1x96x32xbf16>
    %66 = vector.shape_cast %65 : vector<1x96x32xbf16> to vector<96x32xbf16>
    %cst_35 = arith.constant dense<0.000000e+00> : vector<220x32xf32>
    %67 = tpu.matmul %64, %66, %cst_35 {dimension_numbers = #tpu.dot_dimension_numbers<[1], [0], [0], [1], [0, 0, 1, 1], [], []>} : vector<220x96xbf16>, vector<96x32xbf16>, vector<220x32xf32> -> vector<220x32xf32>
    %c4 = arith.constant 4 : index
    %c0_36 = arith.constant 0 : index
    %68 = vector.load %arg6[%c4, %c0_36] : memref<8x32xf32, #tpu.memory_space<vmem>>, vector<1x32xf32>
    %69 = vector.broadcast %68 : vector<1x32xf32> to vector<220x32xf32>
    %70 = arith.addf %67, %69 : vector<220x32xf32>
    %cst_37 = arith.constant 0.000000e+00 : f32
    %71 = vector.broadcast %cst_37 : f32 to vector<220x32xf32>
    %72 = arith.maximumf %70, %71 : vector<220x32xf32>
    %73 = arith.truncf %72 : vector<220x32xf32> to vector<220x32xbf16>
    %c2_38 = arith.constant 2 : index
    %c0_39 = arith.constant 0 : index
    %c0_40 = arith.constant 0 : index
    %74 = vector.load %arg5[%c2_38, %c0_39, %c0_40] : memref<4x32x32xbf16, #tpu.memory_space<vmem>>, vector<1x32x32xbf16>
    %75 = vector.shape_cast %74 : vector<1x32x32xbf16> to vector<32x32xbf16>
    %cst_41 = arith.constant dense<0.000000e+00> : vector<220x32xf32>
    %76 = tpu.matmul %73, %75, %cst_41 {dimension_numbers = #tpu.dot_dimension_numbers<[1], [0], [0], [1], [0, 0, 1, 1], [], []>} : vector<220x32xbf16>, vector<32x32xbf16>, vector<220x32xf32> -> vector<220x32xf32>
    %c5 = arith.constant 5 : index
    %c0_42 = arith.constant 0 : index
    %77 = vector.load %arg6[%c5, %c0_42] : memref<8x32xf32, #tpu.memory_space<vmem>>, vector<1x32xf32>
    %78 = vector.broadcast %77 : vector<1x32xf32> to vector<220x32xf32>
    %79 = arith.addf %76, %78 : vector<220x32xf32>
    %cst_43 = arith.constant 0.000000e+00 : f32
    %80 = vector.broadcast %cst_43 : f32 to vector<220x32xf32>
    %81 = arith.maximumf %79, %80 : vector<220x32xf32>
    %82 = arith.addf %81, %61 : vector<220x32xf32>
    %83 = vector.extract_strided_slice %82 {offsets = [0, 0], sizes = [58, 32], strides = [1, 1]} : vector<220x32xf32> to vector<58x32xf32>
    %84 = vector.extract_strided_slice %82 {offsets = [81, 0], sizes = [58, 32], strides = [1, 1]} : vector<220x32xf32> to vector<58x32xf32>
    %85 = vector.extract_strided_slice %82 {offsets = [162, 0], sizes = [58, 32], strides = [1, 1]} : vector<220x32xf32> to vector<58x32xf32>
    %86 = tpu.concatenate %83, %84, %85 in 1 : vector<58x32xf32>, vector<58x32xf32>, vector<58x32xf32> -> vector<58x96xf32>
    %87 = arith.truncf %86 : vector<58x96xf32> to vector<58x96xbf16>
    %c3_44 = arith.constant 3 : index
    %c0_45 = arith.constant 0 : index
    %c0_46 = arith.constant 0 : index
    %88 = vector.load %arg4[%c3_44, %c0_45, %c0_46] : memref<4x96x32xbf16, #tpu.memory_space<vmem>>, vector<1x96x32xbf16>
    %89 = vector.shape_cast %88 : vector<1x96x32xbf16> to vector<96x32xbf16>
    %cst_47 = arith.constant dense<0.000000e+00> : vector<58x32xf32>
    %90 = tpu.matmul %87, %89, %cst_47 {dimension_numbers = #tpu.dot_dimension_numbers<[1], [0], [0], [1], [0, 0, 1, 1], [], []>} : vector<58x96xbf16>, vector<96x32xbf16>, vector<58x32xf32> -> vector<58x32xf32>
    %c6 = arith.constant 6 : index
    %c0_48 = arith.constant 0 : index
    %91 = vector.load %arg6[%c6, %c0_48] : memref<8x32xf32, #tpu.memory_space<vmem>>, vector<1x32xf32>
    %92 = vector.broadcast %91 : vector<1x32xf32> to vector<58x32xf32>
    %93 = arith.addf %90, %92 : vector<58x32xf32>
    %cst_49 = arith.constant 0.000000e+00 : f32
    %94 = vector.broadcast %cst_49 : f32 to vector<58x32xf32>
    %95 = arith.maximumf %93, %94 : vector<58x32xf32>
    %96 = arith.truncf %95 : vector<58x32xf32> to vector<58x32xbf16>
    %c3_50 = arith.constant 3 : index
    %c0_51 = arith.constant 0 : index
    %c0_52 = arith.constant 0 : index
    %97 = vector.load %arg5[%c3_50, %c0_51, %c0_52] : memref<4x32x32xbf16, #tpu.memory_space<vmem>>, vector<1x32x32xbf16>
    %98 = vector.shape_cast %97 : vector<1x32x32xbf16> to vector<32x32xbf16>
    %cst_53 = arith.constant dense<0.000000e+00> : vector<58x32xf32>
    %99 = tpu.matmul %96, %98, %cst_53 {dimension_numbers = #tpu.dot_dimension_numbers<[1], [0], [0], [1], [0, 0, 1, 1], [], []>} : vector<58x32xbf16>, vector<32x32xbf16>, vector<58x32xf32> -> vector<58x32xf32>
    %c7 = arith.constant 7 : index
    %c0_54 = arith.constant 0 : index
    %100 = vector.load %arg6[%c7, %c0_54] : memref<8x32xf32, #tpu.memory_space<vmem>>, vector<1x32xf32>
    %101 = vector.broadcast %100 : vector<1x32xf32> to vector<58x32xf32>
    %102 = arith.addf %99, %101 : vector<58x32xf32>
    %cst_55 = arith.constant 0.000000e+00 : f32
    %103 = vector.broadcast %cst_55 : f32 to vector<58x32xf32>
    %104 = arith.maximumf %102, %103 : vector<58x32xf32>
    %105 = arith.addf %104, %84 : vector<58x32xf32>
    %cst_56 = arith.constant dense<0.000000e+00> : vector<32xf32>
    %106 = vector.multi_reduction <add>, %105, %cst_56 [0] : vector<58x32xf32> to vector<32xf32>
    %107 = vector.shape_cast %106 : vector<32xf32> to vector<1x32xf32>
    %cst_57 = arith.constant 5.800000e+01 : f32
    %108 = vector.broadcast %cst_57 : f32 to vector<1x32xf32>
    %109 = arith.divf %107, %108 : vector<1x32xf32>
    %c0_58 = arith.constant 0 : index
    %c0_59 = arith.constant 0 : index
    %110 = vector.load %arg7[%c0_58, %c0_59] : memref<32x2xf32, #tpu.memory_space<vmem>>, vector<32x2xf32>
    %cst_60 = arith.constant dense<0.000000e+00> : vector<1x2xf32>
    %111 = tpu.matmul %109, %110, %cst_60 {dimension_numbers = #tpu.dot_dimension_numbers<[1], [0], [0], [1], [0, 0, 1, 1], [], []>} : vector<1x32xf32>, vector<32x2xf32>, vector<1x2xf32> -> vector<1x2xf32>
    %c0_61 = arith.constant 0 : index
    %c0_62 = arith.constant 0 : index
    %112 = vector.load %arg8[%c0_61, %c0_62] : memref<1x2xf32, #tpu.memory_space<vmem>>, vector<1x2xf32>
    %113 = arith.addf %111, %112 : vector<1x2xf32>
    %c0_63 = arith.constant 0 : index
    %c0_64 = arith.constant 0 : index
    %c0_65 = arith.constant 0 : index
    %114 = vector.load %arg9[%c0_63, %c0_64, %c0_65] : memref<1x1x2xf32, #tpu.memory_space<vmem>>, vector<1x1x2xf32>
    %115 = vector.shape_cast %114 : vector<1x1x2xf32> to vector<1x2xf32>
    %116 = vector.shape_cast %113 : vector<1x2xf32> to vector<1x1x2xf32>
    tpu.vector_store %arg9[%c0_63, %c0_64, %c0_65], %116 {strides = array<i32>} : memref<1x1x2xf32, #tpu.memory_space<vmem>>, vector<1x1x2xf32>,
    return
  }
  func.func @transform_0(%arg0: i32) -> (i32, i32, i32) {
    %c0_i32 = arith.constant 0 : i32
    %c0_i32_0 = arith.constant 0 : i32
    %c0_i32_1 = arith.constant 0 : i32
    return %arg0, %c0_i32, %c0_i32_0 : i32, i32, i32
  }
  func.func @transform_1(%arg0: i32) -> (i32, i32) {
    %c0_i32 = arith.constant 0 : i32
    %c0_i32_0 = arith.constant 0 : i32
    %c0_i32_1 = arith.constant 0 : i32
    return %c0_i32, %c0_i32_0 : i32, i32
  }
  func.func @transform_2(%arg0: i32) -> (i32, i32) {
    %c0_i32 = arith.constant 0 : i32
    %c0_i32_0 = arith.constant 0 : i32
    %c0_i32_1 = arith.constant 0 : i32
    return %c0_i32, %c0_i32_0 : i32, i32
  }
  func.func @transform_3(%arg0: i32) -> (i32, i32, i32) {
    %c0_i32 = arith.constant 0 : i32
    %c0_i32_0 = arith.constant 0 : i32
    %c0_i32_1 = arith.constant 0 : i32
    %c0_i32_2 = arith.constant 0 : i32
    return %c0_i32, %c0_i32_0, %c0_i32_1 : i32, i32, i32
  }
  func.func @transform_4(%arg0: i32) -> (i32, i32, i32) {
    %c0_i32 = arith.constant 0 : i32
    %c0_i32_0 = arith.constant 0 : i32
    %c0_i32_1 = arith.constant 0 : i32
    %c0_i32_2 = arith.constant 0 : i32
    return %c0_i32, %c0_i32_0, %c0_i32_1 : i32, i32, i32
  }
  func.func @transform_5(%arg0: i32) -> (i32, i32) {
    %c0_i32 = arith.constant 0 : i32
    %c0_i32_0 = arith.constant 0 : i32
    %c0_i32_1 = arith.constant 0 : i32
    return %c0_i32, %c0_i32_0 : i32, i32
  }
  func.func @transform_6(%arg0: i32) -> (i32, i32) {
    %c0_i32 = arith.constant 0 : i32
    %c0_i32_0 = arith.constant 0 : i32
    %c0_i32_1 = arith.constant 0 : i32
    return %c0_i32, %c0_i32_0 : i32, i32
  }
  func.func @transform_7(%arg0: i32) -> (i32, i32) {
    %c0_i32 = arith.constant 0 : i32
    %c0_i32_0 = arith.constant 0 : i32
    %c0_i32_1 = arith.constant 0 : i32
    return %c0_i32, %c0_i32_0 : i32, i32
  }
  func.func @transform_8(%arg0: i32) -> (i32, i32, i32) {
    %c0_i32 = arith.constant 0 : i32
    %c0_i32_0 = arith.constant 0 : i32
    %c0_i32_1 = arith.constant 0 : i32
    return %arg0, %c0_i32, %c0_i32_0 : i32, i32, i32
  }
}

</mosaic_0001>

<llo_original>
// kernel: tpu_custom_call.1
$region0: #{tpu_custom_call.1}
  #allocation0 [shape = 'u32[]', space=smem, size = 0x4, offset = 0x4, fixed_abs, tag = 'smem constant byte address 0x4 - core index']
  #allocation1 [shape = 'u32[72,128]{1,0:T(1,128)}', space=vmem, size = 0x9000, scoped, tag = 'internal scratch']
  %s0 = inlined_call_operand.vmem [shape: f32[2,300,12], index: 0, kind: input, shape index: {}]
  %s1 = inlined_call_operand.vmem [shape: bf16[36,32], index: 1, kind: input, shape index: {}]
  %s2 = inlined_call_operand.vmem [shape: f32[1,32], index: 2, kind: input, shape index: {}]
  %s3 = inlined_call_operand.vmem [shape: bf16[4,96,32], index: 3, kind: input, shape index: {}]
  %s4 = inlined_call_operand.vmem [shape: bf16[4,32,32], index: 4, kind: input, shape index: {}]
  %s5 = inlined_call_operand.vmem [shape: f32[8,32], index: 5, kind: input, shape index: {}]
  %s6 = inlined_call_operand.vmem [shape: f32[32,2], index: 6, kind: input, shape index: {}]
  %s7 = inlined_call_operand.vmem [shape: f32[1,2], index: 7, kind: input, shape index: {}]
  %s8 = inlined_call_operand.hbm [shape: f32[2,1,2], index: 8, kind: output, shape index: {}]
  %s9 = sld [smem:[#allocation0]]
  $region65: #{tpu_custom_call.1} parent=0
    _
  %s11 = ssub.s32 1, %s9
  %s12 = scalar_select 0, %s11, %s9
  $region1: #{tpu_custom_call.1} parent=0
    #allocation2 [shape = 'u8[1024]{0}', space=vmem, size = 0x400, scoped, tag = 'output window, operand 0']
    #allocation3 [shape = 's32[2]{0}', space=sflag, size = 0x8, scoped, tag = 'scoped memory for tpu_custom_call.1']
    %13 = vsyncpa [#allocation3], 0
    %s14 = scalar_lea.sflag [#allocation3], 1
    %15 = vsyncpa %s14, 0
    loop: start=0, step=1, limit=4
    $region2: #{tpu_custom_call.1} parent=1 // loop_pre_header
      _
    $region3: #{tpu_custom_call.1} parent=1 // loop_header
      %s17 = sphi 0, %s21
      %p18 = scmp.ge.s32.totalorder %s17, 4
      %s27 = sphi 0, %s29
      %s30 = sphi 0, %s27
      %s31 = sphi 0, %s30
      %s47 = sphi 0, %s31
      %s51 = sphi 0, %s51
      %s53 = sphi 0, %s51
      %s54 = sphi 0, %s53
      %s68 = sphi 0, %s54
      %s72 = sphi 0, %s72
      %s74 = sphi 0, %s72
      %s75 = sphi 0, %s74
      %s89 = sphi 0, %s75
      %s93 = sphi 0, %s93
      %s95 = sphi 0, %s93
      %s96 = sphi 0, %s95
      %s110 = sphi 0, %s96
      %s114 = sphi 0, %s114
      %s116 = sphi 0, %s114
      %s117 = sphi 0, %s116
      %s131 = sphi 0, %s117
      %s135 = sphi 0, %s135
      %s137 = sphi 0, %s135
      %s138 = sphi 0, %s137
      %s152 = sphi 0, %s138
      %s156 = sphi 0, %s156
      %s158 = sphi 0, %s156
      %s159 = sphi 0, %s158
      %s173 = sphi 0, %s159
      %s177 = sphi 0, %s177
      %s179 = sphi 0, %s177
      %s180 = sphi 0, %s179
      %s194 = sphi 0, %s180
      %s200 = sphi 0, %s202
      %s203 = sphi 0, %s200
      %s204 = sphi 0, %s203
      %s220 = sphi 0, %s204
    $region4: #{tpu_custom_call.1} parent=1 // loop_header_branch
      %20 = sbr.rel (%p18) target = $region8
    $region5: #{tpu_custom_call.1} parent=1 // loop_body
      %s22 = ssub.s32 %s17, 1
      %s23 = ssub.s32 %s17, 2
      %s24 = sadd.s32 %s17, 1
      %s25 = ssub.s32 %s17, %s24
      %p26 = scmp.eq.s32.totalorder %s25, 0
      %s28 = sadd.s32 %s27, 1
      %s29 = scalar_select %p26, %s27, %s28
      %p32 = pneg %p26
      %p33 = scmp.eq.s32.totalorder %s17, 1
      %p34 = por %p32, %p33
      %p35 = scmp.ne.s32.totalorder %s27, %s30
      %p36 = scmp.eq.s32.totalorder %s17, 0
      %p37 = por %p35, %p36
      %p38 = scmp.ne.s32.totalorder %s27, %s30
      %p39 = scmp.eq.s32.totalorder %s22, 1
      %p40 = por %p38, %p39
      %p41 = scmp.ne.s32.totalorder %s30, %s31
      %p42 = scmp.eq.s32.totalorder %s22, 0
      %p43 = por %p41, %p42
      %p44 = scmp.ne.s32.totalorder %s30, %s31
      %p45 = scmp.eq.s32.totalorder %s23, 1
      %p46 = por %p44, %p45
      %p48 = scmp.ne.s32.totalorder %s31, %s47
      %p49 = scmp.eq.s32.totalorder %s23, 0
      %p50 = por %p48, %p49
      %s52 = sadd.s32 %s51, 1
      %p55 = scmp.eq.s32.totalorder %s17, 1
      %p56 = scmp.ne.s32.totalorder %s51, %s53
      %p57 = scmp.eq.s32.totalorder %s17, 0
      %p58 = por %p56, %p57
      %p59 = scmp.ne.s32.totalorder %s51, %s53
      %p60 = scmp.eq.s32.totalorder %s22, 1
      %p61 = por %p59, %p60
      %p62 = scmp.ne.s32.totalorder %s53, %s54
      %p63 = scmp.eq.s32.totalorder %s22, 0
      %p64 = por %p62, %p63
      %p65 = scmp.ne.s32.totalorder %s53, %s54
      %p66 = scmp.eq.s32.totalorder %s23, 1
      %p67 = por %p65, %p66
      %p69 = scmp.ne.s32.totalorder %s54, %s68
      %p70 = scmp.eq.s32.totalorder %s23, 0
      %p71 = por %p69, %p70
      %s73 = sadd.s32 %s72, 1
      %p76 = scmp.eq.s32.totalorder %s17, 1
      %p77 = scmp.ne.s32.totalorder %s72, %s74
      %p78 = scmp.eq.s32.totalorder %s17, 0
      %p79 = por %p77, %p78
      %p80 = scmp.ne.s32.totalorder %s72, %s74
      %p81 = scmp.eq.s32.totalorder %s22, 1
      %p82 = por %p80, %p81
      %p83 = scmp.ne.s32.totalorder %s74, %s75
      %p84 = scmp.eq.s32.totalorder %s22, 0
      %p85 = por %p83, %p84
      %p86 = scmp.ne.s32.totalorder %s74, %s75
      %p87 = scmp.eq.s32.totalorder %s23, 1
      %p88 = por %p86, %p87
      %p90 = scmp.ne.s32.totalorder %s75, %s89
      %p91 = scmp.eq.s32.totalorder %s23, 0
      %p92 = por %p90, %p91
      %s94 = sadd.s32 %s93, 1
      %p97 = scmp.eq.s32.totalorder %s17, 1
      %p98 = scmp.ne.s32.totalorder %s93, %s95
      %p99 = scmp.eq.s32.totalorder %s17, 0
      %p100 = por %p98, %p99
      %p101 = scmp.ne.s32.totalorder %s93, %s95
      %p102 = scmp.eq.s32.totalorder %s22, 1
      %p103 = por %p101, %p102
      %p104 = scmp.ne.s32.totalorder %s95, %s96
      %p105 = scmp.eq.s32.totalorder %s22, 0
      %p106 = por %p104, %p105
      %p107 = scmp.ne.s32.totalorder %s95, %s96
      %p108 = scmp.eq.s32.totalorder %s23, 1
      %p109 = por %p107, %p108
      %p111 = scmp.ne.s32.totalorder %s96, %s110
      %p112 = scmp.eq.s32.totalorder %s23, 0
      %p113 = por %p111, %p112
      %s115 = sadd.s32 %s114, 1
      %p118 = scmp.eq.s32.totalorder %s17, 1
      %p119 = scmp.ne.s32.totalorder %s114, %s116
      %p120 = scmp.eq.s32.totalorder %s17, 0
      %p121 = por %p119, %p120
      %p122 = scmp.ne.s32.totalorder %s114, %s116
      %p123 = scmp.eq.s32.totalorder %s22, 1
      %p124 = por %p122, %p123
      %p125 = scmp.ne.s32.totalorder %s116, %s117
      %p126 = scmp.eq.s32.totalorder %s22, 0
      %p127 = por %p125, %p126
      %p128 = scmp.ne.s32.totalorder %s116, %s117
      %p129 = scmp.eq.s32.totalorder %s23, 1
      %p130 = por %p128, %p129
      %p132 = scmp.ne.s32.totalorder %s117, %s131
      %p133 = scmp.eq.s32.totalorder %s23, 0
      %p134 = por %p132, %p133
      %s136 = sadd.s32 %s135, 1
      %p139 = scmp.eq.s32.totalorder %s17, 1
      %p140 = scmp.ne.s32.totalorder %s135, %s137
      %p141 = scmp.eq.s32.totalorder %s17, 0
      %p142 = por %p140, %p141
      %p143 = scmp.ne.s32.totalorder %s135, %s137
      %p144 = scmp.eq.s32.totalorder %s22, 1
      %p145 = por %p143, %p144
      %p146 = scmp.ne.s32.totalorder %s137, %s138
      %p147 = scmp.eq.s32.totalorder %s22, 0
      %p148 = por %p146, %p147
      %p149 = scmp.ne.s32.totalorder %s137, %s138
      %p150 = scmp.eq.s32.totalorder %s23, 1
      %p151 = por %p149, %p150
      %p153 = scmp.ne.s32.totalorder %s138, %s152
      %p154 = scmp.eq.s32.totalorder %s23, 0
      %p155 = por %p153, %p154
      %s157 = sadd.s32 %s156, 1
      %p160 = scmp.eq.s32.totalorder %s17, 1
      %p161 = scmp.ne.s32.totalorder %s156, %s158
      %p162 = scmp.eq.s32.totalorder %s17, 0
      %p163 = por %p161, %p162
      %p164 = scmp.ne.s32.totalorder %s156, %s158
      %p165 = scmp.eq.s32.totalorder %s22, 1
      %p166 = por %p164, %p165
      %p167 = scmp.ne.s32.totalorder %s158, %s159
      %p168 = scmp.eq.s32.totalorder %s22, 0
      %p169 = por %p167, %p168
      %p170 = scmp.ne.s32.totalorder %s158, %s159
      %p171 = scmp.eq.s32.totalorder %s23, 1
      %p172 = por %p170, %p171
      %p174 = scmp.ne.s32.totalorder %s159, %s173
      %p175 = scmp.eq.s32.totalorder %s23, 0
      %p176 = por %p174, %p175
      %s178 = sadd.s32 %s177, 1
      %p181 = scmp.eq.s32.totalorder %s17, 1
      %p182 = scmp.ne.s32.totalorder %s177, %s179
      %p183 = scmp.eq.s32.totalorder %s17, 0
      %p184 = por %p182, %p183
      %p185 = scmp.ne.s32.totalorder %s177, %s179
      %p186 = scmp.eq.s32.totalorder %s22, 1
      %p187 = por %p185, %p186
      %p188 = scmp.ne.s32.totalorder %s179, %s180
      %p189 = scmp.eq.s32.totalorder %s22, 0
      %p190 = por %p188, %p189
      %p191 = scmp.ne.s32.totalorder %s179, %s180
      %p192 = scmp.eq.s32.totalorder %s23, 1
      %p193 = por %p191, %p192
      %p195 = scmp.ne.s32.totalorder %s180, %s194
      %p196 = scmp.eq.s32.totalorder %s23, 0
      %p197 = por %p195, %p196
      %s198 = ssub.s32 %s17, %s24
      %p199 = scmp.eq.s32.totalorder %s198, 0
      %s201 = sadd.s32 %s200, 1
      %s202 = scalar_select %p199, %s200, %s201
      %p205 = pneg %p199
      %p206 = scmp.eq.s32.totalorder %s17, 1
      %p207 = por %p205, %p206
      %p208 = scmp.ne.s32.totalorder %s200, %s203
      %p209 = scmp.eq.s32.totalorder %s17, 0
      %p210 = por %p208, %p209
      %p211 = scmp.ne.s32.totalorder %s200, %s203
      %p212 = scmp.eq.s32.totalorder %s22, 1
      %p213 = por %p211, %p212
      %p214 = scmp.ne.s32.totalorder %s203, %s204
      %p215 = scmp.eq.s32.totalorder %s22, 0
      %p216 = por %p214, %p215
      %p217 = scmp.ne.s32.totalorder %s203, %s204
      %p218 = scmp.eq.s32.totalorder %s23, 1
      %p219 = por %p217, %p218
      %p221 = scmp.ne.s32.totalorder %s204, %s220
      %p222 = scmp.eq.s32.totalorder %s23, 0
      %p223 = por %p221, %p222
      %p224 = scmp.le.s32.totalorder 1, %s17
      %p225 = scmp.lt.s32.totalorder %s17, 3
      %p226 = pnand %p224, %p225
      %p227 = pneg %p226
      // Predicated region
      $region9: #{tpu_custom_call.1} parent=5 // pred_check
        _
      $region10: #{tpu_custom_call.1} parent=5 // pred_check_branch
        %229 = sbr.rel (%p226) target = $region12
      $region11: #{tpu_custom_call.1} parent=5 // pred_region
        %s230 = ssub.s32 %s17, 1
        // Predicated region
        $region13: #{tpu_custom_call.1} parent=11 // pred_check
          %p231 = pneg %p64
        $region14: #{tpu_custom_call.1} parent=11 // pred_check_branch
          %233 = sbr.rel (%p231) target = $region16
        $region15: #{tpu_custom_call.1} parent=11 // pred_region
          _
        $region16: #{tpu_custom_call.1} parent=11 // pred_fallthru
          _
        // Predicated region
        $region17: #{tpu_custom_call.1} parent=11 // pred_check
          %p234 = pneg %p85
        $region18: #{tpu_custom_call.1} parent=11 // pred_check_branch
          %236 = sbr.rel (%p234) target = $region20
        $region19: #{tpu_custom_call.1} parent=11 // pred_region
          _
        $region20: #{tpu_custom_call.1} parent=11 // pred_fallthru
          _
        // Predicated region
        $region21: #{tpu_custom_call.1} parent=11 // pred_check
          %p237 = pneg %p106
        $region22: #{tpu_custom_call.1} parent=11 // pred_check_branch
          %239 = sbr.rel (%p237) target = $region24
        $region23: #{tpu_custom_call.1} parent=11 // pred_region
          _
        $region24: #{tpu_custom_call.1} parent=11 // pred_fallthru
          _
        // Predicated region
        $region25: #{tpu_custom_call.1} parent=11 // pred_check
          %p240 = pneg %p127
        $region26: #{tpu_custom_call.1} parent=11 // pred_check_branch
          %242 = sbr.rel (%p240) target = $region28
        $region27: #{tpu_custom_call.1} parent=11 // pred_region
          _
        $region28: #{tpu_custom_call.1} parent=11 // pred_fallthru
          _
        // Predicated region
        $region29: #{tpu_custom_call.1} parent=11 // pred_check
          %p243 = pneg %p148
        $region30: #{tpu_custom_call.1} parent=11 // pred_check_branch
          %245 = sbr.rel (%p243) target = $region32
        $region31: #{tpu_custom_call.1} parent=11 // pred_region
          _
        $region32: #{tpu_custom_call.1} parent=11 // pred_fallthru
          _
        // Predicated region
        $region33: #{tpu_custom_call.1} parent=11 // pred_check
          %p246 = pneg %p169
        $region34: #{tpu_custom_call.1} parent=11 // pred_check_branch
          %248 = sbr.rel (%p246) target = $region36
        $region35: #{tpu_custom_call.1} parent=11 // pred_region
          _
        $region36: #{tpu_custom_call.1} parent=11 // pred_fallthru
          _
        // Predicated region
        $region37: #{tpu_custom_call.1} parent=11 // pred_check
          %p249 = pneg %p190
        $region38: #{tpu_custom_call.1} parent=11 // pred_check_branch
          %251 = sbr.rel (%p249) target = $region40
        $region39: #{tpu_custom_call.1} parent=11 // pred_region
          _
        $region40: #{tpu_custom_call.1} parent=11 // pred_fallthru
          _
      $region12: #{tpu_custom_call.1} parent=5 // pred_fallthru
        _
      %p252 = scmp.lt.s32.totalorder %s17, 2
      // Predicated region
      $region41: #{tpu_custom_call.1} parent=5 // pred_check
        %p253 = pneg %p252
      $region42: #{tpu_custom_call.1} parent=5 // pred_check_branch
        %255 = sbr.rel (%p253) target = $region44
      $region43: #{tpu_custom_call.1} parent=5 // pred_region
        // Predicated region
        $region45: #{tpu_custom_call.1} parent=43 // pred_check
          %p256 = pneg %p37
        $region46: #{tpu_custom_call.1} parent=43 // pred_check_branch
          %258 = sbr.rel (%p256) target = $region48
        $region47: #{tpu_custom_call.1} parent=43 // pred_region
          %p259 = scmp.lt.s32.totalorder %s17, 1
          %s260 = scalar_select %p259, %s17, 1
          %s261 = smul.addr %s260, 38
          %s262 = smul.addr %s261, 8
          %s263 = scalar_lea.vmem %s0, %s262
        $region48: #{tpu_custom_call.1} parent=43 // pred_fallthru
          _
      $region44: #{tpu_custom_call.1} parent=5 // pred_fallthru
        _
      %p264 = scmp.le.s32.totalorder 1, %s17
      %p265 = scmp.lt.s32.totalorder %s17, 3
      %p266 = pnand %p264, %p265
      %p267 = pneg %p266
      // Predicated region
      $region49: #{tpu_custom_call.1} parent=5 // pred_check
        _
      $region50: #{tpu_custom_call.1} parent=5 // pred_check_branch
        %269 = sbr.rel (%p266) target = $region52
      $region51: #{tpu_custom_call.1} parent=5 // pred_region
        %s270 = ssub.s32 %s17, 1
        %p271 = scmp.lt.s32.totalorder %s22, 1
        %s272 = scalar_select %p271, %s22, 1
        %s273 = smul.addr %s272, 38
        %s274 = smul.addr %s273, 8
        %s275 = scalar_lea.vmem %s0, %s274
        %p276 = pneg %p43
        %p277 = pneg %p40
        %p278 = pneg %p64
        %p279 = pneg %p61
        %p280 = pneg %p85
        %p281 = pneg %p82
        %p282 = pneg %p106
        %p283 = pneg %p103
        %p284 = pneg %p127
        %p285 = pneg %p124
        %p286 = pneg %p148
        %p287 = pneg %p145
        %p288 = pneg %p169
        %p289 = pneg %p166
        %p290 = pneg %p190
        %p291 = pneg %p187
        %p292 = pneg %p216
        %p293 = pneg %p213
        %s294 = sand.u32 %s203, 1
        %s295 = scalar_lea.sflag [#allocation3], %s294
        %s296 = sand.u32 %s203, 1
        %s297 = scalar_lea.vmem [#allocation2], %s296
        %p298 = scmp.lt.s32.totalorder %s22, 1
        %s299 = scalar_select %p298, %s22, 1
        %s300 = smul.addr %s299, 38
        %s301 = smul.addr %s300, 8
        %s302 = scalar_lea.vmem %s0, %s301
        %v304 = vld [vmem:[%s302] sm:$0xff]
        %v305 = vld [vmem:[%s302 + $0x8] sm:$0xff]
        %v306 = vld [vmem:[%s302 + $0x10] sm:$0xff]
        %v307 = vld [vmem:[%s302 + $0x18] sm:$0xff]
        %v308 = vld [vmem:[%s302 + $0x20] sm:$0xff]
        %v309 = vld [vmem:[%s302 + $0x28] sm:$0xff]
        %v310 = vld [vmem:[%s302 + $0x30] sm:$0xff]
        %v311 = vld [vmem:[%s302 + $0x38] sm:$0xff]
        %v312 = vld [vmem:[%s302 + $0x40] sm:$0xff]
        %v313 = vld [vmem:[%s302 + $0x48] sm:$0xff]
        %v314 = vld [vmem:[%s302 + $0x50] sm:$0xff]
        %v315 = vld [vmem:[%s302 + $0x58] sm:$0xff]
        %v316 = vld [vmem:[%s302 + $0x60] sm:$0xff]
        %v317 = vld [vmem:[%s302 + $0x68] sm:$0xff]
        %v318 = vld [vmem:[%s302 + $0x70] sm:$0xff]
        %v319 = vld [vmem:[%s302 + $0x78] sm:$0xff]
        %v320 = vld [vmem:[%s302 + $0x80] sm:$0xff]
        %v321 = vld [vmem:[%s302 + $0x88] sm:$0xff]
        %v322 = vld [vmem:[%s302 + $0x90] sm:$0xff]
        %v323 = vld [vmem:[%s302 + $0x98] sm:$0xff]
        %v324 = vld [vmem:[%s302 + $0xa0] sm:$0xff]
        %v325 = vld [vmem:[%s302 + $0xa8] sm:$0xff]
        %v326 = vld [vmem:[%s302 + $0xb0] sm:$0xff]
        %v327 = vld [vmem:[%s302 + $0xb8] sm:$0xff]
        %v328 = vld [vmem:[%s302 + $0xc0] sm:$0xff]
        %v329 = vld [vmem:[%s302 + $0xc8] sm:$0xff]
        %v330 = vld [vmem:[%s302 + $0xd0] sm:$0xff]
        %v331 = vld [vmem:[%s302 + $0xd8] sm:$0xff]
        %v332 = vld [vmem:[%s302 + $0xe0] sm:$0xff]
        %v333 = vld [vmem:[%s302 + $0xe8] sm:$0xff]
        %v334 = vld [vmem:[%s302 + $0xf0] sm:$0xff]
        %v335 = vld [vmem:[%s302 + $0xf8] sm:$0xff]
        %v336 = vld [vmem:[%s302 + $0x100] sm:$0xff]
        %v337 = vld [vmem:[%s302 + $0x108] sm:$0xff]
        %v338 = vld [vmem:[%s302 + $0x110] sm:$0xff]
        %v339 = vld [vmem:[%s302 + $0x118] sm:$0xff]
        %v340 = vld [vmem:[%s302 + $0x120] sm:$0xff]
        %v341 = vld [vmem:[%s302 + $0x128] sm:$0xf]
        %vm380 = vcmask 1046528
        %v381 = vrot.slane %v304, 1
        %v382 = vrot.slane %v305, 1
        %v383 = vsel %vm380, %v381, %v382
        %v384 = vrot.slane %v306, 1
        %v385 = vsel %vm380, %v382, %v384
        %v386 = vrot.slane %v307, 1
        %v387 = vsel %vm380, %v384, %v386
        %v388 = vrot.slane %v308, 1
        %v389 = vsel %vm380, %v386, %v388
        %v390 = vrot.slane %v309, 1
        %v391 = vsel %vm380, %v388, %v390
        %v392 = vrot.slane %v310, 1
        %v393 = vsel %vm380, %v390, %v392
        %v394 = vrot.slane %v311, 1
        %v395 = vsel %vm380, %v392, %v394
        %v396 = vrot.slane %v312, 1
        %v397 = vsel %vm380, %v394, %v396
        %v398 = vrot.slane %v313, 1
        %v399 = vsel %vm380, %v396, %v398
        %v400 = vrot.slane %v314, 1
        %v401 = vsel %vm380, %v398, %v400
        %v402 = vrot.slane %v315, 1
        %v403 = vsel %vm380, %v400, %v402
        %v404 = vrot.slane %v316, 1
        %v405 = vsel %vm380, %v402, %v404
        %v406 = vrot.slane %v317, 1
        %v407 = vsel %vm380, %v404, %v406
        %v408 = vrot.slane %v318, 1
        %v409 = vsel %vm380, %v406, %v408
        %v410 = vrot.slane %v319, 1
        %v411 = vsel %vm380, %v408, %v410
        %v412 = vrot.slane %v320, 1
        %v413 = vsel %vm380, %v410, %v412
        %v414 = vrot.slane %v321, 1
        %v415 = vsel %vm380, %v412, %v414
        %v416 = vrot.slane %v322, 1
        %v417 = vsel %vm380, %v414, %v416
        %v418 = vrot.slane %v323, 1
        %v419 = vsel %vm380, %v416, %v418
        %v420 = vrot.slane %v324, 1
        %v421 = vsel %vm380, %v418, %v420
        %v422 = vrot.slane %v325, 1
        %v423 = vsel %vm380, %v420, %v422
        %v424 = vrot.slane %v326, 1
        %v425 = vsel %vm380, %v422, %v424
        %v426 = vrot.slane %v327, 1
        %v427 = vsel %vm380, %v424, %v426
        %v428 = vrot.slane %v328, 1
        %v429 = vsel %vm380, %v426, %v428
        %v430 = vrot.slane %v329, 1
        %v431 = vsel %vm380, %v428, %v430
        %v432 = vrot.slane %v330, 1
        %v433 = vsel %vm380, %v430, %v432
        %v434 = vrot.slane %v331, 1
        %v435 = vsel %vm380, %v432, %v434
        %v436 = vrot.slane %v332, 1
        %v437 = vsel %vm380, %v434, %v436
        %v438 = vrot.slane %v333, 1
        %v439 = vsel %vm380, %v436, %v438
        %v440 = vrot.slane %v334, 1
        %v441 = vsel %vm380, %v438, %v440
        %v442 = vrot.slane %v335, 1
        %v443 = vsel %vm380, %v440, %v442
        %v444 = vrot.slane %v336, 1
        %v445 = vsel %vm380, %v442, %v444
        %v446 = vrot.slane %v337, 1
        %v447 = vsel %vm380, %v444, %v446
        %v448 = vrot.slane %v338, 1
        %v449 = vsel %vm380, %v446, %v448
        %v450 = vrot.slane %v339, 1
        %v451 = vsel %vm380, %v448, %v450
        %v452 = vrot.slane %v340, 1
        %v453 = vsel %vm380, %v450, %v452
        %v454 = vrot.slane %v341, 1
        %v455 = vsel %vm380, %v452, %v454
        %456 = vrot.lane.b32.xlu0 %v383, 12
        %v457 = vpop.permute.xlu0 %456
        %458 = vrot.lane.b32.xlu0 %v385, 12
        %v459 = vpop.permute.xlu0 %458
        %460 = vrot.lane.b32.xlu0 %v387, 12
        %v461 = vpop.permute.xlu0 %460
        %462 = vrot.lane.b32.xlu0 %v389, 12
        %v463 = vpop.permute.xlu0 %462
        %464 = vrot.lane.b32.xlu0 %v391, 12
        %v465 = vpop.permute.xlu0 %464
        %466 = vrot.lane.b32.xlu0 %v393, 12
        %v467 = vpop.permute.xlu0 %466
        %468 = vrot.lane.b32.xlu0 %v395, 12
        %v469 = vpop.permute.xlu0 %468
        %470 = vrot.lane.b32.xlu0 %v397, 12
        %v471 = vpop.permute.xlu0 %470
        %472 = vrot.lane.b32.xlu0 %v399, 12
        %v473 = vpop.permute.xlu0 %472
        %474 = vrot.lane.b32.xlu0 %v401, 12
        %v475 = vpop.permute.xlu0 %474
        %476 = vrot.lane.b32.xlu0 %v403, 12
        %v477 = vpop.permute.xlu0 %476
        %478 = vrot.lane.b32.xlu0 %v405, 12
        %v479 = vpop.permute.xlu0 %478
        %480 = vrot.lane.b32.xlu0 %v407, 12
        %v481 = vpop.permute.xlu0 %480
        %482 = vrot.lane.b32.xlu0 %v409, 12
        %v483 = vpop.permute.xlu0 %482
        %484 = vrot.lane.b32.xlu0 %v411, 12
        %v485 = vpop.permute.xlu0 %484
        %486 = vrot.lane.b32.xlu0 %v413, 12
        %v487 = vpop.permute.xlu0 %486
        %488 = vrot.lane.b32.xlu0 %v415, 12
        %v489 = vpop.permute.xlu0 %488
        %490 = vrot.lane.b32.xlu0 %v417, 12
        %v491 = vpop.permute.xlu0 %490
        %492 = vrot.lane.b32.xlu0 %v419, 12
        %v493 = vpop.permute.xlu0 %492
        %494 = vrot.lane.b32.xlu0 %v421, 12
        %v495 = vpop.permute.xlu0 %494
        %496 = vrot.lane.b32.xlu0 %v423, 12
        %v497 = vpop.permute.xlu0 %496
        %498 = vrot.lane.b32.xlu0 %v425, 12
        %v499 = vpop.permute.xlu0 %498
        %500 = vrot.lane.b32.xlu0 %v427, 12
        %v501 = vpop.permute.xlu0 %500
        %502 = vrot.lane.b32.xlu0 %v429, 12
        %v503 = vpop.permute.xlu0 %502
        %504 = vrot.lane.b32.xlu0 %v431, 12
        %v505 = vpop.permute.xlu0 %504
        %506 = vrot.lane.b32.xlu0 %v433, 12
        %v507 = vpop.permute.xlu0 %506
        %508 = vrot.lane.b32.xlu0 %v435, 12
        %v509 = vpop.permute.xlu0 %508
        %510 = vrot.lane.b32.xlu0 %v437, 12
        %v511 = vpop.permute.xlu0 %510
        %512 = vrot.lane.b32.xlu0 %v439, 12
        %v513 = vpop.permute.xlu0 %512
        %514 = vrot.lane.b32.xlu0 %v441, 12
        %v515 = vpop.permute.xlu0 %514
        %516 = vrot.lane.b32.xlu0 %v443, 12
        %v517 = vpop.permute.xlu0 %516
        %518 = vrot.lane.b32.xlu0 %v445, 12
        %v519 = vpop.permute.xlu0 %518
        %520 = vrot.lane.b32.xlu0 %v447, 12
        %v521 = vpop.permute.xlu0 %520
        %522 = vrot.lane.b32.xlu0 %v449, 12
        %v523 = vpop.permute.xlu0 %522
        %524 = vrot.lane.b32.xlu0 %v451, 12
        %v525 = vpop.permute.xlu0 %524
        %526 = vrot.lane.b32.xlu0 %v453, 12
        %v527 = vpop.permute.xlu0 %526
        %528 = vrot.lane.b32.xlu0 %v455, 12
        %v529 = vpop.permute.xlu0 %528
        %530 = vrot.lane.b32.xlu0 %v454, 12
        %v531 = vpop.permute.xlu0 %530
        %vm570 = vcmask 1045504
        %v571 = vrot.slane %v304, 2
        %v572 = vrot.slane %v305, 2
        %v573 = vsel %vm570, %v571, %v572
        %v574 = vrot.slane %v306, 2
        %v575 = vsel %vm570, %v572, %v574
        %v576 = vrot.slane %v307, 2
        %v577 = vsel %vm570, %v574, %v576
        %v578 = vrot.slane %v308, 2
        %v579 = vsel %vm570, %v576, %v578
        %v580 = vrot.slane %v309, 2
        %v581 = vsel %vm570, %v578, %v580
        %v582 = vrot.slane %v310, 2
        %v583 = vsel %vm570, %v580, %v582
        %v584 = vrot.slane %v311, 2
        %v585 = vsel %vm570, %v582, %v584
        %v586 = vrot.slane %v312, 2
        %v587 = vsel %vm570, %v584, %v586
        %v588 = vrot.slane %v313, 2
        %v589 = vsel %vm570, %v586, %v588
        %v590 = vrot.slane %v314, 2
        %v591 = vsel %vm570, %v588, %v590
        %v592 = vrot.slane %v315, 2
        %v593 = vsel %vm570, %v590, %v592
        %v594 = vrot.slane %v316, 2
        %v595 = vsel %vm570, %v592, %v594
        %v596 = vrot.slane %v317, 2
        %v597 = vsel %vm570, %v594, %v596
        %v598 = vrot.slane %v318, 2
        %v599 = vsel %vm570, %v596, %v598
        %v600 = vrot.slane %v319, 2
        %v601 = vsel %vm570, %v598, %v600
        %v602 = vrot.slane %v320, 2
        %v603 = vsel %vm570, %v600, %v602
        %v604 = vrot.slane %v321, 2
        %v605 = vsel %vm570, %v602, %v604
        %v606 = vrot.slane %v322, 2
        %v607 = vsel %vm570, %v604, %v606
        %v608 = vrot.slane %v323, 2
        %v609 = vsel %vm570, %v606, %v608
        %v610 = vrot.slane %v324, 2
        %v611 = vsel %vm570, %v608, %v610
        %v612 = vrot.slane %v325, 2
        %v613 = vsel %vm570, %v610, %v612
        %v614 = vrot.slane %v326, 2
        %v615 = vsel %vm570, %v612, %v614
        %v616 = vrot.slane %v327, 2
        %v617 = vsel %vm570, %v614, %v616
        %v618 = vrot.slane %v328, 2
        %v619 = vsel %vm570, %v616, %v618
        %v620 = vrot.slane %v329, 2
        %v621 = vsel %vm570, %v618, %v620
        %v622 = vrot.slane %v330, 2
        %v623 = vsel %vm570, %v620, %v622
        %v624 = vrot.slane %v331, 2
        %v625 = vsel %vm570, %v622, %v624
        %v626 = vrot.slane %v332, 2
        %v627 = vsel %vm570, %v624, %v626
        %v628 = vrot.slane %v333, 2
        %v629 = vsel %vm570, %v626, %v628
        %v630 = vrot.slane %v334, 2
        %v631 = vsel %vm570, %v628, %v630
        %v632 = vrot.slane %v335, 2
        %v633 = vsel %vm570, %v630, %v632
        %v634 = vrot.slane %v336, 2
        %v635 = vsel %vm570, %v632, %v634
        %v636 = vrot.slane %v337, 2
        %v637 = vsel %vm570, %v634, %v636
        %v638 = vrot.slane %v338, 2
        %v639 = vsel %vm570, %v636, %v638
        %v640 = vrot.slane %v339, 2
        %v641 = vsel %vm570, %v638, %v640
        %v642 = vrot.slane %v340, 2
        %v643 = vsel %vm570, %v640, %v642
        %v644 = vrot.slane %v341, 2
        %v645 = vsel %vm570, %v642, %v644
        %646 = vrot.lane.b32.xlu0 %v573, 24
        %v647 = vpop.permute.xlu0 %646
        %648 = vrot.lane.b32.xlu0 %v575, 24
        %v649 = vpop.permute.xlu0 %648
        %650 = vrot.lane.b32.xlu0 %v577, 24
        %v651 = vpop.permute.xlu0 %650
        %652 = vrot.lane.b32.xlu0 %v579, 24
        %v653 = vpop.permute.xlu0 %652
        %654 = vrot.lane.b32.xlu0 %v581, 24
        %v655 = vpop.permute.xlu0 %654
        %656 = vrot.lane.b32.xlu0 %v583, 24
        %v657 = vpop.permute.xlu0 %656
        %658 = vrot.lane.b32.xlu0 %v585, 24
        %v659 = vpop.permute.xlu0 %658
        %660 = vrot.lane.b32.xlu0 %v587, 24
        %v661 = vpop.permute.xlu0 %660
        %662 = vrot.lane.b32.xlu0 %v589, 24
        %v663 = vpop.permute.xlu0 %662
        %664 = vrot.lane.b32.xlu0 %v591, 24
        %v665 = vpop.permute.xlu0 %664
        %666 = vrot.lane.b32.xlu0 %v593, 24
        %v667 = vpop.permute.xlu0 %666
        %668 = vrot.lane.b32.xlu0 %v595, 24
        %v669 = vpop.permute.xlu0 %668
        %670 = vrot.lane.b32.xlu0 %v597, 24
        %v671 = vpop.permute.xlu0 %670
        %672 = vrot.lane.b32.xlu0 %v599, 24
        %v673 = vpop.permute.xlu0 %672
        %674 = vrot.lane.b32.xlu0 %v601, 24
        %v675 = vpop.permute.xlu0 %674
        %676 = vrot.lane.b32.xlu0 %v603, 24
        %v677 = vpop.permute.xlu0 %676
        %678 = vrot.lane.b32.xlu0 %v605, 24
        %v679 = vpop.permute.xlu0 %678
        %680 = vrot.lane.b32.xlu0 %v607, 24
        %v681 = vpop.permute.xlu0 %680
        %682 = vrot.lane.b32.xlu0 %v609, 24
        %v683 = vpop.permute.xlu0 %682
        %684 = vrot.lane.b32.xlu0 %v611, 24
        %v685 = vpop.permute.xlu0 %684
        %686 = vrot.lane.b32.xlu0 %v613, 24
        %v687 = vpop.permute.xlu0 %686
        %688 = vrot.lane.b32.xlu0 %v615, 24
        %v689 = vpop.permute.xlu0 %688
        %690 = vrot.lane.b32.xlu0 %v617, 24
        %v691 = vpop.permute.xlu0 %690
        %692 = vrot.lane.b32.xlu0 %v619, 24
        %v693 = vpop.permute.xlu0 %692
        %694 = vrot.lane.b32.xlu0 %v621, 24
        %v695 = vpop.permute.xlu0 %694
        %696 = vrot.lane.b32.xlu0 %v623, 24
        %v697 = vpop.permute.xlu0 %696
        %698 = vrot.lane.b32.xlu0 %v625, 24
        %v699 = vpop.permute.xlu0 %698
        %700 = vrot.lane.b32.xlu0 %v627, 24
        %v701 = vpop.permute.xlu0 %700
        %702 = vrot.lane.b32.xlu0 %v629, 24
        %v703 = vpop.permute.xlu0 %702
        %704 = vrot.lane.b32.xlu0 %v631, 24
        %v705 = vpop.permute.xlu0 %704
        %706 = vrot.lane.b32.xlu0 %v633, 24
        %v707 = vpop.permute.xlu0 %706
        %708 = vrot.lane.b32.xlu0 %v635, 24
        %v709 = vpop.permute.xlu0 %708
        %710 = vrot.lane.b32.xlu0 %v637, 24
        %v711 = vpop.permute.xlu0 %710
        %712 = vrot.lane.b32.xlu0 %v639, 24
        %v713 = vpop.permute.xlu0 %712
        %714 = vrot.lane.b32.xlu0 %v641, 24
        %v715 = vpop.permute.xlu0 %714
        %716 = vrot.lane.b32.xlu0 %v643, 24
        %v717 = vpop.permute.xlu0 %716
        %718 = vrot.lane.b32.xlu0 %v645, 24
        %v719 = vpop.permute.xlu0 %718
        %720 = vrot.lane.b32.xlu0 %v644, 24
        %v721 = vpop.permute.xlu0 %720
        %vm760 = vcmask 97280
        %v761 = vsel %vm760, %v304, %v457
        %v762 = vsel %vm760, %v305, %v459
        %v763 = vsel %vm760, %v306, %v461
        %v764 = vsel %vm760, %v307, %v463
        %v765 = vsel %vm760, %v308, %v465
        %v766 = vsel %vm760, %v309, %v467
        %v767 = vsel %vm760, %v310, %v469
        %v768 = vsel %vm760, %v311, %v471
        %v769 = vsel %vm760, %v312, %v473
        %v770 = vsel %vm760, %v313, %v475
        %v771 = vsel %vm760, %v314, %v477
        %v772 = vsel %vm760, %v315, %v479
        %v773 = vsel %vm760, %v316, %v481
        %v774 = vsel %vm760, %v317, %v483
        %v775 = vsel %vm760, %v318, %v485
        %v776 = vsel %vm760, %v319, %v487
        %v777 = vsel %vm760, %v320, %v489
        %v778 = vsel %vm760, %v321, %v491
        %v779 = vsel %vm760, %v322, %v493
        %v780 = vsel %vm760, %v323, %v495
        %v781 = vsel %vm760, %v324, %v497
        %v782 = vsel %vm760, %v325, %v499
        %v783 = vsel %vm760, %v326, %v501
        %v784 = vsel %vm760, %v327, %v503
        %v785 = vsel %vm760, %v328, %v505
        %v786 = vsel %vm760, %v329, %v507
        %v787 = vsel %vm760, %v330, %v509
        %v788 = vsel %vm760, %v331, %v511
        %v789 = vsel %vm760, %v332, %v513
        %v790 = vsel %vm760, %v333, %v515
        %v791 = vsel %vm760, %v334, %v517
        %v792 = vsel %vm760, %v335, %v519
        %v793 = vsel %vm760, %v336, %v521
        %v794 = vsel %vm760, %v337, %v523
        %v795 = vsel %vm760, %v338, %v525
        %v796 = vsel %vm760, %v339, %v527
        %v797 = vsel %vm760, %v340, %v529
        %v798 = vsel %vm760, %v341, %v531
        %vm799 = vcmask 195584
        %v800 = vsel %vm799, %v761, %v647
        %v801 = vsel %vm799, %v762, %v649
        %v802 = vsel %vm799, %v763, %v651
        %v803 = vsel %vm799, %v764, %v653
        %v804 = vsel %vm799, %v765, %v655
        %v805 = vsel %vm799, %v766, %v657
        %v806 = vsel %vm799, %v767, %v659
        %v807 = vsel %vm799, %v768, %v661
        %v808 = vsel %vm799, %v769, %v663
        %v809 = vsel %vm799, %v770, %v665
        %v810 = vsel %vm799, %v771, %v667
        %v811 = vsel %vm799, %v772, %v669
        %v812 = vsel %vm799, %v773, %v671
        %v813 = vsel %vm799, %v774, %v673
        %v814 = vsel %vm799, %v775, %v675
        %v815 = vsel %vm799, %v776, %v677
        %v816 = vsel %vm799, %v777, %v679
        %v817 = vsel %vm799, %v778, %v681
        %v818 = vsel %vm799, %v779, %v683
        %v819 = vsel %vm799, %v780, %v685
        %v820 = vsel %vm799, %v781, %v687
        %v821 = vsel %vm799, %v782, %v689
        %v822 = vsel %vm799, %v783, %v691
        %v823 = vsel %vm799, %v784, %v693
        %v824 = vsel %vm799, %v785, %v695
        %v825 = vsel %vm799, %v786, %v697
        %v826 = vsel %vm799, %v787, %v699
        %v827 = vsel %vm799, %v788, %v701
        %v828 = vsel %vm799, %v789, %v703
        %v829 = vsel %vm799, %v790, %v705
        %v830 = vsel %vm799, %v791, %v707
        %v831 = vsel %vm799, %v792, %v709
        %v832 = vsel %vm799, %v793, %v711
        %v833 = vsel %vm799, %v794, %v713
        %v834 = vsel %vm799, %v795, %v715
        %v835 = vsel %vm799, %v796, %v717
        %v836 = vsel %vm799, %v797, %v719
        %v837 = vsel %vm799, %v798, %v721
        %v838 = vpack.c.bf16 %v801, %v800
        %v839 = vpack.c.bf16 %v803, %v802
        %v840 = vpack.c.bf16 %v805, %v804
        %v841 = vpack.c.bf16 %v807, %v806
        %v842 = vpack.c.bf16 %v809, %v808
        %v843 = vpack.c.bf16 %v811, %v810
        %v844 = vpack.c.bf16 %v813, %v812
        %v845 = vpack.c.bf16 %v815, %v814
        %v846 = vpack.c.bf16 %v817, %v816
        %v847 = vpack.c.bf16 %v819, %v818
        %v848 = vpack.c.bf16 %v821, %v820
        %v849 = vpack.c.bf16 %v823, %v822
        %v850 = vpack.c.bf16 %v825, %v824
        %v851 = vpack.c.bf16 %v827, %v826
        %v852 = vpack.c.bf16 %v829, %v828
        %v853 = vpack.c.bf16 %v831, %v830
        %v854 = vpack.c.bf16 %v833, %v832
        %v855 = vpack.c.bf16 %v835, %v834
        %v856 = vpack.c.bf16 %v837, %v836
        %v857 = vld [vmem:[%s1] sm:$0xf]
        %v858 = vld [vmem:[%s1 + $0x4] sm:$0xf]
        %v859 = vld [vmem:[%s1 + $0x8] sm:$0xf]
        %v860 = vld [vmem:[%s1 + $0xc] sm:$0xf]
        %v861 = vld [vmem:[%s1 + $0x10] sm:$0x3]
        %v862 = vld [vmem:[%s2] sm:$0x1]
        %v864 = vperm.slane %v862, 0
        %v871 = vunpack.c.l.b16 %v857
        %v872 = vunpack.c.l.b16 %v858
        %v873 = vunpack.c.l.b16 %v859
        %v874 = vunpack.c.l.b16 %v860
        %v875 = vunpack.c.l.b16 %v861
        %v876 = vpack.c.b16 %v872, %v871
        %v877 = vpack.c.b16 %v874, %v873
        %v878 = vpack.c.b16 %v875, %v875
        %vm881 = vcmask 293888
        %v883 = vsel %vm881, %v838, 0
        %v886 = vsel %vm881, %v839, 0
        %v889 = vsel %vm881, %v840, 0
        %v892 = vsel %vm881, %v841, 0
        %v895 = vsel %vm881, %v842, 0
        %v898 = vsel %vm881, %v843, 0
        %v901 = vsel %vm881, %v844, 0
        %v904 = vsel %vm881, %v845, 0
        %v907 = vsel %vm881, %v846, 0
        %v910 = vsel %vm881, %v847, 0
        %v913 = vsel %vm881, %v848, 0
        %v916 = vsel %vm881, %v849, 0
        %v919 = vsel %vm881, %v850, 0
        %v922 = vsel %vm881, %v851, 0
        %v925 = vsel %vm881, %v852, 0
        %v928 = vsel %vm881, %v853, 0
        %v931 = vsel %vm881, %v854, 0
        %v934 = vsel %vm881, %v855, 0
        %v937 = vsel %vm881, %v856, 0
        %vm939 = vcmask 1041408
        %v941 = vsel %vm939, %v878, 0
        %943 = vmatpush.bf16.msra.mxu0 0
        %944 = vmatpush.bf16.msra.mxu0 0
        %945 = vmatpush.bf16.msra.mxu0 0
        %946 = vmatpush.bf16.msra.mxu0 0
        %947 = vmatpush.bf16.msra.mxu0 0
        %948 = vmatpush.bf16.msra.mxu0 %v941
        %949 = vmatpush.bf16.msra.mxu0 %v877
        %950 = vmatpush.bf16.msra.mxu0 %v876
        %951 = vmatmul.bf16.gmra.mxu0 %v883
        %v952 = vpop.f32.mrf.mxu0
        %v953 = vadd.f32 %v864, %v952
        %v954 = vpop.f32.mrf.mxu0
        %v955 = vadd.f32 %v864, %v954
        %956 = vmatmul.bf16.gmra.mxu0 %v886
        %v957 = vpop.f32.mrf.mxu0
        %v958 = vadd.f32 %v864, %v957
        %v959 = vpop.f32.mrf.mxu0
        %v960 = vadd.f32 %v864, %v959
        %961 = vmatmul.bf16.gmra.mxu0 %v889
        %v962 = vpop.f32.mrf.mxu0
        %v963 = vadd.f32 %v864, %v962
        %v964 = vpop.f32.mrf.mxu0
        %v965 = vadd.f32 %v864, %v964
        %966 = vmatmul.bf16.gmra.mxu0 %v892
        %v967 = vpop.f32.mrf.mxu0
        %v968 = vadd.f32 %v864, %v967
        %v969 = vpop.f32.mrf.mxu0
        %v970 = vadd.f32 %v864, %v969
        %971 = vmatmul.bf16.gmra.mxu0 %v895
        %v972 = vpop.f32.mrf.mxu0
        %v973 = vadd.f32 %v864, %v972
        %v974 = vpop.f32.mrf.mxu0
        %v975 = vadd.f32 %v864, %v974
        %976 = vmatmul.bf16.gmra.mxu0 %v898
        %v977 = vpop.f32.mrf.mxu0
        %v978 = vadd.f32 %v864, %v977
        %v979 = vpop.f32.mrf.mxu0
        %v980 = vadd.f32 %v864, %v979
        %981 = vmatmul.bf16.gmra.mxu0 %v901
        %v982 = vpop.f32.mrf.mxu0
        %v983 = vadd.f32 %v864, %v982
        %v984 = vpop.f32.mrf.mxu0
        %v985 = vadd.f32 %v864, %v984
        %986 = vmatmul.bf16.gmra.mxu0 %v904
        %v987 = vpop.f32.mrf.mxu0
        %v988 = vadd.f32 %v864, %v987
        %v989 = vpop.f32.mrf.mxu0
        %v990 = vadd.f32 %v864, %v989
        %991 = vmatmul.bf16.gmra.mxu0 %v907
        %v992 = vpop.f32.mrf.mxu0
        %v993 = vadd.f32 %v864, %v992
        %v994 = vpop.f32.mrf.mxu0
        %v995 = vadd.f32 %v864, %v994
        %996 = vmatmul.bf16.gmra.mxu0 %v910
        %v997 = vpop.f32.mrf.mxu0
        %v998 = vadd.f32 %v864, %v997
        %v999 = vpop.f32.mrf.mxu0
        %v1000 = vadd.f32 %v864, %v999
        %1001 = vmatmul.bf16.gmra.mxu0 %v913
        %v1002 = vpop.f32.mrf.mxu0
        %v1003 = vadd.f32 %v864, %v1002
        %v1004 = vpop.f32.mrf.mxu0
        %v1005 = vadd.f32 %v864, %v1004
        %1006 = vmatmul.bf16.gmra.mxu0 %v916
        %v1007 = vpop.f32.mrf.mxu0
        %v1008 = vadd.f32 %v864, %v1007
        %v1009 = vpop.f32.mrf.mxu0
        %v1010 = vadd.f32 %v864, %v1009
        %1011 = vmatmul.bf16.gmra.mxu0 %v919
        %v1012 = vpop.f32.mrf.mxu0
        %v1013 = vadd.f32 %v864, %v1012
        %v1014 = vpop.f32.mrf.mxu0
        %v1015 = vadd.f32 %v864, %v1014
        %1016 = vmatmul.bf16.gmra.mxu0 %v922
        %v1017 = vpop.f32.mrf.mxu0
        %v1018 = vadd.f32 %v864, %v1017
        %v1019 = vpop.f32.mrf.mxu0
        %v1020 = vadd.f32 %v864, %v1019
        %1021 = vmatmul.bf16.gmra.mxu0 %v925
        %v1022 = vpop.f32.mrf.mxu0
        %v1023 = vadd.f32 %v864, %v1022
        %v1024 = vpop.f32.mrf.mxu0
        %v1025 = vadd.f32 %v864, %v1024
        %1026 = vmatmul.bf16.gmra.mxu0 %v928
        %v1027 = vpop.f32.mrf.mxu0
        %v1028 = vadd.f32 %v864, %v1027
        %v1029 = vpop.f32.mrf.mxu0
        %v1030 = vadd.f32 %v864, %v1029
        %1031 = vmatmul.bf16.gmra.mxu0 %v931
        %v1032 = vpop.f32.mrf.mxu0
        %v1033 = vadd.f32 %v864, %v1032
        %v1034 = vpop.f32.mrf.mxu0
        %v1035 = vadd.f32 %v864, %v1034
        %1036 = vmatmul.bf16.gmra.mxu0 %v934
        %v1037 = vpop.f32.mrf.mxu0
        %v1038 = vadd.f32 %v864, %v1037
        %v1039 = vpop.f32.mrf.mxu0
        %v1040 = vadd.f32 %v864, %v1039
        %1041 = vmatmul.bf16.gmra.mxu0 %v937
        %v1042 = vpop.f32.mrf.mxu0
        %v1043 = vadd.f32 %v864, %v1042
        %v1044 = vpop.f32.mrf.mxu0
        %v1045 = vadd.f32 %v864, %v1044
        %1046 = vdwg.mxu0
        %v1047 = vmax.f32 %v953, 0.0
        %v1048 = vmax.f32 %v955, 0.0
        %v1049 = vmax.f32 %v958, 0.0
        %v1050 = vmax.f32 %v960, 0.0
        %v1051 = vmax.f32 %v963, 0.0
        %v1052 = vmax.f32 %v965, 0.0
        %v1053 = vmax.f32 %v968, 0.0
        %v1054 = vmax.f32 %v970, 0.0
        %v1055 = vmax.f32 %v973, 0.0
        %v1056 = vmax.f32 %v975, 0.0
        %v1057 = vmax.f32 %v978, 0.0
        %v1058 = vmax.f32 %v980, 0.0
        %v1059 = vmax.f32 %v983, 0.0
        %v1060 = vmax.f32 %v985, 0.0
        %v1061 = vmax.f32 %v988, 0.0
        %v1062 = vmax.f32 %v990, 0.0
        %v1063 = vmax.f32 %v993, 0.0
        %v1064 = vmax.f32 %v995, 0.0
        %v1065 = vmax.f32 %v998, 0.0
        %v1066 = vmax.f32 %v1000, 0.0
        %v1067 = vmax.f32 %v1003, 0.0
        %v1068 = vmax.f32 %v1005, 0.0
        %v1069 = vmax.f32 %v1008, 0.0
        %v1070 = vmax.f32 %v1010, 0.0
        %v1071 = vmax.f32 %v1013, 0.0
        %v1072 = vmax.f32 %v1015, 0.0
        %v1073 = vmax.f32 %v1018, 0.0
        %v1074 = vmax.f32 %v1020, 0.0
        %v1075 = vmax.f32 %v1023, 0.0
        %v1076 = vmax.f32 %v1025, 0.0
        %v1077 = vmax.f32 %v1028, 0.0
        %v1078 = vmax.f32 %v1030, 0.0
        %v1079 = vmax.f32 %v1033, 0.0
        %v1080 = vmax.f32 %v1035, 0.0
        %v1081 = vmax.f32 %v1038, 0.0
        %v1082 = vmax.f32 %v1040, 0.0
        %v1083 = vmax.f32 %v1043, 0.0
        %v1084 = vmax.f32 %v1045, 0.0
        %vm1122 = vcmask 1044480
        %v1123 = vrot.slane %v1047, 3
        %v1124 = vrot.slane %v1048, 3
        %v1125 = vsel %vm1122, %v1123, %v1124
        %v1126 = vrot.slane %v1049, 3
        %v1127 = vsel %vm1122, %v1124, %v1126
        %v1128 = vrot.slane %v1050, 3
        %v1129 = vsel %vm1122, %v1126, %v1128
        %v1130 = vrot.slane %v1051, 3
        %v1131 = vsel %vm1122, %v1128, %v1130
        %v1132 = vrot.slane %v1052, 3
        %v1133 = vsel %vm1122, %v1130, %v1132
        %v1134 = vrot.slane %v1053, 3
        %v1135 = vsel %vm1122, %v1132, %v1134
        %v1136 = vrot.slane %v1054, 3
        %v1137 = vsel %vm1122, %v1134, %v1136
        %v1138 = vrot.slane %v1055, 3
        %v1139 = vsel %vm1122, %v1136, %v1138
        %v1140 = vrot.slane %v1056, 3
        %v1141 = vsel %vm1122, %v1138, %v1140
        %v1142 = vrot.slane %v1057, 3
        %v1143 = vsel %vm1122, %v1140, %v1142
        %v1144 = vrot.slane %v1058, 3
        %v1145 = vsel %vm1122, %v1142, %v1144
        %v1146 = vrot.slane %v1059, 3
        %v1147 = vsel %vm1122, %v1144, %v1146
        %v1148 = vrot.slane %v1060, 3
        %v1149 = vsel %vm1122, %v1146, %v1148
        %v1150 = vrot.slane %v1061, 3
        %v1151 = vsel %vm1122, %v1148, %v1150
        %v1152 = vrot.slane %v1062, 3
        %v1153 = vsel %vm1122, %v1150, %v1152
        %v1154 = vrot.slane %v1063, 3
        %v1155 = vsel %vm1122, %v1152, %v1154
        %v1156 = vrot.slane %v1064, 3
        %v1157 = vsel %vm1122, %v1154, %v1156
        %v1158 = vrot.slane %v1065, 3
        %v1159 = vsel %vm1122, %v1156, %v1158
        %v1160 = vrot.slane %v1066, 3
        %v1161 = vsel %vm1122, %v1158, %v1160
        %v1162 = vrot.slane %v1067, 3
        %v1163 = vsel %vm1122, %v1160, %v1162
        %v1164 = vrot.slane %v1068, 3
        %v1165 = vsel %vm1122, %v1162, %v1164
        %v1166 = vrot.slane %v1069, 3
        %v1167 = vsel %vm1122, %v1164, %v1166
        %v1168 = vrot.slane %v1070, 3
        %v1169 = vsel %vm1122, %v1166, %v1168
        %v1170 = vrot.slane %v1071, 3
        %v1171 = vsel %vm1122, %v1168, %v1170
        %v1172 = vrot.slane %v1072, 3
        %v1173 = vsel %vm1122, %v1170, %v1172
        %v1174 = vrot.slane %v1073, 3
        %v1175 = vsel %vm1122, %v1172, %v1174
        %v1176 = vrot.slane %v1074, 3
        %v1177 = vsel %vm1122, %v1174, %v1176
        %v1178 = vrot.slane %v1075, 3
        %v1179 = vsel %vm1122, %v1176, %v1178
        %v1180 = vrot.slane %v1076, 3
        %v1181 = vsel %vm1122, %v1178, %v1180
        %v1182 = vrot.slane %v1077, 3
        %v1183 = vsel %vm1122, %v1180, %v1182
        %v1184 = vrot.slane %v1078, 3
        %v1185 = vsel %vm1122, %v1182, %v1184
        %v1186 = vrot.slane %v1079, 3
        %v1187 = vsel %vm1122, %v1184, %v1186
        %v1188 = vrot.slane %v1080, 3
        %v1189 = vsel %vm1122, %v1186, %v1188
        %v1190 = vrot.slane %v1081, 3
        %v1191 = vsel %vm1122, %v1188, %v1190
        %v1192 = vrot.slane %v1082, 3
        %v1193 = vsel %vm1122, %v1190, %v1192
        %v1194 = vrot.slane %v1083, 3
        %v1195 = vsel %vm1122, %v1192, %v1194
        %1196 = vrot.lane.b32.xlu0 %v1125, 32
        %v1197 = vpop.permute.xlu0 %1196
        %1198 = vrot.lane.b32.xlu0 %v1127, 32
        %v1199 = vpop.permute.xlu0 %1198
        %1200 = vrot.lane.b32.xlu0 %v1129, 32
        %v1201 = vpop.permute.xlu0 %1200
        %1202 = vrot.lane.b32.xlu0 %v1131, 32
        %v1203 = vpop.permute.xlu0 %1202
        %1204 = vrot.lane.b32.xlu0 %v1133, 32
        %v1205 = vpop.permute.xlu0 %1204
        %1206 = vrot.lane.b32.xlu0 %v1135, 32
        %v1207 = vpop.permute.xlu0 %1206
        %1208 = vrot.lane.b32.xlu0 %v1137, 32
        %v1209 = vpop.permute.xlu0 %1208
        %1210 = vrot.lane.b32.xlu0 %v1139, 32
        %v1211 = vpop.permute.xlu0 %1210
        %1212 = vrot.lane.b32.xlu0 %v1141, 32
        %v1213 = vpop.permute.xlu0 %1212
        %1214 = vrot.lane.b32.xlu0 %v1143, 32
        %v1215 = vpop.permute.xlu0 %1214
        %1216 = vrot.lane.b32.xlu0 %v1145, 32
        %v1217 = vpop.permute.xlu0 %1216
        %1218 = vrot.lane.b32.xlu0 %v1147, 32
        %v1219 = vpop.permute.xlu0 %1218
        %1220 = vrot.lane.b32.xlu0 %v1149, 32
        %v1221 = vpop.permute.xlu0 %1220
        %1222 = vrot.lane.b32.xlu0 %v1151, 32
        %v1223 = vpop.permute.xlu0 %1222
        %1224 = vrot.lane.b32.xlu0 %v1153, 32
        %v1225 = vpop.permute.xlu0 %1224
        %1226 = vrot.lane.b32.xlu0 %v1155, 32
        %v1227 = vpop.permute.xlu0 %1226
        %1228 = vrot.lane.b32.xlu0 %v1157, 32
        %v1229 = vpop.permute.xlu0 %1228
        %1230 = vrot.lane.b32.xlu0 %v1159, 32
        %v1231 = vpop.permute.xlu0 %1230
        %1232 = vrot.lane.b32.xlu0 %v1161, 32
        %v1233 = vpop.permute.xlu0 %1232
        %1234 = vrot.lane.b32.xlu0 %v1163, 32
        %v1235 = vpop.permute.xlu0 %1234
        %1236 = vrot.lane.b32.xlu0 %v1165, 32
        %v1237 = vpop.permute.xlu0 %1236
        %1238 = vrot.lane.b32.xlu0 %v1167, 32
        %v1239 = vpop.permute.xlu0 %1238
        %1240 = vrot.lane.b32.xlu0 %v1169, 32
        %v1241 = vpop.permute.xlu0 %1240
        %1242 = vrot.lane.b32.xlu0 %v1171, 32
        %v1243 = vpop.permute.xlu0 %1242
        %1244 = vrot.lane.b32.xlu0 %v1173, 32
        %v1245 = vpop.permute.xlu0 %1244
        %1246 = vrot.lane.b32.xlu0 %v1175, 32
        %v1247 = vpop.permute.xlu0 %1246
        %1248 = vrot.lane.b32.xlu0 %v1177, 32
        %v1249 = vpop.permute.xlu0 %1248
        %1250 = vrot.lane.b32.xlu0 %v1179, 32
        %v1251 = vpop.permute.xlu0 %1250
        %1252 = vrot.lane.b32.xlu0 %v1181, 32
        %v1253 = vpop.permute.xlu0 %1252
        %1254 = vrot.lane.b32.xlu0 %v1183, 32
        %v1255 = vpop.permute.xlu0 %1254
        %1256 = vrot.lane.b32.xlu0 %v1185, 32
        %v1257 = vpop.permute.xlu0 %1256
        %1258 = vrot.lane.b32.xlu0 %v1187, 32
        %v1259 = vpop.permute.xlu0 %1258
        %1260 = vrot.lane.b32.xlu0 %v1189, 32
        %v1261 = vpop.permute.xlu0 %1260
        %1262 = vrot.lane.b32.xlu0 %v1191, 32
        %v1263 = vpop.permute.xlu0 %1262
        %1264 = vrot.lane.b32.xlu0 %v1193, 32
        %v1265 = vpop.permute.xlu0 %1264
        %1266 = vrot.lane.b32.xlu0 %v1195, 32
        %v1267 = vpop.permute.xlu0 %1266
        %1268 = vrot.lane.b32.xlu0 %v1194, 32
        %v1269 = vpop.permute.xlu0 %1268
        %v1308 = vrot.slane %v1047, 6
        %v1309 = vrot.slane %v1048, 6
        %v1310 = vsel %vm939, %v1308, %v1309
        %v1311 = vrot.slane %v1049, 6
        %v1312 = vsel %vm939, %v1309, %v1311
        %v1313 = vrot.slane %v1050, 6
        %v1314 = vsel %vm939, %v1311, %v1313
        %v1315 = vrot.slane %v1051, 6
        %v1316 = vsel %vm939, %v1313, %v1315
        %v1317 = vrot.slane %v1052, 6
        %v1318 = vsel %vm939, %v1315, %v1317
        %v1319 = vrot.slane %v1053, 6
        %v1320 = vsel %vm939, %v1317, %v1319
        %v1321 = vrot.slane %v1054, 6
        %v1322 = vsel %vm939, %v1319, %v1321
        %v1323 = vrot.slane %v1055, 6
        %v1324 = vsel %vm939, %v1321, %v1323
        %v1325 = vrot.slane %v1056, 6
        %v1326 = vsel %vm939, %v1323, %v1325
        %v1327 = vrot.slane %v1057, 6
        %v1328 = vsel %vm939, %v1325, %v1327
        %v1329 = vrot.slane %v1058, 6
        %v1330 = vsel %vm939, %v1327, %v1329
        %v1331 = vrot.slane %v1059, 6
        %v1332 = vsel %vm939, %v1329, %v1331
        %v1333 = vrot.slane %v1060, 6
        %v1334 = vsel %vm939, %v1331, %v1333
        %v1335 = vrot.slane %v1061, 6
        %v1336 = vsel %vm939, %v1333, %v1335
        %v1337 = vrot.slane %v1062, 6
        %v1338 = vsel %vm939, %v1335, %v1337
        %v1339 = vrot.slane %v1063, 6
        %v1340 = vsel %vm939, %v1337, %v1339
        %v1341 = vrot.slane %v1064, 6
        %v1342 = vsel %vm939, %v1339, %v1341
        %v1343 = vrot.slane %v1065, 6
        %v1344 = vsel %vm939, %v1341, %v1343
        %v1345 = vrot.slane %v1066, 6
        %v1346 = vsel %vm939, %v1343, %v1345
        %v1347 = vrot.slane %v1067, 6
        %v1348 = vsel %vm939, %v1345, %v1347
        %v1349 = vrot.slane %v1068, 6
        %v1350 = vsel %vm939, %v1347, %v1349
        %v1351 = vrot.slane %v1069, 6
        %v1352 = vsel %vm939, %v1349, %v1351
        %v1353 = vrot.slane %v1070, 6
        %v1354 = vsel %vm939, %v1351, %v1353
        %v1355 = vrot.slane %v1071, 6
        %v1356 = vsel %vm939, %v1353, %v1355
        %v1357 = vrot.slane %v1072, 6
        %v1358 = vsel %vm939, %v1355, %v1357
        %v1359 = vrot.slane %v1073, 6
        %v1360 = vsel %vm939, %v1357, %v1359
        %v1361 = vrot.slane %v1074, 6
        %v1362 = vsel %vm939, %v1359, %v1361
        %v1363 = vrot.slane %v1075, 6
        %v1364 = vsel %vm939, %v1361, %v1363
        %v1365 = vrot.slane %v1076, 6
        %v1366 = vsel %vm939, %v1363, %v1365
        %v1367 = vrot.slane %v1077, 6
        %v1368 = vsel %vm939, %v1365, %v1367
        %v1369 = vrot.slane %v1078, 6
        %v1370 = vsel %vm939, %v1367, %v1369
        %v1371 = vrot.slane %v1079, 6
        %v1372 = vsel %vm939, %v1369, %v1371
        %v1373 = vrot.slane %v1080, 6
        %v1374 = vsel %vm939, %v1371, %v1373
        %v1375 = vrot.slane %v1081, 6
        %v1376 = vsel %vm939, %v1373, %v1375
        %v1377 = vrot.slane %v1082, 6
        %v1378 = vsel %vm939, %v1375, %v1377
        %v1379 = vrot.slane %v1083, 6
        %v1380 = vsel %vm939, %v1377, %v1379
        %v1381 = vrot.slane %v1084, 6
        %v1382 = vsel %vm939, %v1379, %v1381
        %1383 = vrot.lane.b32.xlu0 %v1310, 64
        %v1384 = vpop.permute.xlu0 %1383
        %1385 = vrot.lane.b32.xlu0 %v1312, 64
        %v1386 = vpop.permute.xlu0 %1385
        %1387 = vrot.lane.b32.xlu0 %v1314, 64
        %v1388 = vpop.permute.xlu0 %1387
        %1389 = vrot.lane.b32.xlu0 %v1316, 64
        %v1390 = vpop.permute.xlu0 %1389
        %1391 = vrot.lane.b32.xlu0 %v1318, 64
        %v1392 = vpop.permute.xlu0 %1391
        %1393 = vrot.lane.b32.xlu0 %v1320, 64
        %v1394 = vpop.permute.xlu0 %1393
        %1395 = vrot.lane.b32.xlu0 %v1322, 64
        %v1396 = vpop.permute.xlu0 %1395
        %1397 = vrot.lane.b32.xlu0 %v1324, 64
        %v1398 = vpop.permute.xlu0 %1397
        %1399 = vrot.lane.b32.xlu0 %v1326, 64
        %v1400 = vpop.permute.xlu0 %1399
        %1401 = vrot.lane.b32.xlu0 %v1328, 64
        %v1402 = vpop.permute.xlu0 %1401
        %1403 = vrot.lane.b32.xlu0 %v1330, 64
        %v1404 = vpop.permute.xlu0 %1403
        %1405 = vrot.lane.b32.xlu0 %v1332, 64
        %v1406 = vpop.permute.xlu0 %1405
        %1407 = vrot.lane.b32.xlu0 %v1334, 64
        %v1408 = vpop.permute.xlu0 %1407
        %1409 = vrot.lane.b32.xlu0 %v1336, 64
        %v1410 = vpop.permute.xlu0 %1409
        %1411 = vrot.lane.b32.xlu0 %v1338, 64
        %v1412 = vpop.permute.xlu0 %1411
        %1413 = vrot.lane.b32.xlu0 %v1340, 64
        %v1414 = vpop.permute.xlu0 %1413
        %1415 = vrot.lane.b32.xlu0 %v1342, 64
        %v1416 = vpop.permute.xlu0 %1415
        %1417 = vrot.lane.b32.xlu0 %v1344, 64
        %v1418 = vpop.permute.xlu0 %1417
        %1419 = vrot.lane.b32.xlu0 %v1346, 64
        %v1420 = vpop.permute.xlu0 %1419
        %1421 = vrot.lane.b32.xlu0 %v1348, 64
        %v1422 = vpop.permute.xlu0 %1421
        %1423 = vrot.lane.b32.xlu0 %v1350, 64
        %v1424 = vpop.permute.xlu0 %1423
        %1425 = vrot.lane.b32.xlu0 %v1352, 64
        %v1426 = vpop.permute.xlu0 %1425
        %1427 = vrot.lane.b32.xlu0 %v1354, 64
        %v1428 = vpop.permute.xlu0 %1427
        %1429 = vrot.lane.b32.xlu0 %v1356, 64
        %v1430 = vpop.permute.xlu0 %1429
        %1431 = vrot.lane.b32.xlu0 %v1358, 64
        %v1432 = vpop.permute.xlu0 %1431
        %1433 = vrot.lane.b32.xlu0 %v1360, 64
        %v1434 = vpop.permute.xlu0 %1433
        %1435 = vrot.lane.b32.xlu0 %v1362, 64
        %v1436 = vpop.permute.xlu0 %1435
        %1437 = vrot.lane.b32.xlu0 %v1364, 64
        %v1438 = vpop.permute.xlu0 %1437
        %1439 = vrot.lane.b32.xlu0 %v1366, 64
        %v1440 = vpop.permute.xlu0 %1439
        %1441 = vrot.lane.b32.xlu0 %v1368, 64
        %v1442 = vpop.permute.xlu0 %1441
        %1443 = vrot.lane.b32.xlu0 %v1370, 64
        %v1444 = vpop.permute.xlu0 %1443
        %1445 = vrot.lane.b32.xlu0 %v1372, 64
        %v1446 = vpop.permute.xlu0 %1445
        %1447 = vrot.lane.b32.xlu0 %v1374, 64
        %v1448 = vpop.permute.xlu0 %1447
        %1449 = vrot.lane.b32.xlu0 %v1376, 64
        %v1450 = vpop.permute.xlu0 %1449
        %1451 = vrot.lane.b32.xlu0 %v1378, 64
        %v1452 = vpop.permute.xlu0 %1451
        %1453 = vrot.lane.b32.xlu0 %v1380, 64
        %v1454 = vpop.permute.xlu0 %1453
        %1455 = vrot.lane.b32.xlu0 %v1382, 64
        %v1456 = vpop.permute.xlu0 %1455
        %vm1494 = vcmask 261120
        %v1495 = vsel %vm1494, %v1047, %v1197
        %v1496 = vsel %vm1494, %v1048, %v1199
        %v1497 = vsel %vm1494, %v1049, %v1201
        %v1498 = vsel %vm1494, %v1050, %v1203
        %v1499 = vsel %vm1494, %v1051, %v1205
        %v1500 = vsel %vm1494, %v1052, %v1207
        %v1501 = vsel %vm1494, %v1053, %v1209
        %v1502 = vsel %vm1494, %v1054, %v1211
        %v1503 = vsel %vm1494, %v1055, %v1213
        %v1504 = vsel %vm1494, %v1056, %v1215
        %v1505 = vsel %vm1494, %v1057, %v1217
        %v1506 = vsel %vm1494, %v1058, %v1219
        %v1507 = vsel %vm1494, %v1059, %v1221
        %v1508 = vsel %vm1494, %v1060, %v1223
        %v1509 = vsel %vm1494, %v1061, %v1225
        %v1510 = vsel %vm1494, %v1062, %v1227
        %v1511 = vsel %vm1494, %v1063, %v1229
        %v1512 = vsel %vm1494, %v1064, %v1231
        %v1513 = vsel %vm1494, %v1065, %v1233
        %v1514 = vsel %vm1494, %v1066, %v1235
        %v1515 = vsel %vm1494, %v1067, %v1237
        %v1516 = vsel %vm1494, %v1068, %v1239
        %v1517 = vsel %vm1494, %v1069, %v1241
        %v1518 = vsel %vm1494, %v1070, %v1243
        %v1519 = vsel %vm1494, %v1071, %v1245
        %v1520 = vsel %vm1494, %v1072, %v1247
        %v1521 = vsel %vm1494, %v1073, %v1249
        %v1522 = vsel %vm1494, %v1074, %v1251
        %v1523 = vsel %vm1494, %v1075, %v1253
        %v1524 = vsel %vm1494, %v1076, %v1255
        %v1525 = vsel %vm1494, %v1077, %v1257
        %v1526 = vsel %vm1494, %v1078, %v1259
        %v1527 = vsel %vm1494, %v1079, %v1261
        %v1528 = vsel %vm1494, %v1080, %v1263
        %v1529 = vsel %vm1494, %v1081, %v1265
        %v1530 = vsel %vm1494, %v1082, %v1267
        %v1531 = vsel %vm1494, %v1083, %v1269
        %vm1532 = vcmask 523264
        %v1533 = vsel %vm1532, %v1495, %v1384
        %v1534 = vsel %vm1532, %v1496, %v1386
        %v1535 = vsel %vm1532, %v1497, %v1388
        %v1536 = vsel %vm1532, %v1498, %v1390
        %v1537 = vsel %vm1532, %v1499, %v1392
        %v1538 = vsel %vm1532, %v1500, %v1394
        %v1539 = vsel %vm1532, %v1501, %v1396
        %v1540 = vsel %vm1532, %v1502, %v1398
        %v1541 = vsel %vm1532, %v1503, %v1400
        %v1542 = vsel %vm1532, %v1504, %v1402
        %v1543 = vsel %vm1532, %v1505, %v1404
        %v1544 = vsel %vm1532, %v1506, %v1406
        %v1545 = vsel %vm1532, %v1507, %v1408
        %v1546 = vsel %vm1532, %v1508, %v1410
        %v1547 = vsel %vm1532, %v1509, %v1412
        %v1548 = vsel %vm1532, %v1510, %v1414
        %v1549 = vsel %vm1532, %v1511, %v1416
        %v1550 = vsel %vm1532, %v1512, %v1418
        %v1551 = vsel %vm1532, %v1513, %v1420
        %v1552 = vsel %vm1532, %v1514, %v1422
        %v1553 = vsel %vm1532, %v1515, %v1424
        %v1554 = vsel %vm1532, %v1516, %v1426
        %v1555 = vsel %vm1532, %v1517, %v1428
        %v1556 = vsel %vm1532, %v1518, %v1430
        %v1557 = vsel %vm1532, %v1519, %v1432
        %v1558 = vsel %vm1532, %v1520, %v1434
        %v1559 = vsel %vm1532, %v1521, %v1436
        %v1560 = vsel %vm1532, %v1522, %v1438
        %v1561 = vsel %vm1532, %v1523, %v1440
        %v1562 = vsel %vm1532, %v1524, %v1442
        %v1563 = vsel %vm1532, %v1525, %v1444
        %v1564 = vsel %vm1532, %v1526, %v1446
        %v1565 = vsel %vm1532, %v1527, %v1448
        %v1566 = vsel %vm1532, %v1528, %v1450
        %v1567 = vsel %vm1532, %v1529, %v1452
        %v1568 = vsel %vm1532, %v1530, %v1454
        %v1569 = vsel %vm1532, %v1531, %v1456
        %v1570 = vpack.c.bf16 %v1534, %v1533
        %v1571 = vpack.c.bf16 %v1536, %v1535
        %v1572 = vpack.c.bf16 %v1538, %v1537
        %v1573 = vpack.c.bf16 %v1540, %v1539
        %v1574 = vpack.c.bf16 %v1542, %v1541
        %v1575 = vpack.c.bf16 %v1544, %v1543
        %v1576 = vpack.c.bf16 %v1546, %v1545
        %v1577 = vpack.c.bf16 %v1548, %v1547
        %v1578 = vpack.c.bf16 %v1550, %v1549
        %v1579 = vpack.c.bf16 %v1552, %v1551
        %v1580 = vpack.c.bf16 %v1554, %v1553
        %v1581 = vpack.c.bf16 %v1556, %v1555
        %v1582 = vpack.c.bf16 %v1558, %v1557
        %v1583 = vpack.c.bf16 %v1560, %v1559
        %v1584 = vpack.c.bf16 %v1562, %v1561
        %v1585 = vpack.c.bf16 %v1564, %v1563
        %v1586 = vpack.c.bf16 %v1566, %v1565
        %v1587 = vpack.c.bf16 %v1568, %v1567
        %v1588 = vpack.c.bf16 %v1569, %v1569
        %v1589 = vld [vmem:[%s3] sm:$0xf]
        %v1590 = vld [vmem:[%s3 + $0x4] sm:$0xf]
        %v1591 = vld [vmem:[%s3 + $0x8] sm:$0xf]
        %v1592 = vld [vmem:[%s3 + $0xc] sm:$0xf]
        %v1593 = vld [vmem:[%s3 + $0x10] sm:$0xf]
        %v1594 = vld [vmem:[%s3 + $0x14] sm:$0xf]
        %v1595 = vld [vmem:[%s3 + $0x18] sm:$0xf]
        %v1596 = vld [vmem:[%s3 + $0x1c] sm:$0xf]
        %v1597 = vld [vmem:[%s3 + $0x20] sm:$0xf]
        %v1598 = vld [vmem:[%s3 + $0x24] sm:$0xf]
        %v1599 = vld [vmem:[%s3 + $0x28] sm:$0xf]
        %v1600 = vld [vmem:[%s3 + $0x2c] sm:$0xf]
        %v1601 = vld [vmem:[%s5] sm:$0x1]
        %v1602 = vperm.slane %v1601, 0
        %v1615 = vunpack.c.l.b16 %v1589
        %v1616 = vunpack.c.l.b16 %v1590
        %v1617 = vunpack.c.l.b16 %v1591
        %v1618 = vunpack.c.l.b16 %v1592
        %v1619 = vunpack.c.l.b16 %v1593
        %v1620 = vunpack.c.l.b16 %v1594
        %v1621 = vunpack.c.l.b16 %v1595
        %v1622 = vunpack.c.l.b16 %v1596
        %v1623 = vunpack.c.l.b16 %v1597
        %v1624 = vunpack.c.l.b16 %v1598
        %v1625 = vunpack.c.l.b16 %v1599
        %v1626 = vunpack.c.l.b16 %v1600
        %v1627 = vpack.c.b16 %v1616, %v1615
        %v1628 = vpack.c.b16 %v1618, %v1617
        %v1629 = vpack.c.b16 %v1620, %v1619
        %v1630 = vpack.c.b16 %v1622, %v1621
        %v1631 = vpack.c.b16 %v1624, %v1623
        %v1632 = vpack.c.b16 %v1626, %v1625
        %vm1639 = vcmask 785408
        %v1641 = vsel %vm1639, %v1570, 0
        %v1644 = vsel %vm1639, %v1571, 0
        %v1647 = vsel %vm1639, %v1572, 0
        %v1650 = vsel %vm1639, %v1573, 0
        %v1653 = vsel %vm1639, %v1574, 0
        %v1656 = vsel %vm1639, %v1575, 0
        %v1659 = vsel %vm1639, %v1576, 0
        %v1662 = vsel %vm1639, %v1577, 0
        %v1665 = vsel %vm1639, %v1578, 0
        %v1668 = vsel %vm1639, %v1579, 0
        %v1671 = vsel %vm1639, %v1580, 0
        %v1674 = vsel %vm1639, %v1581, 0
        %v1677 = vsel %vm1639, %v1582, 0
        %v1680 = vsel %vm1639, %v1583, 0
        %v1683 = vsel %vm1639, %v1584, 0
        %v1686 = vsel %vm1639, %v1585, 0
        %v1689 = vsel %vm1639, %v1586, 0
        %v1692 = vsel %vm1639, %v1587, 0
        %v1695 = vsel %vm1639, %v1588, 0
        %1697 = vmatpush.bf16.msra.mxu0 0
        %1698 = vmatpush.bf16.msra.mxu0 0
        %1699 = vmatpush.bf16.msra.mxu0 %v1632
        %1700 = vmatpush.bf16.msra.mxu0 %v1631
        %1701 = vmatpush.bf16.msra.mxu0 %v1630
        %1702 = vmatpush.bf16.msra.mxu0 %v1629
        %1703 = vmatpush.bf16.msra.mxu0 %v1628
        %1704 = vmatpush.bf16.msra.mxu0 %v1627
        %1705 = vmatmul.bf16.gmra.mxu0 %v1641
        %v1706 = vpop.f32.mrf.mxu0
        %v1707 = vadd.f32 %v1602, %v1706
        %v1708 = vpop.f32.mrf.mxu0
        %v1709 = vadd.f32 %v1602, %v1708
        %1710 = vmatmul.bf16.gmra.mxu0 %v1644
        %v1711 = vpop.f32.mrf.mxu0
        %v1712 = vadd.f32 %v1602, %v1711
        %v1713 = vpop.f32.mrf.mxu0
        %v1714 = vadd.f32 %v1602, %v1713
        %1715 = vmatmul.bf16.gmra.mxu0 %v1647
        %v1716 = vpop.f32.mrf.mxu0
        %v1717 = vadd.f32 %v1602, %v1716
        %v1718 = vpop.f32.mrf.mxu0
        %v1719 = vadd.f32 %v1602, %v1718
        %1720 = vmatmul.bf16.gmra.mxu0 %v1650
        %v1721 = vpop.f32.mrf.mxu0
        %v1722 = vadd.f32 %v1602, %v1721
        %v1723 = vpop.f32.mrf.mxu0
        %v1724 = vadd.f32 %v1602, %v1723
        %1725 = vmatmul.bf16.gmra.mxu0 %v1653
        %v1726 = vpop.f32.mrf.mxu0
        %v1727 = vadd.f32 %v1602, %v1726
        %v1728 = vpop.f32.mrf.mxu0
        %v1729 = vadd.f32 %v1602, %v1728
        %1730 = vmatmul.bf16.gmra.mxu0 %v1656
        %v1731 = vpop.f32.mrf.mxu0
        %v1732 = vadd.f32 %v1602, %v1731
        %v1733 = vpop.f32.mrf.mxu0
        %v1734 = vadd.f32 %v1602, %v1733
        %1735 = vmatmul.bf16.gmra.mxu0 %v1659
        %v1736 = vpop.f32.mrf.mxu0
        %v1737 = vadd.f32 %v1602, %v1736
        %v1738 = vpop.f32.mrf.mxu0
        %v1739 = vadd.f32 %v1602, %v1738
        %1740 = vmatmul.bf16.gmra.mxu0 %v1662
        %v1741 = vpop.f32.mrf.mxu0
        %v1742 = vadd.f32 %v1602, %v1741
        %v1743 = vpop.f32.mrf.mxu0
        %v1744 = vadd.f32 %v1602, %v1743
        %1745 = vmatmul.bf16.gmra.mxu0 %v1665
        %v1746 = vpop.f32.mrf.mxu0
        %v1747 = vadd.f32 %v1602, %v1746
        %v1748 = vpop.f32.mrf.mxu0
        %v1749 = vadd.f32 %v1602, %v1748
        %1750 = vmatmul.bf16.gmra.mxu0 %v1668
        %v1751 = vpop.f32.mrf.mxu0
        %v1752 = vadd.f32 %v1602, %v1751
        %v1753 = vpop.f32.mrf.mxu0
        %v1754 = vadd.f32 %v1602, %v1753
        %1755 = vmatmul.bf16.gmra.mxu0 %v1671
        %v1756 = vpop.f32.mrf.mxu0
        %v1757 = vadd.f32 %v1602, %v1756
        %v1758 = vpop.f32.mrf.mxu0
        %v1759 = vadd.f32 %v1602, %v1758
        %1760 = vmatmul.bf16.gmra.mxu0 %v1674
        %v1761 = vpop.f32.mrf.mxu0
        %v1762 = vadd.f32 %v1602, %v1761
        %v1763 = vpop.f32.mrf.mxu0
        %v1764 = vadd.f32 %v1602, %v1763
        %1765 = vmatmul.bf16.gmra.mxu0 %v1677
        %v1766 = vpop.f32.mrf.mxu0
        %v1767 = vadd.f32 %v1602, %v1766
        %v1768 = vpop.f32.mrf.mxu0
        %v1769 = vadd.f32 %v1602, %v1768
        %1770 = vmatmul.bf16.gmra.mxu0 %v1680
        %v1771 = vpop.f32.mrf.mxu0
        %v1772 = vadd.f32 %v1602, %v1771
        %v1773 = vpop.f32.mrf.mxu0
        %v1774 = vadd.f32 %v1602, %v1773
        %1775 = vmatmul.bf16.gmra.mxu0 %v1683
        %v1776 = vpop.f32.mrf.mxu0
        %v1777 = vadd.f32 %v1602, %v1776
        %v1778 = vpop.f32.mrf.mxu0
        %v1779 = vadd.f32 %v1602, %v1778
        %1780 = vmatmul.bf16.gmra.mxu0 %v1686
        %v1781 = vpop.f32.mrf.mxu0
        %v1782 = vadd.f32 %v1602, %v1781
        %v1783 = vpop.f32.mrf.mxu0
        %v1784 = vadd.f32 %v1602, %v1783
        %1785 = vmatmul.bf16.gmra.mxu0 %v1689
        %v1786 = vpop.f32.mrf.mxu0
        %v1787 = vadd.f32 %v1602, %v1786
        %v1788 = vpop.f32.mrf.mxu0
        %v1789 = vadd.f32 %v1602, %v1788
        %1790 = vmatmul.bf16.gmra.mxu0 %v1692
        %v1791 = vpop.f32.mrf.mxu0
        %v1792 = vadd.f32 %v1602, %v1791
        %v1793 = vpop.f32.mrf.mxu0
        %v1794 = vadd.f32 %v1602, %v1793
        %1795 = vmatmul.bf16.gmra.mxu0 %v1695
        %v1796 = vpop.f32.mrf.mxu0
        %v1797 = vadd.f32 %v1602, %v1796
        %v1798 = vpop.f32.mrf.mxu0
        %1799 = vdwg.mxu0
        %v1800 = vmax.f32 %v1707, 0.0
        %v1801 = vmax.f32 %v1709, 0.0
        %v1802 = vmax.f32 %v1712, 0.0
        %v1803 = vmax.f32 %v1714, 0.0
        %v1804 = vmax.f32 %v1717, 0.0
        %v1805 = vmax.f32 %v1719, 0.0
        %v1806 = vmax.f32 %v1722, 0.0
        %v1807 = vmax.f32 %v1724, 0.0
        %v1808 = vmax.f32 %v1727, 0.0
        %v1809 = vmax.f32 %v1729, 0.0
        %v1810 = vmax.f32 %v1732, 0.0
        %v1811 = vmax.f32 %v1734, 0.0
        %v1812 = vmax.f32 %v1737, 0.0
        %v1813 = vmax.f32 %v1739, 0.0
        %v1814 = vmax.f32 %v1742, 0.0
        %v1815 = vmax.f32 %v1744, 0.0
        %v1816 = vmax.f32 %v1747, 0.0
        %v1817 = vmax.f32 %v1749, 0.0
        %v1818 = vmax.f32 %v1752, 0.0
        %v1819 = vmax.f32 %v1754, 0.0
        %v1820 = vmax.f32 %v1757, 0.0
        %v1821 = vmax.f32 %v1759, 0.0
        %v1822 = vmax.f32 %v1762, 0.0
        %v1823 = vmax.f32 %v1764, 0.0
        %v1824 = vmax.f32 %v1767, 0.0
        %v1825 = vmax.f32 %v1769, 0.0
        %v1826 = vmax.f32 %v1772, 0.0
        %v1827 = vmax.f32 %v1774, 0.0
        %v1828 = vmax.f32 %v1777, 0.0
        %v1829 = vmax.f32 %v1779, 0.0
        %v1830 = vmax.f32 %v1782, 0.0
        %v1831 = vmax.f32 %v1784, 0.0
        %v1832 = vmax.f32 %v1787, 0.0
        %v1833 = vmax.f32 %v1789, 0.0
        %v1834 = vmax.f32 %v1792, 0.0
        %v1835 = vmax.f32 %v1794, 0.0
        %v1836 = vmax.f32 %v1797, 0.0
        %v1837 = vpack.c.bf16 %v1801, %v1800
        %v1838 = vpack.c.bf16 %v1803, %v1802
        %v1839 = vpack.c.bf16 %v1805, %v1804
        %v1840 = vpack.c.bf16 %v1807, %v1806
        %v1841 = vpack.c.bf16 %v1809, %v1808
        %v1842 = vpack.c.bf16 %v1811, %v1810
        %v1843 = vpack.c.bf16 %v1813, %v1812
        %v1844 = vpack.c.bf16 %v1815, %v1814
        %v1845 = vpack.c.bf16 %v1817, %v1816
        %v1846 = vpack.c.bf16 %v1819, %v1818
        %v1847 = vpack.c.bf16 %v1821, %v1820
        %v1848 = vpack.c.bf16 %v1823, %v1822
        %v1849 = vpack.c.bf16 %v1825, %v1824
        %v1850 = vpack.c.bf16 %v1827, %v1826
        %v1851 = vpack.c.bf16 %v1829, %v1828
        %v1852 = vpack.c.bf16 %v1831, %v1830
        %v1853 = vpack.c.bf16 %v1833, %v1832
        %v1854 = vpack.c.bf16 %v1835, %v1834
        %v1855 = vpack.c.bf16 %v1836, %v1836
        %v1856 = vld [vmem:[%s4] sm:$0xf]
        %v1857 = vld [vmem:[%s4 + $0x4] sm:$0xf]
        %v1858 = vld [vmem:[%s4 + $0x8] sm:$0xf]
        %v1859 = vld [vmem:[%s4 + $0xc] sm:$0xf]
        %v1860 = vld [vmem:[%s5 + $0x1] sm:$0x1]
        %v1861 = vperm.slane %v1860, 0
        %v1866 = vunpack.c.l.b16 %v1856
        %v1867 = vunpack.c.l.b16 %v1857
        %v1868 = vunpack.c.l.b16 %v1858
        %v1869 = vunpack.c.l.b16 %v1859
        %v1870 = vpack.c.b16 %v1867, %v1866
        %v1871 = vpack.c.b16 %v1869, %v1868
        %v1875 = vsel %vm1494, %v1837, 0
        %v1878 = vsel %vm1494, %v1838, 0
        %v1881 = vsel %vm1494, %v1839, 0
        %v1884 = vsel %vm1494, %v1840, 0
        %v1887 = vsel %vm1494, %v1841, 0
        %v1890 = vsel %vm1494, %v1842, 0
        %v1893 = vsel %vm1494, %v1843, 0
        %v1896 = vsel %vm1494, %v1844, 0
        %v1899 = vsel %vm1494, %v1845, 0
        %v1902 = vsel %vm1494, %v1846, 0
        %v1905 = vsel %vm1494, %v1847, 0
        %v1908 = vsel %vm1494, %v1848, 0
        %v1911 = vsel %vm1494, %v1849, 0
        %v1914 = vsel %vm1494, %v1850, 0
        %v1917 = vsel %vm1494, %v1851, 0
        %v1920 = vsel %vm1494, %v1852, 0
        %v1923 = vsel %vm1494, %v1853, 0
        %v1926 = vsel %vm1494, %v1854, 0
        %v1929 = vsel %vm1494, %v1855, 0
        %1931 = vmatpush.bf16.msra.mxu0 0
        %1932 = vmatpush.bf16.msra.mxu0 0
        %1933 = vmatpush.bf16.msra.mxu0 0
        %1934 = vmatpush.bf16.msra.mxu0 0
        %1935 = vmatpush.bf16.msra.mxu0 0
        %1936 = vmatpush.bf16.msra.mxu0 0
        %1937 = vmatpush.bf16.msra.mxu0 %v1871
        %1938 = vmatpush.bf16.msra.mxu0 %v1870
        %1939 = vmatmul.bf16.gmra.mxu0 %v1875
        %v1940 = vpop.f32.mrf.mxu0
        %v1941 = vadd.f32 %v1861, %v1940
        %v1942 = vpop.f32.mrf.mxu0
        %v1943 = vadd.f32 %v1861, %v1942
        %1944 = vmatmul.bf16.gmra.mxu0 %v1878
        %v1945 = vpop.f32.mrf.mxu0
        %v1946 = vadd.f32 %v1861, %v1945
        %v1947 = vpop.f32.mrf.mxu0
        %v1948 = vadd.f32 %v1861, %v1947
        %1949 = vmatmul.bf16.gmra.mxu0 %v1881
        %v1950 = vpop.f32.mrf.mxu0
        %v1951 = vadd.f32 %v1861, %v1950
        %v1952 = vpop.f32.mrf.mxu0
        %v1953 = vadd.f32 %v1861, %v1952
        %1954 = vmatmul.bf16.gmra.mxu0 %v1884
        %v1955 = vpop.f32.mrf.mxu0
        %v1956 = vadd.f32 %v1861, %v1955
        %v1957 = vpop.f32.mrf.mxu0
        %v1958 = vadd.f32 %v1861, %v1957
        %1959 = vmatmul.bf16.gmra.mxu0 %v1887
        %v1960 = vpop.f32.mrf.mxu0
        %v1961 = vadd.f32 %v1861, %v1960
        %v1962 = vpop.f32.mrf.mxu0
        %v1963 = vadd.f32 %v1861, %v1962
        %1964 = vmatmul.bf16.gmra.mxu0 %v1890
        %v1965 = vpop.f32.mrf.mxu0
        %v1966 = vadd.f32 %v1861, %v1965
        %v1967 = vpop.f32.mrf.mxu0
        %v1968 = vadd.f32 %v1861, %v1967
        %1969 = vmatmul.bf16.gmra.mxu0 %v1893
        %v1970 = vpop.f32.mrf.mxu0
        %v1971 = vadd.f32 %v1861, %v1970
        %v1972 = vpop.f32.mrf.mxu0
        %v1973 = vadd.f32 %v1861, %v1972
        %1974 = vmatmul.bf16.gmra.mxu0 %v1896
        %v1975 = vpop.f32.mrf.mxu0
        %v1976 = vadd.f32 %v1861, %v1975
        %v1977 = vpop.f32.mrf.mxu0
        %v1978 = vadd.f32 %v1861, %v1977
        %1979 = vmatmul.bf16.gmra.mxu0 %v1899
        %v1980 = vpop.f32.mrf.mxu0
        %v1981 = vadd.f32 %v1861, %v1980
        %v1982 = vpop.f32.mrf.mxu0
        %v1983 = vadd.f32 %v1861, %v1982
        %1984 = vmatmul.bf16.gmra.mxu0 %v1902
        %v1985 = vpop.f32.mrf.mxu0
        %v1986 = vadd.f32 %v1861, %v1985
        %v1987 = vpop.f32.mrf.mxu0
        %v1988 = vadd.f32 %v1861, %v1987
        %1989 = vmatmul.bf16.gmra.mxu0 %v1905
        %v1990 = vpop.f32.mrf.mxu0
        %v1991 = vadd.f32 %v1861, %v1990
        %v1992 = vpop.f32.mrf.mxu0
        %v1993 = vadd.f32 %v1861, %v1992
        %1994 = vmatmul.bf16.gmra.mxu0 %v1908
        %v1995 = vpop.f32.mrf.mxu0
        %v1996 = vadd.f32 %v1861, %v1995
        %v1997 = vpop.f32.mrf.mxu0
        %v1998 = vadd.f32 %v1861, %v1997
        %1999 = vmatmul.bf16.gmra.mxu0 %v1911
        %v2000 = vpop.f32.mrf.mxu0
        %v2001 = vadd.f32 %v1861, %v2000
        %v2002 = vpop.f32.mrf.mxu0
        %v2003 = vadd.f32 %v1861, %v2002
        %2004 = vmatmul.bf16.gmra.mxu0 %v1914
        %v2005 = vpop.f32.mrf.mxu0
        %v2006 = vadd.f32 %v1861, %v2005
        %v2007 = vpop.f32.mrf.mxu0
        %v2008 = vadd.f32 %v1861, %v2007
        %2009 = vmatmul.bf16.gmra.mxu0 %v1917
        %v2010 = vpop.f32.mrf.mxu0
        %v2011 = vadd.f32 %v1861, %v2010
        %v2012 = vpop.f32.mrf.mxu0
        %v2013 = vadd.f32 %v1861, %v2012
        %2014 = vmatmul.bf16.gmra.mxu0 %v1920
        %v2015 = vpop.f32.mrf.mxu0
        %v2016 = vadd.f32 %v1861, %v2015
        %v2017 = vpop.f32.mrf.mxu0
        %v2018 = vadd.f32 %v1861, %v2017
        %2019 = vmatmul.bf16.gmra.mxu0 %v1923
        %v2020 = vpop.f32.mrf.mxu0
        %v2021 = vadd.f32 %v1861, %v2020
        %v2022 = vpop.f32.mrf.mxu0
        %v2023 = vadd.f32 %v1861, %v2022
        %2024 = vmatmul.bf16.gmra.mxu0 %v1926
        %v2025 = vpop.f32.mrf.mxu0
        %v2026 = vadd.f32 %v1861, %v2025
        %v2027 = vpop.f32.mrf.mxu0
        %v2028 = vadd.f32 %v1861, %v2027
        %2029 = vmatmul.bf16.gmra.mxu0 %v1929
        %v2030 = vpop.f32.mrf.mxu0
        %v2031 = vadd.f32 %v1861, %v2030
        %v2032 = vpop.f32.mrf.mxu0
        %2033 = vdwg.mxu0
        %v2034 = vmax.f32 %v1941, 0.0
        %v2035 = vmax.f32 %v1943, 0.0
        %v2036 = vmax.f32 %v1946, 0.0
        %v2037 = vmax.f32 %v1948, 0.0
        %v2038 = vmax.f32 %v1951, 0.0
        %v2039 = vmax.f32 %v1953, 0.0
        %v2040 = vmax.f32 %v1956, 0.0
        %v2041 = vmax.f32 %v1958, 0.0
        %v2042 = vmax.f32 %v1961, 0.0
        %v2043 = vmax.f32 %v1963, 0.0
        %v2044 = vmax.f32 %v1966, 0.0
        %v2045 = vmax.f32 %v1968, 0.0
        %v2046 = vmax.f32 %v1971, 0.0
        %v2047 = vmax.f32 %v1973, 0.0
        %v2048 = vmax.f32 %v1976, 0.0
        %v2049 = vmax.f32 %v1978, 0.0
        %v2050 = vmax.f32 %v1981, 0.0
        %v2051 = vmax.f32 %v1983, 0.0
        %v2052 = vmax.f32 %v1986, 0.0
        %v2053 = vmax.f32 %v1988, 0.0
        %v2054 = vmax.f32 %v1991, 0.0
        %v2055 = vmax.f32 %v1993, 0.0
        %v2056 = vmax.f32 %v1996, 0.0
        %v2057 = vmax.f32 %v1998, 0.0
        %v2058 = vmax.f32 %v2001, 0.0
        %v2059 = vmax.f32 %v2003, 0.0
        %v2060 = vmax.f32 %v2006, 0.0
        %v2061 = vmax.f32 %v2008, 0.0
        %v2062 = vmax.f32 %v2011, 0.0
        %v2063 = vmax.f32 %v2013, 0.0
        %v2064 = vmax.f32 %v2016, 0.0
        %v2065 = vmax.f32 %v2018, 0.0
        %v2066 = vmax.f32 %v2021, 0.0
        %v2067 = vmax.f32 %v2023, 0.0
        %v2068 = vmax.f32 %v2026, 0.0
        %v2069 = vmax.f32 %v2028, 0.0
        %v2070 = vmax.f32 %v2031, 0.0
        %v2108 = vadd.f32 %v2034, %v1125
        %v2109 = vadd.f32 %v2035, %v1127
        %v2110 = vadd.f32 %v2036, %v1129
        %v2111 = vadd.f32 %v2037, %v1131
        %v2112 = vadd.f32 %v2038, %v1133
        %v2113 = vadd.f32 %v2039, %v1135
        %v2114 = vadd.f32 %v2040, %v1137
        %v2115 = vadd.f32 %v2041, %v1139
        %v2116 = vadd.f32 %v2042, %v1141
        %v2117 = vadd.f32 %v2043, %v1143
        %v2118 = vadd.f32 %v2044, %v1145
        %v2119 = vadd.f32 %v2045, %v1147
        %v2120 = vadd.f32 %v2046, %v1149
        %v2121 = vadd.f32 %v2047, %v1151
        %v2122 = vadd.f32 %v2048, %v1153
        %v2123 = vadd.f32 %v2049, %v1155
        %v2124 = vadd.f32 %v2050, %v1157
        %v2125 = vadd.f32 %v2051, %v1159
        %v2126 = vadd.f32 %v2052, %v1161
        %v2127 = vadd.f32 %v2053, %v1163
        %v2128 = vadd.f32 %v2054, %v1165
        %v2129 = vadd.f32 %v2055, %v1167
        %v2130 = vadd.f32 %v2056, %v1169
        %v2131 = vadd.f32 %v2057, %v1171
        %v2132 = vadd.f32 %v2058, %v1173
        %v2133 = vadd.f32 %v2059, %v1175
        %v2134 = vadd.f32 %v2060, %v1177
        %v2135 = vadd.f32 %v2061, %v1179
        %v2136 = vadd.f32 %v2062, %v1181
        %v2137 = vadd.f32 %v2063, %v1183
        %v2138 = vadd.f32 %v2064, %v1185
        %v2139 = vadd.f32 %v2065, %v1187
        %v2140 = vadd.f32 %v2066, %v1189
        %v2141 = vadd.f32 %v2067, %v1191
        %v2142 = vadd.f32 %v2068, %v1193
        %v2143 = vadd.f32 %v2069, %v1195
        %v2144 = vadd.f32 %v2070, %v1194
        %v2180 = vrot.slane %v2109, 1
        %v2181 = vrot.slane %v2110, 1
        %v2182 = vsel %vm380, %v2180, %v2181
        %v2183 = vrot.slane %v2111, 1
        %v2184 = vsel %vm380, %v2181, %v2183
        %v2185 = vrot.slane %v2112, 1
        %v2186 = vsel %vm380, %v2183, %v2185
        %v2187 = vrot.slane %v2113, 1
        %v2188 = vsel %vm380, %v2185, %v2187
        %v2189 = vrot.slane %v2114, 1
        %v2190 = vsel %vm380, %v2187, %v2189
        %v2191 = vrot.slane %v2115, 1
        %v2192 = vsel %vm380, %v2189, %v2191
        %v2193 = vrot.slane %v2116, 1
        %v2194 = vsel %vm380, %v2191, %v2193
        %v2195 = vrot.slane %v2117, 1
        %v2196 = vsel %vm380, %v2193, %v2195
        %v2197 = vrot.slane %v2118, 1
        %v2198 = vsel %vm380, %v2195, %v2197
        %v2199 = vrot.slane %v2119, 1
        %v2200 = vsel %vm380, %v2197, %v2199
        %v2201 = vrot.slane %v2120, 1
        %v2202 = vsel %vm380, %v2199, %v2201
        %v2203 = vrot.slane %v2121, 1
        %v2204 = vsel %vm380, %v2201, %v2203
        %v2205 = vrot.slane %v2122, 1
        %v2206 = vsel %vm380, %v2203, %v2205
        %v2207 = vrot.slane %v2123, 1
        %v2208 = vsel %vm380, %v2205, %v2207
        %v2209 = vrot.slane %v2124, 1
        %v2210 = vsel %vm380, %v2207, %v2209
        %v2211 = vrot.slane %v2125, 1
        %v2212 = vsel %vm380, %v2209, %v2211
        %v2213 = vrot.slane %v2126, 1
        %v2214 = vsel %vm380, %v2211, %v2213
        %v2215 = vrot.slane %v2127, 1
        %v2216 = vsel %vm380, %v2213, %v2215
        %v2217 = vrot.slane %v2128, 1
        %v2218 = vsel %vm380, %v2215, %v2217
        %v2219 = vrot.slane %v2129, 1
        %v2220 = vsel %vm380, %v2217, %v2219
        %v2221 = vrot.slane %v2130, 1
        %v2222 = vsel %vm380, %v2219, %v2221
        %v2223 = vrot.slane %v2131, 1
        %v2224 = vsel %vm380, %v2221, %v2223
        %v2225 = vrot.slane %v2132, 1
        %v2226 = vsel %vm380, %v2223, %v2225
        %v2227 = vrot.slane %v2133, 1
        %v2228 = vsel %vm380, %v2225, %v2227
        %v2229 = vrot.slane %v2134, 1
        %v2230 = vsel %vm380, %v2227, %v2229
        %v2231 = vrot.slane %v2135, 1
        %v2232 = vsel %vm380, %v2229, %v2231
        %v2233 = vrot.slane %v2136, 1
        %v2234 = vsel %vm380, %v2231, %v2233
        %v2235 = vrot.slane %v2137, 1
        %v2236 = vsel %vm380, %v2233, %v2235
        %v2237 = vrot.slane %v2138, 1
        %v2238 = vsel %vm380, %v2235, %v2237
        %v2239 = vrot.slane %v2139, 1
        %v2240 = vsel %vm380, %v2237, %v2239
        %v2241 = vrot.slane %v2140, 1
        %v2242 = vsel %vm380, %v2239, %v2241
        %v2243 = vrot.slane %v2141, 1
        %v2244 = vsel %vm380, %v2241, %v2243
        %v2245 = vrot.slane %v2142, 1
        %v2246 = vsel %vm380, %v2243, %v2245
        %v2247 = vrot.slane %v2143, 1
        %v2248 = vsel %vm380, %v2245, %v2247
        %2249 = vrot.lane.b32.xlu0 %v2182, 32
        %v2250 = vpop.permute.xlu0 %2249
        %2251 = vrot.lane.b32.xlu0 %v2184, 32
        %v2252 = vpop.permute.xlu0 %2251
        %2253 = vrot.lane.b32.xlu0 %v2186, 32
        %v2254 = vpop.permute.xlu0 %2253
        %2255 = vrot.lane.b32.xlu0 %v2188, 32
        %v2256 = vpop.permute.xlu0 %2255
        %2257 = vrot.lane.b32.xlu0 %v2190, 32
        %v2258 = vpop.permute.xlu0 %2257
        %2259 = vrot.lane.b32.xlu0 %v2192, 32
        %v2260 = vpop.permute.xlu0 %2259
        %2261 = vrot.lane.b32.xlu0 %v2194, 32
        %v2262 = vpop.permute.xlu0 %2261
        %2263 = vrot.lane.b32.xlu0 %v2196, 32
        %v2264 = vpop.permute.xlu0 %2263
        %2265 = vrot.lane.b32.xlu0 %v2198, 32
        %v2266 = vpop.permute.xlu0 %2265
        %2267 = vrot.lane.b32.xlu0 %v2200, 32
        %v2268 = vpop.permute.xlu0 %2267
        %2269 = vrot.lane.b32.xlu0 %v2202, 32
        %v2270 = vpop.permute.xlu0 %2269
        %2271 = vrot.lane.b32.xlu0 %v2204, 32
        %v2272 = vpop.permute.xlu0 %2271
        %2273 = vrot.lane.b32.xlu0 %v2206, 32
        %v2274 = vpop.permute.xlu0 %2273
        %2275 = vrot.lane.b32.xlu0 %v2208, 32
        %v2276 = vpop.permute.xlu0 %2275
        %2277 = vrot.lane.b32.xlu0 %v2210, 32
        %v2278 = vpop.permute.xlu0 %2277
        %2279 = vrot.lane.b32.xlu0 %v2212, 32
        %v2280 = vpop.permute.xlu0 %2279
        %2281 = vrot.lane.b32.xlu0 %v2214, 32
        %v2282 = vpop.permute.xlu0 %2281
        %2283 = vrot.lane.b32.xlu0 %v2216, 32
        %v2284 = vpop.permute.xlu0 %2283
        %2285 = vrot.lane.b32.xlu0 %v2218, 32
        %v2286 = vpop.permute.xlu0 %2285
        %2287 = vrot.lane.b32.xlu0 %v2220, 32
        %v2288 = vpop.permute.xlu0 %2287
        %2289 = vrot.lane.b32.xlu0 %v2222, 32
        %v2290 = vpop.permute.xlu0 %2289
        %2291 = vrot.lane.b32.xlu0 %v2224, 32
        %v2292 = vpop.permute.xlu0 %2291
        %2293 = vrot.lane.b32.xlu0 %v2226, 32
        %v2294 = vpop.permute.xlu0 %2293
        %2295 = vrot.lane.b32.xlu0 %v2228, 32
        %v2296 = vpop.permute.xlu0 %2295
        %2297 = vrot.lane.b32.xlu0 %v2230, 32
        %v2298 = vpop.permute.xlu0 %2297
        %2299 = vrot.lane.b32.xlu0 %v2232, 32
        %v2300 = vpop.permute.xlu0 %2299
        %2301 = vrot.lane.b32.xlu0 %v2234, 32
        %v2302 = vpop.permute.xlu0 %2301
        %2303 = vrot.lane.b32.xlu0 %v2236, 32
        %v2304 = vpop.permute.xlu0 %2303
        %2305 = vrot.lane.b32.xlu0 %v2238, 32
        %v2306 = vpop.permute.xlu0 %2305
        %2307 = vrot.lane.b32.xlu0 %v2240, 32
        %v2308 = vpop.permute.xlu0 %2307
        %2309 = vrot.lane.b32.xlu0 %v2242, 32
        %v2310 = vpop.permute.xlu0 %2309
        %2311 = vrot.lane.b32.xlu0 %v2244, 32
        %v2312 = vpop.permute.xlu0 %2311
        %2313 = vrot.lane.b32.xlu0 %v2246, 32
        %v2314 = vpop.permute.xlu0 %2313
        %2315 = vrot.lane.b32.xlu0 %v2248, 32
        %v2316 = vpop.permute.xlu0 %2315
        %2317 = vrot.lane.b32.xlu0 %v2247, 32
        %v2318 = vpop.permute.xlu0 %2317
        %v2355 = vrot.slane %v2110, 2
        %v2356 = vrot.slane %v2111, 2
        %v2357 = vsel %vm570, %v2355, %v2356
        %v2358 = vrot.slane %v2112, 2
        %v2359 = vsel %vm570, %v2356, %v2358
        %v2360 = vrot.slane %v2113, 2
        %v2361 = vsel %vm570, %v2358, %v2360
        %v2362 = vrot.slane %v2114, 2
        %v2363 = vsel %vm570, %v2360, %v2362
        %v2364 = vrot.slane %v2115, 2
        %v2365 = vsel %vm570, %v2362, %v2364
        %v2366 = vrot.slane %v2116, 2
        %v2367 = vsel %vm570, %v2364, %v2366
        %v2368 = vrot.slane %v2117, 2
        %v2369 = vsel %vm570, %v2366, %v2368
        %v2370 = vrot.slane %v2118, 2
        %v2371 = vsel %vm570, %v2368, %v2370
        %v2372 = vrot.slane %v2119, 2
        %v2373 = vsel %vm570, %v2370, %v2372
        %v2374 = vrot.slane %v2120, 2
        %v2375 = vsel %vm570, %v2372, %v2374
        %v2376 = vrot.slane %v2121, 2
        %v2377 = vsel %vm570, %v2374, %v2376
        %v2378 = vrot.slane %v2122, 2
        %v2379 = vsel %vm570, %v2376, %v2378
        %v2380 = vrot.slane %v2123, 2
        %v2381 = vsel %vm570, %v2378, %v2380
        %v2382 = vrot.slane %v2124, 2
        %v2383 = vsel %vm570, %v2380, %v2382
        %v2384 = vrot.slane %v2125, 2
        %v2385 = vsel %vm570, %v2382, %v2384
        %v2386 = vrot.slane %v2126, 2
        %v2387 = vsel %vm570, %v2384, %v2386
        %v2388 = vrot.slane %v2127, 2
        %v2389 = vsel %vm570, %v2386, %v2388
        %v2390 = vrot.slane %v2128, 2
        %v2391 = vsel %vm570, %v2388, %v2390
        %v2392 = vrot.slane %v2129, 2
        %v2393 = vsel %vm570, %v2390, %v2392
        %v2394 = vrot.slane %v2130, 2
        %v2395 = vsel %vm570, %v2392, %v2394
        %v2396 = vrot.slane %v2131, 2
        %v2397 = vsel %vm570, %v2394, %v2396
        %v2398 = vrot.slane %v2132, 2
        %v2399 = vsel %vm570, %v2396, %v2398
        %v2400 = vrot.slane %v2133, 2
        %v2401 = vsel %vm570, %v2398, %v2400
        %v2402 = vrot.slane %v2134, 2
        %v2403 = vsel %vm570, %v2400, %v2402
        %v2404 = vrot.slane %v2135, 2
        %v2405 = vsel %vm570, %v2402, %v2404
        %v2406 = vrot.slane %v2136, 2
        %v2407 = vsel %vm570, %v2404, %v2406
        %v2408 = vrot.slane %v2137, 2
        %v2409 = vsel %vm570, %v2406, %v2408
        %v2410 = vrot.slane %v2138, 2
        %v2411 = vsel %vm570, %v2408, %v2410
        %v2412 = vrot.slane %v2139, 2
        %v2413 = vsel %vm570, %v2410, %v2412
        %v2414 = vrot.slane %v2140, 2
        %v2415 = vsel %vm570, %v2412, %v2414
        %v2416 = vrot.slane %v2141, 2
        %v2417 = vsel %vm570, %v2414, %v2416
        %v2418 = vrot.slane %v2142, 2
        %v2419 = vsel %vm570, %v2416, %v2418
        %v2420 = vrot.slane %v2143, 2
        %v2421 = vsel %vm570, %v2418, %v2420
        %v2422 = vrot.slane %v2144, 2
        %v2423 = vsel %vm570, %v2420, %v2422
        %2424 = vrot.lane.b32.xlu0 %v2357, 64
        %v2425 = vpop.permute.xlu0 %2424
        %2426 = vrot.lane.b32.xlu0 %v2359, 64
        %v2427 = vpop.permute.xlu0 %2426
        %2428 = vrot.lane.b32.xlu0 %v2361, 64
        %v2429 = vpop.permute.xlu0 %2428
        %2430 = vrot.lane.b32.xlu0 %v2363, 64
        %v2431 = vpop.permute.xlu0 %2430
        %2432 = vrot.lane.b32.xlu0 %v2365, 64
        %v2433 = vpop.permute.xlu0 %2432
        %2434 = vrot.lane.b32.xlu0 %v2367, 64
        %v2435 = vpop.permute.xlu0 %2434
        %2436 = vrot.lane.b32.xlu0 %v2369, 64
        %v2437 = vpop.permute.xlu0 %2436
        %2438 = vrot.lane.b32.xlu0 %v2371, 64
        %v2439 = vpop.permute.xlu0 %2438
        %2440 = vrot.lane.b32.xlu0 %v2373, 64
        %v2441 = vpop.permute.xlu0 %2440
        %2442 = vrot.lane.b32.xlu0 %v2375, 64
        %v2443 = vpop.permute.xlu0 %2442
        %2444 = vrot.lane.b32.xlu0 %v2377, 64
        %v2445 = vpop.permute.xlu0 %2444
        %2446 = vrot.lane.b32.xlu0 %v2379, 64
        %v2447 = vpop.permute.xlu0 %2446
        %2448 = vrot.lane.b32.xlu0 %v2381, 64
        %v2449 = vpop.permute.xlu0 %2448
        %2450 = vrot.lane.b32.xlu0 %v2383, 64
        %v2451 = vpop.permute.xlu0 %2450
        %2452 = vrot.lane.b32.xlu0 %v2385, 64
        %v2453 = vpop.permute.xlu0 %2452
        %2454 = vrot.lane.b32.xlu0 %v2387, 64
        %v2455 = vpop.permute.xlu0 %2454
        %2456 = vrot.lane.b32.xlu0 %v2389, 64
        %v2457 = vpop.permute.xlu0 %2456
        %2458 = vrot.lane.b32.xlu0 %v2391, 64
        %v2459 = vpop.permute.xlu0 %2458
        %2460 = vrot.lane.b32.xlu0 %v2393, 64
        %v2461 = vpop.permute.xlu0 %2460
        %2462 = vrot.lane.b32.xlu0 %v2395, 64
        %v2463 = vpop.permute.xlu0 %2462
        %2464 = vrot.lane.b32.xlu0 %v2397, 64
        %v2465 = vpop.permute.xlu0 %2464
        %2466 = vrot.lane.b32.xlu0 %v2399, 64
        %v2467 = vpop.permute.xlu0 %2466
        %2468 = vrot.lane.b32.xlu0 %v2401, 64
        %v2469 = vpop.permute.xlu0 %2468
        %2470 = vrot.lane.b32.xlu0 %v2403, 64
        %v2471 = vpop.permute.xlu0 %2470
        %2472 = vrot.lane.b32.xlu0 %v2405, 64
        %v2473 = vpop.permute.xlu0 %2472
        %2474 = vrot.lane.b32.xlu0 %v2407, 64
        %v2475 = vpop.permute.xlu0 %2474
        %2476 = vrot.lane.b32.xlu0 %v2409, 64
        %v2477 = vpop.permute.xlu0 %2476
        %2478 = vrot.lane.b32.xlu0 %v2411, 64
        %v2479 = vpop.permute.xlu0 %2478
        %2480 = vrot.lane.b32.xlu0 %v2413, 64
        %v2481 = vpop.permute.xlu0 %2480
        %2482 = vrot.lane.b32.xlu0 %v2415, 64
        %v2483 = vpop.permute.xlu0 %2482
        %2484 = vrot.lane.b32.xlu0 %v2417, 64
        %v2485 = vpop.permute.xlu0 %2484
        %2486 = vrot.lane.b32.xlu0 %v2419, 64
        %v2487 = vpop.permute.xlu0 %2486
        %2488 = vrot.lane.b32.xlu0 %v2421, 64
        %v2489 = vpop.permute.xlu0 %2488
        %2490 = vrot.lane.b32.xlu0 %v2423, 64
        %v2491 = vpop.permute.xlu0 %2490
        %2492 = vrot.lane.b32.xlu0 %v2422, 64
        %v2493 = vpop.permute.xlu0 %2492
        %v2529 = vsel %vm1494, %v2108, %v2250
        %v2530 = vsel %vm1494, %v2109, %v2252
        %v2531 = vsel %vm1494, %v2110, %v2254
        %v2532 = vsel %vm1494, %v2111, %v2256
        %v2533 = vsel %vm1494, %v2112, %v2258
        %v2534 = vsel %vm1494, %v2113, %v2260
        %v2535 = vsel %vm1494, %v2114, %v2262
        %v2536 = vsel %vm1494, %v2115, %v2264
        %v2537 = vsel %vm1494, %v2116, %v2266
        %v2538 = vsel %vm1494, %v2117, %v2268
        %v2539 = vsel %vm1494, %v2118, %v2270
        %v2540 = vsel %vm1494, %v2119, %v2272
        %v2541 = vsel %vm1494, %v2120, %v2274
        %v2542 = vsel %vm1494, %v2121, %v2276
        %v2543 = vsel %vm1494, %v2122, %v2278
        %v2544 = vsel %vm1494, %v2123, %v2280
        %v2545 = vsel %vm1494, %v2124, %v2282
        %v2546 = vsel %vm1494, %v2125, %v2284
        %v2547 = vsel %vm1494, %v2126, %v2286
        %v2548 = vsel %vm1494, %v2127, %v2288
        %v2549 = vsel %vm1494, %v2128, %v2290
        %v2550 = vsel %vm1494, %v2129, %v2292
        %v2551 = vsel %vm1494, %v2130, %v2294
        %v2552 = vsel %vm1494, %v2131, %v2296
        %v2553 = vsel %vm1494, %v2132, %v2298
        %v2554 = vsel %vm1494, %v2133, %v2300
        %v2555 = vsel %vm1494, %v2134, %v2302
        %v2556 = vsel %vm1494, %v2135, %v2304
        %v2557 = vsel %vm1494, %v2136, %v2306
        %v2558 = vsel %vm1494, %v2137, %v2308
        %v2559 = vsel %vm1494, %v2138, %v2310
        %v2560 = vsel %vm1494, %v2139, %v2312
        %v2561 = vsel %vm1494, %v2140, %v2314
        %v2562 = vsel %vm1494, %v2141, %v2316
        %v2563 = vsel %vm1494, %v2142, %v2318
        %v2564 = vsel %vm1532, %v2529, %v2425
        %v2565 = vsel %vm1532, %v2530, %v2427
        %v2566 = vsel %vm1532, %v2531, %v2429
        %v2567 = vsel %vm1532, %v2532, %v2431
        %v2568 = vsel %vm1532, %v2533, %v2433
        %v2569 = vsel %vm1532, %v2534, %v2435
        %v2570 = vsel %vm1532, %v2535, %v2437
        %v2571 = vsel %vm1532, %v2536, %v2439
        %v2572 = vsel %vm1532, %v2537, %v2441
        %v2573 = vsel %vm1532, %v2538, %v2443
        %v2574 = vsel %vm1532, %v2539, %v2445
        %v2575 = vsel %vm1532, %v2540, %v2447
        %v2576 = vsel %vm1532, %v2541, %v2449
        %v2577 = vsel %vm1532, %v2542, %v2451
        %v2578 = vsel %vm1532, %v2543, %v2453
        %v2579 = vsel %vm1532, %v2544, %v2455
        %v2580 = vsel %vm1532, %v2545, %v2457
        %v2581 = vsel %vm1532, %v2546, %v2459
        %v2582 = vsel %vm1532, %v2547, %v2461
        %v2583 = vsel %vm1532, %v2548, %v2463
        %v2584 = vsel %vm1532, %v2549, %v2465
        %v2585 = vsel %vm1532, %v2550, %v2467
        %v2586 = vsel %vm1532, %v2551, %v2469
        %v2587 = vsel %vm1532, %v2552, %v2471
        %v2588 = vsel %vm1532, %v2553, %v2473
        %v2589 = vsel %vm1532, %v2554, %v2475
        %v2590 = vsel %vm1532, %v2555, %v2477
        %v2591 = vsel %vm1532, %v2556, %v2479
        %v2592 = vsel %vm1532, %v2557, %v2481
        %v2593 = vsel %vm1532, %v2558, %v2483
        %v2594 = vsel %vm1532, %v2559, %v2485
        %v2595 = vsel %vm1532, %v2560, %v2487
        %v2596 = vsel %vm1532, %v2561, %v2489
        %v2597 = vsel %vm1532, %v2562, %v2491
        %v2598 = vsel %vm1532, %v2563, %v2493
        %v2599 = vpack.c.bf16 %v2565, %v2564
        %v2600 = vpack.c.bf16 %v2567, %v2566
        %v2601 = vpack.c.bf16 %v2569, %v2568
        %v2602 = vpack.c.bf16 %v2571, %v2570
        %v2603 = vpack.c.bf16 %v2573, %v2572
        %v2604 = vpack.c.bf16 %v2575, %v2574
        %v2605 = vpack.c.bf16 %v2577, %v2576
        %v2606 = vpack.c.bf16 %v2579, %v2578
        %v2607 = vpack.c.bf16 %v2581, %v2580
        %v2608 = vpack.c.bf16 %v2583, %v2582
        %v2609 = vpack.c.bf16 %v2585, %v2584
        %v2610 = vpack.c.bf16 %v2587, %v2586
        %v2611 = vpack.c.bf16 %v2589, %v2588
        %v2612 = vpack.c.bf16 %v2591, %v2590
        %v2613 = vpack.c.bf16 %v2593, %v2592
        %v2614 = vpack.c.bf16 %v2595, %v2594
        %v2615 = vpack.c.bf16 %v2597, %v2596
        %v2616 = vpack.c.bf16 %v2598, %v2598
        %s2617 = scalar_lea.vmem %s3, 48
        %v2618 = vld [vmem:[%s2617] sm:$0xf]
        %v2619 = vld [vmem:[%s2617 + $0x4] sm:$0xf]
        %v2620 = vld [vmem:[%s2617 + $0x8] sm:$0xf]
        %v2621 = vld [vmem:[%s2617 + $0xc] sm:$0xf]
        %v2622 = vld [vmem:[%s2617 + $0x10] sm:$0xf]
        %v2623 = vld [vmem:[%s2617 + $0x14] sm:$0xf]
        %v2624 = vld [vmem:[%s2617 + $0x18] sm:$0xf]
        %v2625 = vld [vmem:[%s2617 + $0x1c] sm:$0xf]
        %v2626 = vld [vmem:[%s2617 + $0x20] sm:$0xf]
        %v2627 = vld [vmem:[%s2617 + $0x24] sm:$0xf]
        %v2628 = vld [vmem:[%s2617 + $0x28] sm:$0xf]
        %v2629 = vld [vmem:[%s2617 + $0x2c] sm:$0xf]
        %v2630 = vld [vmem:[%s5 + $0x2] sm:$0x1]
        %v2631 = vperm.slane %v2630, 0
        %v2644 = vunpack.c.l.b16 %v2618
        %v2645 = vunpack.c.l.b16 %v2619
        %v2646 = vunpack.c.l.b16 %v2620
        %v2647 = vunpack.c.l.b16 %v2621
        %v2648 = vunpack.c.l.b16 %v2622
        %v2649 = vunpack.c.l.b16 %v2623
        %v2650 = vunpack.c.l.b16 %v2624
        %v2651 = vunpack.c.l.b16 %v2625
        %v2652 = vunpack.c.l.b16 %v2626
        %v2653 = vunpack.c.l.b16 %v2627
        %v2654 = vunpack.c.l.b16 %v2628
        %v2655 = vunpack.c.l.b16 %v2629
        %v2656 = vpack.c.b16 %v2645, %v2644
        %v2657 = vpack.c.b16 %v2647, %v2646
        %v2658 = vpack.c.b16 %v2649, %v2648
        %v2659 = vpack.c.b16 %v2651, %v2650
        %v2660 = vpack.c.b16 %v2653, %v2652
        %v2661 = vpack.c.b16 %v2655, %v2654
        %v2669 = vsel %vm1639, %v2599, 0
        %v2672 = vsel %vm1639, %v2600, 0
        %v2675 = vsel %vm1639, %v2601, 0
        %v2678 = vsel %vm1639, %v2602, 0
        %v2681 = vsel %vm1639, %v2603, 0
        %v2684 = vsel %vm1639, %v2604, 0
        %v2687 = vsel %vm1639, %v2605, 0
        %v2690 = vsel %vm1639, %v2606, 0
        %v2693 = vsel %vm1639, %v2607, 0
        %v2696 = vsel %vm1639, %v2608, 0
        %v2699 = vsel %vm1639, %v2609, 0
        %v2702 = vsel %vm1639, %v2610, 0
        %v2705 = vsel %vm1639, %v2611, 0
        %v2708 = vsel %vm1639, %v2612, 0
        %v2711 = vsel %vm1639, %v2613, 0
        %v2714 = vsel %vm1639, %v2614, 0
        %v2717 = vsel %vm1639, %v2615, 0
        %v2720 = vsel %vm1639, %v2616, 0
        %2722 = vmatpush.bf16.msra.mxu0 0
        %2723 = vmatpush.bf16.msra.mxu0 0
        %2724 = vmatpush.bf16.msra.mxu0 %v2661
        %2725 = vmatpush.bf16.msra.mxu0 %v2660
        %2726 = vmatpush.bf16.msra.mxu0 %v2659
        %2727 = vmatpush.bf16.msra.mxu0 %v2658
        %2728 = vmatpush.bf16.msra.mxu0 %v2657
        %2729 = vmatpush.bf16.msra.mxu0 %v2656
        %2730 = vmatmul.bf16.gmra.mxu0 %v2669
        %v2731 = vpop.f32.mrf.mxu0
        %v2732 = vadd.f32 %v2631, %v2731
        %v2733 = vpop.f32.mrf.mxu0
        %v2734 = vadd.f32 %v2631, %v2733
        %2735 = vmatmul.bf16.gmra.mxu0 %v2672
        %v2736 = vpop.f32.mrf.mxu0
        %v2737 = vadd.f32 %v2631, %v2736
        %v2738 = vpop.f32.mrf.mxu0
        %v2739 = vadd.f32 %v2631, %v2738
        %2740 = vmatmul.bf16.gmra.mxu0 %v2675
        %v2741 = vpop.f32.mrf.mxu0
        %v2742 = vadd.f32 %v2631, %v2741
        %v2743 = vpop.f32.mrf.mxu0
        %v2744 = vadd.f32 %v2631, %v2743
        %2745 = vmatmul.bf16.gmra.mxu0 %v2678
        %v2746 = vpop.f32.mrf.mxu0
        %v2747 = vadd.f32 %v2631, %v2746
        %v2748 = vpop.f32.mrf.mxu0
        %v2749 = vadd.f32 %v2631, %v2748
        %2750 = vmatmul.bf16.gmra.mxu0 %v2681
        %v2751 = vpop.f32.mrf.mxu0
        %v2752 = vadd.f32 %v2631, %v2751
        %v2753 = vpop.f32.mrf.mxu0
        %v2754 = vadd.f32 %v2631, %v2753
        %2755 = vmatmul.bf16.gmra.mxu0 %v2684
        %v2756 = vpop.f32.mrf.mxu0
        %v2757 = vadd.f32 %v2631, %v2756
        %v2758 = vpop.f32.mrf.mxu0
        %v2759 = vadd.f32 %v2631, %v2758
        %2760 = vmatmul.bf16.gmra.mxu0 %v2687
        %v2761 = vpop.f32.mrf.mxu0
        %v2762 = vadd.f32 %v2631, %v2761
        %v2763 = vpop.f32.mrf.mxu0
        %v2764 = vadd.f32 %v2631, %v2763
        %2765 = vmatmul.bf16.gmra.mxu0 %v2690
        %v2766 = vpop.f32.mrf.mxu0
        %v2767 = vadd.f32 %v2631, %v2766
        %v2768 = vpop.f32.mrf.mxu0
        %v2769 = vadd.f32 %v2631, %v2768
        %2770 = vmatmul.bf16.gmra.mxu0 %v2693
        %v2771 = vpop.f32.mrf.mxu0
        %v2772 = vadd.f32 %v2631, %v2771
        %v2773 = vpop.f32.mrf.mxu0
        %v2774 = vadd.f32 %v2631, %v2773
        %2775 = vmatmul.bf16.gmra.mxu0 %v2696
        %v2776 = vpop.f32.mrf.mxu0
        %v2777 = vadd.f32 %v2631, %v2776
        %v2778 = vpop.f32.mrf.mxu0
        %v2779 = vadd.f32 %v2631, %v2778
        %2780 = vmatmul.bf16.gmra.mxu0 %v2699
        %v2781 = vpop.f32.mrf.mxu0
        %v2782 = vadd.f32 %v2631, %v2781
        %v2783 = vpop.f32.mrf.mxu0
        %v2784 = vadd.f32 %v2631, %v2783
        %2785 = vmatmul.bf16.gmra.mxu0 %v2702
        %v2786 = vpop.f32.mrf.mxu0
        %v2787 = vadd.f32 %v2631, %v2786
        %v2788 = vpop.f32.mrf.mxu0
        %v2789 = vadd.f32 %v2631, %v2788
        %2790 = vmatmul.bf16.gmra.mxu0 %v2705
        %v2791 = vpop.f32.mrf.mxu0
        %v2792 = vadd.f32 %v2631, %v2791
        %v2793 = vpop.f32.mrf.mxu0
        %v2794 = vadd.f32 %v2631, %v2793
        %2795 = vmatmul.bf16.gmra.mxu0 %v2708
        %v2796 = vpop.f32.mrf.mxu0
        %v2797 = vadd.f32 %v2631, %v2796
        %v2798 = vpop.f32.mrf.mxu0
        %v2799 = vadd.f32 %v2631, %v2798
        %2800 = vmatmul.bf16.gmra.mxu0 %v2711
        %v2801 = vpop.f32.mrf.mxu0
        %v2802 = vadd.f32 %v2631, %v2801
        %v2803 = vpop.f32.mrf.mxu0
        %v2804 = vadd.f32 %v2631, %v2803
        %2805 = vmatmul.bf16.gmra.mxu0 %v2714
        %v2806 = vpop.f32.mrf.mxu0
        %v2807 = vadd.f32 %v2631, %v2806
        %v2808 = vpop.f32.mrf.mxu0
        %v2809 = vadd.f32 %v2631, %v2808
        %2810 = vmatmul.bf16.gmra.mxu0 %v2717
        %v2811 = vpop.f32.mrf.mxu0
        %v2812 = vadd.f32 %v2631, %v2811
        %v2813 = vpop.f32.mrf.mxu0
        %v2814 = vadd.f32 %v2631, %v2813
        %2815 = vmatmul.bf16.gmra.mxu0 %v2720
        %v2816 = vpop.f32.mrf.mxu0
        %v2817 = vadd.f32 %v2631, %v2816
        %v2818 = vpop.f32.mrf.mxu0
        %2819 = vdwg.mxu0
        %v2820 = vmax.f32 %v2732, 0.0
        %v2821 = vmax.f32 %v2734, 0.0
        %v2822 = vmax.f32 %v2737, 0.0
        %v2823 = vmax.f32 %v2739, 0.0
        %v2824 = vmax.f32 %v2742, 0.0
        %v2825 = vmax.f32 %v2744, 0.0
        %v2826 = vmax.f32 %v2747, 0.0
        %v2827 = vmax.f32 %v2749, 0.0
        %v2828 = vmax.f32 %v2752, 0.0
        %v2829 = vmax.f32 %v2754, 0.0
        %v2830 = vmax.f32 %v2757, 0.0
        %v2831 = vmax.f32 %v2759, 0.0
        %v2832 = vmax.f32 %v2762, 0.0
        %v2833 = vmax.f32 %v2764, 0.0
        %v2834 = vmax.f32 %v2767, 0.0
        %v2835 = vmax.f32 %v2769, 0.0
        %v2836 = vmax.f32 %v2772, 0.0
        %v2837 = vmax.f32 %v2774, 0.0
        %v2838 = vmax.f32 %v2777, 0.0
        %v2839 = vmax.f32 %v2779, 0.0
        %v2840 = vmax.f32 %v2782, 0.0
        %v2841 = vmax.f32 %v2784, 0.0
        %v2842 = vmax.f32 %v2787, 0.0
        %v2843 = vmax.f32 %v2789, 0.0
        %v2844 = vmax.f32 %v2792, 0.0
        %v2845 = vmax.f32 %v2794, 0.0
        %v2846 = vmax.f32 %v2797, 0.0
        %v2847 = vmax.f32 %v2799, 0.0
        %v2848 = vmax.f32 %v2802, 0.0
        %v2849 = vmax.f32 %v2804, 0.0
        %v2850 = vmax.f32 %v2807, 0.0
        %v2851 = vmax.f32 %v2809, 0.0
        %v2852 = vmax.f32 %v2812, 0.0
        %v2853 = vmax.f32 %v2814, 0.0
        %v2854 = vmax.f32 %v2817, 0.0
        %v2855 = vpack.c.bf16 %v2821, %v2820
        %v2856 = vpack.c.bf16 %v2823, %v2822
        %v2857 = vpack.c.bf16 %v2825, %v2824
        %v2858 = vpack.c.bf16 %v2827, %v2826
        %v2859 = vpack.c.bf16 %v2829, %v2828
        %v2860 = vpack.c.bf16 %v2831, %v2830
        %v2861 = vpack.c.bf16 %v2833, %v2832
        %v2862 = vpack.c.bf16 %v2835, %v2834
        %v2863 = vpack.c.bf16 %v2837, %v2836
        %v2864 = vpack.c.bf16 %v2839, %v2838
        %v2865 = vpack.c.bf16 %v2841, %v2840
        %v2866 = vpack.c.bf16 %v2843, %v2842
        %v2867 = vpack.c.bf16 %v2845, %v2844
        %v2868 = vpack.c.bf16 %v2847, %v2846
        %v2869 = vpack.c.bf16 %v2849, %v2848
        %v2870 = vpack.c.bf16 %v2851, %v2850
        %v2871 = vpack.c.bf16 %v2853, %v2852
        %v2872 = vpack.c.bf16 %v2854, %v2854
        %s2873 = scalar_lea.vmem %s4, 16
        %v2874 = vld [vmem:[%s2873] sm:$0xf]
        %v2875 = vld [vmem:[%s2873 + $0x4] sm:$0xf]
        %v2876 = vld [vmem:[%s2873 + $0x8] sm:$0xf]
        %v2877 = vld [vmem:[%s2873 + $0xc] sm:$0xf]
        %v2878 = vld [vmem:[%s5 + $0x3] sm:$0x1]
        %v2879 = vperm.slane %v2878, 0
        %v2884 = vunpack.c.l.b16 %v2874
        %v2885 = vunpack.c.l.b16 %v2875
        %v2886 = vunpack.c.l.b16 %v2876
        %v2887 = vunpack.c.l.b16 %v2877
        %v2888 = vpack.c.b16 %v2885, %v2884
        %v2889 = vpack.c.b16 %v2887, %v2886
        %v2893 = vsel %vm1494, %v2855, 0
        %v2896 = vsel %vm1494, %v2856, 0
        %v2899 = vsel %vm1494, %v2857, 0
        %v2902 = vsel %vm1494, %v2858, 0
        %v2905 = vsel %vm1494, %v2859, 0
        %v2908 = vsel %vm1494, %v2860, 0
        %v2911 = vsel %vm1494, %v2861, 0
        %v2914 = vsel %vm1494, %v2862, 0
        %v2917 = vsel %vm1494, %v2863, 0
        %v2920 = vsel %vm1494, %v2864, 0
        %v2923 = vsel %vm1494, %v2865, 0
        %v2926 = vsel %vm1494, %v2866, 0
        %v2929 = vsel %vm1494, %v2867, 0
        %v2932 = vsel %vm1494, %v2868, 0
        %v2935 = vsel %vm1494, %v2869, 0
        %v2938 = vsel %vm1494, %v2870, 0
        %v2941 = vsel %vm1494, %v2871, 0
        %v2944 = vsel %vm1494, %v2872, 0
        %2946 = vmatpush.bf16.msra.mxu0 0
        %2947 = vmatpush.bf16.msra.mxu0 0
        %2948 = vmatpush.bf16.msra.mxu0 0
        %2949 = vmatpush.bf16.msra.mxu0 0
        %2950 = vmatpush.bf16.msra.mxu0 0
        %2951 = vmatpush.bf16.msra.mxu0 0
        %2952 = vmatpush.bf16.msra.mxu0 %v2889
        %2953 = vmatpush.bf16.msra.mxu0 %v2888
        %2954 = vmatmul.bf16.gmra.mxu0 %v2893
        %v2955 = vpop.f32.mrf.mxu0
        %v2956 = vadd.f32 %v2879, %v2955
        %v2957 = vpop.f32.mrf.mxu0
        %v2958 = vadd.f32 %v2879, %v2957
        %2959 = vmatmul.bf16.gmra.mxu0 %v2896
        %v2960 = vpop.f32.mrf.mxu0
        %v2961 = vadd.f32 %v2879, %v2960
        %v2962 = vpop.f32.mrf.mxu0
        %v2963 = vadd.f32 %v2879, %v2962
        %2964 = vmatmul.bf16.gmra.mxu0 %v2899
        %v2965 = vpop.f32.mrf.mxu0
        %v2966 = vadd.f32 %v2879, %v2965
        %v2967 = vpop.f32.mrf.mxu0
        %v2968 = vadd.f32 %v2879, %v2967
        %2969 = vmatmul.bf16.gmra.mxu0 %v2902
        %v2970 = vpop.f32.mrf.mxu0
        %v2971 = vadd.f32 %v2879, %v2970
        %v2972 = vpop.f32.mrf.mxu0
        %v2973 = vadd.f32 %v2879, %v2972
        %2974 = vmatmul.bf16.gmra.mxu0 %v2905
        %v2975 = vpop.f32.mrf.mxu0
        %v2976 = vadd.f32 %v2879, %v2975
        %v2977 = vpop.f32.mrf.mxu0
        %v2978 = vadd.f32 %v2879, %v2977
        %2979 = vmatmul.bf16.gmra.mxu0 %v2908
        %v2980 = vpop.f32.mrf.mxu0
        %v2981 = vadd.f32 %v2879, %v2980
        %v2982 = vpop.f32.mrf.mxu0
        %v2983 = vadd.f32 %v2879, %v2982
        %2984 = vmatmul.bf16.gmra.mxu0 %v2911
        %v2985 = vpop.f32.mrf.mxu0
        %v2986 = vadd.f32 %v2879, %v2985
        %v2987 = vpop.f32.mrf.mxu0
        %v2988 = vadd.f32 %v2879, %v2987
        %2989 = vmatmul.bf16.gmra.mxu0 %v2914
        %v2990 = vpop.f32.mrf.mxu0
        %v2991 = vadd.f32 %v2879, %v2990
        %v2992 = vpop.f32.mrf.mxu0
        %v2993 = vadd.f32 %v2879, %v2992
        %2994 = vmatmul.bf16.gmra.mxu0 %v2917
        %v2995 = vpop.f32.mrf.mxu0
        %v2996 = vadd.f32 %v2879, %v2995
        %v2997 = vpop.f32.mrf.mxu0
        %v2998 = vadd.f32 %v2879, %v2997
        %2999 = vmatmul.bf16.gmra.mxu0 %v2920
        %v3000 = vpop.f32.mrf.mxu0
        %v3001 = vadd.f32 %v2879, %v3000
        %v3002 = vpop.f32.mrf.mxu0
        %v3003 = vadd.f32 %v2879, %v3002
        %3004 = vmatmul.bf16.gmra.mxu0 %v2923
        %v3005 = vpop.f32.mrf.mxu0
        %v3006 = vadd.f32 %v2879, %v3005
        %v3007 = vpop.f32.mrf.mxu0
        %v3008 = vadd.f32 %v2879, %v3007
        %3009 = vmatmul.bf16.gmra.mxu0 %v2926
        %v3010 = vpop.f32.mrf.mxu0
        %v3011 = vadd.f32 %v2879, %v3010
        %v3012 = vpop.f32.mrf.mxu0
        %v3013 = vadd.f32 %v2879, %v3012
        %3014 = vmatmul.bf16.gmra.mxu0 %v2929
        %v3015 = vpop.f32.mrf.mxu0
        %v3016 = vadd.f32 %v2879, %v3015
        %v3017 = vpop.f32.mrf.mxu0
        %v3018 = vadd.f32 %v2879, %v3017
        %3019 = vmatmul.bf16.gmra.mxu0 %v2932
        %v3020 = vpop.f32.mrf.mxu0
        %v3021 = vadd.f32 %v2879, %v3020
        %v3022 = vpop.f32.mrf.mxu0
        %v3023 = vadd.f32 %v2879, %v3022
        %3024 = vmatmul.bf16.gmra.mxu0 %v2935
        %v3025 = vpop.f32.mrf.mxu0
        %v3026 = vadd.f32 %v2879, %v3025
        %v3027 = vpop.f32.mrf.mxu0
        %v3028 = vadd.f32 %v2879, %v3027
        %3029 = vmatmul.bf16.gmra.mxu0 %v2938
        %v3030 = vpop.f32.mrf.mxu0
        %v3031 = vadd.f32 %v2879, %v3030
        %v3032 = vpop.f32.mrf.mxu0
        %v3033 = vadd.f32 %v2879, %v3032
        %3034 = vmatmul.bf16.gmra.mxu0 %v2941
        %v3035 = vpop.f32.mrf.mxu0
        %v3036 = vadd.f32 %v2879, %v3035
        %v3037 = vpop.f32.mrf.mxu0
        %v3038 = vadd.f32 %v2879, %v3037
        %3039 = vmatmul.bf16.gmra.mxu0 %v2944
        %v3040 = vpop.f32.mrf.mxu0
        %v3041 = vadd.f32 %v2879, %v3040
        %v3042 = vpop.f32.mrf.mxu0
        %3043 = vdwg.mxu0
        %v3044 = vmax.f32 %v2956, 0.0
        %v3045 = vmax.f32 %v2958, 0.0
        %v3046 = vmax.f32 %v2961, 0.0
        %v3047 = vmax.f32 %v2963, 0.0
        %v3048 = vmax.f32 %v2966, 0.0
        %v3049 = vmax.f32 %v2968, 0.0
        %v3050 = vmax.f32 %v2971, 0.0
        %v3051 = vmax.f32 %v2973, 0.0
        %v3052 = vmax.f32 %v2976, 0.0
        %v3053 = vmax.f32 %v2978, 0.0
        %v3054 = vmax.f32 %v2981, 0.0
        %v3055 = vmax.f32 %v2983, 0.0
        %v3056 = vmax.f32 %v2986, 0.0
        %v3057 = vmax.f32 %v2988, 0.0
        %v3058 = vmax.f32 %v2991, 0.0
        %v3059 = vmax.f32 %v2993, 0.0
        %v3060 = vmax.f32 %v2996, 0.0
        %v3061 = vmax.f32 %v2998, 0.0
        %v3062 = vmax.f32 %v3001, 0.0
        %v3063 = vmax.f32 %v3003, 0.0
        %v3064 = vmax.f32 %v3006, 0.0
        %v3065 = vmax.f32 %v3008, 0.0
        %v3066 = vmax.f32 %v3011, 0.0
        %v3067 = vmax.f32 %v3013, 0.0
        %v3068 = vmax.f32 %v3016, 0.0
        %v3069 = vmax.f32 %v3018, 0.0
        %v3070 = vmax.f32 %v3021, 0.0
        %v3071 = vmax.f32 %v3023, 0.0
        %v3072 = vmax.f32 %v3026, 0.0
        %v3073 = vmax.f32 %v3028, 0.0
        %v3074 = vmax.f32 %v3031, 0.0
        %v3075 = vmax.f32 %v3033, 0.0
        %v3076 = vmax.f32 %v3036, 0.0
        %v3077 = vmax.f32 %v3038, 0.0
        %v3078 = vmax.f32 %v3041, 0.0
        %v3114 = vadd.f32 %v3044, %v2182
        %v3115 = vadd.f32 %v3045, %v2184
        %v3116 = vadd.f32 %v3046, %v2186
        %v3117 = vadd.f32 %v3047, %v2188
        %v3118 = vadd.f32 %v3048, %v2190
        %v3119 = vadd.f32 %v3049, %v2192
        %v3120 = vadd.f32 %v3050, %v2194
        %v3121 = vadd.f32 %v3051, %v2196
        %v3122 = vadd.f32 %v3052, %v2198
        %v3123 = vadd.f32 %v3053, %v2200
        %v3124 = vadd.f32 %v3054, %v2202
        %v3125 = vadd.f32 %v3055, %v2204
        %v3126 = vadd.f32 %v3056, %v2206
        %v3127 = vadd.f32 %v3057, %v2208
        %v3128 = vadd.f32 %v3058, %v2210
        %v3129 = vadd.f32 %v3059, %v2212
        %v3130 = vadd.f32 %v3060, %v2214
        %v3131 = vadd.f32 %v3061, %v2216
        %v3132 = vadd.f32 %v3062, %v2218
        %v3133 = vadd.f32 %v3063, %v2220
        %v3134 = vadd.f32 %v3064, %v2222
        %v3135 = vadd.f32 %v3065, %v2224
        %v3136 = vadd.f32 %v3066, %v2226
        %v3137 = vadd.f32 %v3067, %v2228
        %v3138 = vadd.f32 %v3068, %v2230
        %v3139 = vadd.f32 %v3069, %v2232
        %v3140 = vadd.f32 %v3070, %v2234
        %v3141 = vadd.f32 %v3071, %v2236
        %v3142 = vadd.f32 %v3072, %v2238
        %v3143 = vadd.f32 %v3073, %v2240
        %v3144 = vadd.f32 %v3074, %v2242
        %v3145 = vadd.f32 %v3075, %v2244
        %v3146 = vadd.f32 %v3076, %v2246
        %v3147 = vadd.f32 %v3077, %v2248
        %v3148 = vadd.f32 %v3078, %v2247
        %v3177 = vrot.slane %v3117, 3
        %v3178 = vrot.slane %v3118, 3
        %v3179 = vsel %vm1122, %v3177, %v3178
        %v3180 = vrot.slane %v3119, 3
        %v3181 = vsel %vm1122, %v3178, %v3180
        %v3182 = vrot.slane %v3120, 3
        %v3183 = vsel %vm1122, %v3180, %v3182
        %v3184 = vrot.slane %v3121, 3
        %v3185 = vsel %vm1122, %v3182, %v3184
        %v3186 = vrot.slane %v3122, 3
        %v3187 = vsel %vm1122, %v3184, %v3186
        %v3188 = vrot.slane %v3123, 3
        %v3189 = vsel %vm1122, %v3186, %v3188
        %v3190 = vrot.slane %v3124, 3
        %v3191 = vsel %vm1122, %v3188, %v3190
        %v3192 = vrot.slane %v3125, 3
        %v3193 = vsel %vm1122, %v3190, %v3192
        %v3194 = vrot.slane %v3126, 3
        %v3195 = vsel %vm1122, %v3192, %v3194
        %v3196 = vrot.slane %v3127, 3
        %v3197 = vsel %vm1122, %v3194, %v3196
        %v3198 = vrot.slane %v3128, 3
        %v3199 = vsel %vm1122, %v3196, %v3198
        %v3200 = vrot.slane %v3129, 3
        %v3201 = vsel %vm1122, %v3198, %v3200
        %v3202 = vrot.slane %v3130, 3
        %v3203 = vsel %vm1122, %v3200, %v3202
        %v3204 = vrot.slane %v3131, 3
        %v3205 = vsel %vm1122, %v3202, %v3204
        %v3206 = vrot.slane %v3132, 3
        %v3207 = vsel %vm1122, %v3204, %v3206
        %v3208 = vrot.slane %v3133, 3
        %v3209 = vsel %vm1122, %v3206, %v3208
        %v3210 = vrot.slane %v3134, 3
        %v3211 = vsel %vm1122, %v3208, %v3210
        %v3212 = vrot.slane %v3135, 3
        %v3213 = vsel %vm1122, %v3210, %v3212
        %v3214 = vrot.slane %v3136, 3
        %v3215 = vsel %vm1122, %v3212, %v3214
        %v3216 = vrot.slane %v3137, 3
        %v3217 = vsel %vm1122, %v3214, %v3216
        %v3218 = vrot.slane %v3138, 3
        %v3219 = vsel %vm1122, %v3216, %v3218
        %v3220 = vrot.slane %v3139, 3
        %v3221 = vsel %vm1122, %v3218, %v3220
        %v3222 = vrot.slane %v3140, 3
        %v3223 = vsel %vm1122, %v3220, %v3222
        %v3224 = vrot.slane %v3141, 3
        %v3225 = vsel %vm1122, %v3222, %v3224
        %v3226 = vrot.slane %v3142, 3
        %v3227 = vsel %vm1122, %v3224, %v3226
        %v3228 = vrot.slane %v3143, 3
        %v3229 = vsel %vm1122, %v3226, %v3228
        %v3230 = vrot.slane %v3144, 3
        %v3231 = vsel %vm1122, %v3228, %v3230
        %3232 = vrot.lane.b32.xlu0 %v3179, 32
        %v3233 = vpop.permute.xlu0 %3232
        %3234 = vrot.lane.b32.xlu0 %v3181, 32
        %v3235 = vpop.permute.xlu0 %3234
        %3236 = vrot.lane.b32.xlu0 %v3183, 32
        %v3237 = vpop.permute.xlu0 %3236
        %3238 = vrot.lane.b32.xlu0 %v3185, 32
        %v3239 = vpop.permute.xlu0 %3238
        %3240 = vrot.lane.b32.xlu0 %v3187, 32
        %v3241 = vpop.permute.xlu0 %3240
        %3242 = vrot.lane.b32.xlu0 %v3189, 32
        %v3243 = vpop.permute.xlu0 %3242
        %3244 = vrot.lane.b32.xlu0 %v3191, 32
        %v3245 = vpop.permute.xlu0 %3244
        %3246 = vrot.lane.b32.xlu0 %v3193, 32
        %v3247 = vpop.permute.xlu0 %3246
        %3248 = vrot.lane.b32.xlu0 %v3195, 32
        %v3249 = vpop.permute.xlu0 %3248
        %3250 = vrot.lane.b32.xlu0 %v3197, 32
        %v3251 = vpop.permute.xlu0 %3250
        %3252 = vrot.lane.b32.xlu0 %v3199, 32
        %v3253 = vpop.permute.xlu0 %3252
        %3254 = vrot.lane.b32.xlu0 %v3201, 32
        %v3255 = vpop.permute.xlu0 %3254
        %3256 = vrot.lane.b32.xlu0 %v3203, 32
        %v3257 = vpop.permute.xlu0 %3256
        %3258 = vrot.lane.b32.xlu0 %v3205, 32
        %v3259 = vpop.permute.xlu0 %3258
        %3260 = vrot.lane.b32.xlu0 %v3207, 32
        %v3261 = vpop.permute.xlu0 %3260
        %3262 = vrot.lane.b32.xlu0 %v3209, 32
        %v3263 = vpop.permute.xlu0 %3262
        %3264 = vrot.lane.b32.xlu0 %v3211, 32
        %v3265 = vpop.permute.xlu0 %3264
        %3266 = vrot.lane.b32.xlu0 %v3213, 32
        %v3267 = vpop.permute.xlu0 %3266
        %3268 = vrot.lane.b32.xlu0 %v3215, 32
        %v3269 = vpop.permute.xlu0 %3268
        %3270 = vrot.lane.b32.xlu0 %v3217, 32
        %v3271 = vpop.permute.xlu0 %3270
        %3272 = vrot.lane.b32.xlu0 %v3219, 32
        %v3273 = vpop.permute.xlu0 %3272
        %3274 = vrot.lane.b32.xlu0 %v3221, 32
        %v3275 = vpop.permute.xlu0 %3274
        %3276 = vrot.lane.b32.xlu0 %v3223, 32
        %v3277 = vpop.permute.xlu0 %3276
        %3278 = vrot.lane.b32.xlu0 %v3225, 32
        %v3279 = vpop.permute.xlu0 %3278
        %3280 = vrot.lane.b32.xlu0 %v3227, 32
        %v3281 = vpop.permute.xlu0 %3280
        %3282 = vrot.lane.b32.xlu0 %v3229, 32
        %v3283 = vpop.permute.xlu0 %3282
        %3284 = vrot.lane.b32.xlu0 %v3231, 32
        %v3285 = vpop.permute.xlu0 %3284
        %3286 = vrot.lane.b32.xlu0 %v3230, 32
        %v3287 = vpop.permute.xlu0 %3286
        %v3320 = vrot.slane %v3120, 6
        %v3321 = vrot.slane %v3121, 6
        %v3322 = vsel %vm939, %v3320, %v3321
        %v3323 = vrot.slane %v3122, 6
        %v3324 = vsel %vm939, %v3321, %v3323
        %v3325 = vrot.slane %v3123, 6
        %v3326 = vsel %vm939, %v3323, %v3325
        %v3327 = vrot.slane %v3124, 6
        %v3328 = vsel %vm939, %v3325, %v3327
        %v3329 = vrot.slane %v3125, 6
        %v3330 = vsel %vm939, %v3327, %v3329
        %v3331 = vrot.slane %v3126, 6
        %v3332 = vsel %vm939, %v3329, %v3331
        %v3333 = vrot.slane %v3127, 6
        %v3334 = vsel %vm939, %v3331, %v3333
        %v3335 = vrot.slane %v3128, 6
        %v3336 = vsel %vm939, %v3333, %v3335
        %v3337 = vrot.slane %v3129, 6
        %v3338 = vsel %vm939, %v3335, %v3337
        %v3339 = vrot.slane %v3130, 6
        %v3340 = vsel %vm939, %v3337, %v3339
        %v3341 = vrot.slane %v3131, 6
        %v3342 = vsel %vm939, %v3339, %v3341
        %v3343 = vrot.slane %v3132, 6
        %v3344 = vsel %vm939, %v3341, %v3343
        %v3345 = vrot.slane %v3133, 6
        %v3346 = vsel %vm939, %v3343, %v3345
        %v3347 = vrot.slane %v3134, 6
        %v3348 = vsel %vm939, %v3345, %v3347
        %v3349 = vrot.slane %v3135, 6
        %v3350 = vsel %vm939, %v3347, %v3349
        %v3351 = vrot.slane %v3136, 6
        %v3352 = vsel %vm939, %v3349, %v3351
        %v3353 = vrot.slane %v3137, 6
        %v3354 = vsel %vm939, %v3351, %v3353
        %v3355 = vrot.slane %v3138, 6
        %v3356 = vsel %vm939, %v3353, %v3355
        %v3357 = vrot.slane %v3139, 6
        %v3358 = vsel %vm939, %v3355, %v3357
        %v3359 = vrot.slane %v3140, 6
        %v3360 = vsel %vm939, %v3357, %v3359
        %v3361 = vrot.slane %v3141, 6
        %v3362 = vsel %vm939, %v3359, %v3361
        %v3363 = vrot.slane %v3142, 6
        %v3364 = vsel %vm939, %v3361, %v3363
        %v3365 = vrot.slane %v3143, 6
        %v3366 = vsel %vm939, %v3363, %v3365
        %v3367 = vrot.slane %v3144, 6
        %v3368 = vsel %vm939, %v3365, %v3367
        %v3369 = vrot.slane %v3145, 6
        %v3370 = vsel %vm939, %v3367, %v3369
        %v3371 = vrot.slane %v3146, 6
        %v3372 = vsel %vm939, %v3369, %v3371
        %v3373 = vrot.slane %v3147, 6
        %v3374 = vsel %vm939, %v3371, %v3373
        %v3375 = vrot.slane %v3148, 6
        %v3376 = vsel %vm939, %v3373, %v3375
        %3377 = vrot.lane.b32.xlu0 %v3322, 64
        %v3378 = vpop.permute.xlu0 %3377
        %3379 = vrot.lane.b32.xlu0 %v3324, 64
        %v3380 = vpop.permute.xlu0 %3379
        %3381 = vrot.lane.b32.xlu0 %v3326, 64
        %v3382 = vpop.permute.xlu0 %3381
        %3383 = vrot.lane.b32.xlu0 %v3328, 64
        %v3384 = vpop.permute.xlu0 %3383
        %3385 = vrot.lane.b32.xlu0 %v3330, 64
        %v3386 = vpop.permute.xlu0 %3385
        %3387 = vrot.lane.b32.xlu0 %v3332, 64
        %v3388 = vpop.permute.xlu0 %3387
        %3389 = vrot.lane.b32.xlu0 %v3334, 64
        %v3390 = vpop.permute.xlu0 %3389
        %3391 = vrot.lane.b32.xlu0 %v3336, 64
        %v3392 = vpop.permute.xlu0 %3391
        %3393 = vrot.lane.b32.xlu0 %v3338, 64
        %v3394 = vpop.permute.xlu0 %3393
        %3395 = vrot.lane.b32.xlu0 %v3340, 64
        %v3396 = vpop.permute.xlu0 %3395
        %3397 = vrot.lane.b32.xlu0 %v3342, 64
        %v3398 = vpop.permute.xlu0 %3397
        %3399 = vrot.lane.b32.xlu0 %v3344, 64
        %v3400 = vpop.permute.xlu0 %3399
        %3401 = vrot.lane.b32.xlu0 %v3346, 64
        %v3402 = vpop.permute.xlu0 %3401
        %3403 = vrot.lane.b32.xlu0 %v3348, 64
        %v3404 = vpop.permute.xlu0 %3403
        %3405 = vrot.lane.b32.xlu0 %v3350, 64
        %v3406 = vpop.permute.xlu0 %3405
        %3407 = vrot.lane.b32.xlu0 %v3352, 64
        %v3408 = vpop.permute.xlu0 %3407
        %3409 = vrot.lane.b32.xlu0 %v3354, 64
        %v3410 = vpop.permute.xlu0 %3409
        %3411 = vrot.lane.b32.xlu0 %v3356, 64
        %v3412 = vpop.permute.xlu0 %3411
        %3413 = vrot.lane.b32.xlu0 %v3358, 64
        %v3414 = vpop.permute.xlu0 %3413
        %3415 = vrot.lane.b32.xlu0 %v3360, 64
        %v3416 = vpop.permute.xlu0 %3415
        %3417 = vrot.lane.b32.xlu0 %v3362, 64
        %v3418 = vpop.permute.xlu0 %3417
        %3419 = vrot.lane.b32.xlu0 %v3364, 64
        %v3420 = vpop.permute.xlu0 %3419
        %3421 = vrot.lane.b32.xlu0 %v3366, 64
        %v3422 = vpop.permute.xlu0 %3421
        %3423 = vrot.lane.b32.xlu0 %v3368, 64
        %v3424 = vpop.permute.xlu0 %3423
        %3425 = vrot.lane.b32.xlu0 %v3370, 64
        %v3426 = vpop.permute.xlu0 %3425
        %3427 = vrot.lane.b32.xlu0 %v3372, 64
        %v3428 = vpop.permute.xlu0 %3427
        %3429 = vrot.lane.b32.xlu0 %v3374, 64
        %v3430 = vpop.permute.xlu0 %3429
        %3431 = vrot.lane.b32.xlu0 %v3376, 64
        %v3432 = vpop.permute.xlu0 %3431
        %v3461 = vsel %vm1494, %v3114, %v3233
        %v3462 = vsel %vm1494, %v3115, %v3235
        %v3463 = vsel %vm1494, %v3116, %v3237
        %v3464 = vsel %vm1494, %v3117, %v3239
        %v3465 = vsel %vm1494, %v3118, %v3241
        %v3466 = vsel %vm1494, %v3119, %v3243
        %v3467 = vsel %vm1494, %v3120, %v3245
        %v3468 = vsel %vm1494, %v3121, %v3247
        %v3469 = vsel %vm1494, %v3122, %v3249
        %v3470 = vsel %vm1494, %v3123, %v3251
        %v3471 = vsel %vm1494, %v3124, %v3253
        %v3472 = vsel %vm1494, %v3125, %v3255
        %v3473 = vsel %vm1494, %v3126, %v3257
        %v3474 = vsel %vm1494, %v3127, %v3259
        %v3475 = vsel %vm1494, %v3128, %v3261
        %v3476 = vsel %vm1494, %v3129, %v3263
        %v3477 = vsel %vm1494, %v3130, %v3265
        %v3478 = vsel %vm1494, %v3131, %v3267
        %v3479 = vsel %vm1494, %v3132, %v3269
        %v3480 = vsel %vm1494, %v3133, %v3271
        %v3481 = vsel %vm1494, %v3134, %v3273
        %v3482 = vsel %vm1494, %v3135, %v3275
        %v3483 = vsel %vm1494, %v3136, %v3277
        %v3484 = vsel %vm1494, %v3137, %v3279
        %v3485 = vsel %vm1494, %v3138, %v3281
        %v3486 = vsel %vm1494, %v3139, %v3283
        %v3487 = vsel %vm1494, %v3140, %v3285
        %v3488 = vsel %vm1494, %v3141, %v3287
        %v3489 = vsel %vm1532, %v3461, %v3378
        %v3490 = vsel %vm1532, %v3462, %v3380
        %v3491 = vsel %vm1532, %v3463, %v3382
        %v3492 = vsel %vm1532, %v3464, %v3384
        %v3493 = vsel %vm1532, %v3465, %v3386
        %v3494 = vsel %vm1532, %v3466, %v3388
        %v3495 = vsel %vm1532, %v3467, %v3390
        %v3496 = vsel %vm1532, %v3468, %v3392
        %v3497 = vsel %vm1532, %v3469, %v3394
        %v3498 = vsel %vm1532, %v3470, %v3396
        %v3499 = vsel %vm1532, %v3471, %v3398
        %v3500 = vsel %vm1532, %v3472, %v3400
        %v3501 = vsel %vm1532, %v3473, %v3402
        %v3502 = vsel %vm1532, %v3474, %v3404
        %v3503 = vsel %vm1532, %v3475, %v3406
        %v3504 = vsel %vm1532, %v3476, %v3408
        %v3505 = vsel %vm1532, %v3477, %v3410
        %v3506 = vsel %vm1532, %v3478, %v3412
        %v3507 = vsel %vm1532, %v3479, %v3414
        %v3508 = vsel %vm1532, %v3480, %v3416
        %v3509 = vsel %vm1532, %v3481, %v3418
        %v3510 = vsel %vm1532, %v3482, %v3420
        %v3511 = vsel %vm1532, %v3483, %v3422
        %v3512 = vsel %vm1532, %v3484, %v3424
        %v3513 = vsel %vm1532, %v3485, %v3426
        %v3514 = vsel %vm1532, %v3486, %v3428
        %v3515 = vsel %vm1532, %v3487, %v3430
        %v3516 = vsel %vm1532, %v3488, %v3432
        %v3517 = vpack.c.bf16 %v3490, %v3489
        %v3518 = vpack.c.bf16 %v3492, %v3491
        %v3519 = vpack.c.bf16 %v3494, %v3493
        %v3520 = vpack.c.bf16 %v3496, %v3495
        %v3521 = vpack.c.bf16 %v3498, %v3497
        %v3522 = vpack.c.bf16 %v3500, %v3499
        %v3523 = vpack.c.bf16 %v3502, %v3501
        %v3524 = vpack.c.bf16 %v3504, %v3503
        %v3525 = vpack.c.bf16 %v3506, %v3505
        %v3526 = vpack.c.bf16 %v3508, %v3507
        %v3527 = vpack.c.bf16 %v3510, %v3509
        %v3528 = vpack.c.bf16 %v3512, %v3511
        %v3529 = vpack.c.bf16 %v3514, %v3513
        %v3530 = vpack.c.bf16 %v3516, %v3515
        %s3531 = scalar_lea.vmem %s3, 96
        %v3532 = vld [vmem:[%s3531] sm:$0xf]
        %v3533 = vld [vmem:[%s3531 + $0x4] sm:$0xf]
        %v3534 = vld [vmem:[%s3531 + $0x8] sm:$0xf]
        %v3535 = vld [vmem:[%s3531 + $0xc] sm:$0xf]
        %v3536 = vld [vmem:[%s3531 + $0x10] sm:$0xf]
        %v3537 = vld [vmem:[%s3531 + $0x14] sm:$0xf]
        %v3538 = vld [vmem:[%s3531 + $0x18] sm:$0xf]
        %v3539 = vld [vmem:[%s3531 + $0x1c] sm:$0xf]
        %v3540 = vld [vmem:[%s3531 + $0x20] sm:$0xf]
        %v3541 = vld [vmem:[%s3531 + $0x24] sm:$0xf]
        %v3542 = vld [vmem:[%s3531 + $0x28] sm:$0xf]
        %v3543 = vld [vmem:[%s3531 + $0x2c] sm:$0xf]
        %v3544 = vld [vmem:[%s5 + $0x4] sm:$0x1]
        %v3545 = vperm.slane %v3544, 0
        %v3558 = vunpack.c.l.b16 %v3532
        %v3559 = vunpack.c.l.b16 %v3533
        %v3560 = vunpack.c.l.b16 %v3534
        %v3561 = vunpack.c.l.b16 %v3535
        %v3562 = vunpack.c.l.b16 %v3536
        %v3563 = vunpack.c.l.b16 %v3537
        %v3564 = vunpack.c.l.b16 %v3538
        %v3565 = vunpack.c.l.b16 %v3539
        %v3566 = vunpack.c.l.b16 %v3540
        %v3567 = vunpack.c.l.b16 %v3541
        %v3568 = vunpack.c.l.b16 %v3542
        %v3569 = vunpack.c.l.b16 %v3543
        %v3570 = vpack.c.b16 %v3559, %v3558
        %v3571 = vpack.c.b16 %v3561, %v3560
        %v3572 = vpack.c.b16 %v3563, %v3562
        %v3573 = vpack.c.b16 %v3565, %v3564
        %v3574 = vpack.c.b16 %v3567, %v3566
        %v3575 = vpack.c.b16 %v3569, %v3568
        %v3583 = vsel %vm1639, %v3517, 0
        %v3586 = vsel %vm1639, %v3518, 0
        %v3589 = vsel %vm1639, %v3519, 0
        %v3592 = vsel %vm1639, %v3520, 0
        %v3595 = vsel %vm1639, %v3521, 0
        %v3598 = vsel %vm1639, %v3522, 0
        %v3601 = vsel %vm1639, %v3523, 0
        %v3604 = vsel %vm1639, %v3524, 0
        %v3607 = vsel %vm1639, %v3525, 0
        %v3610 = vsel %vm1639, %v3526, 0
        %v3613 = vsel %vm1639, %v3527, 0
        %v3616 = vsel %vm1639, %v3528, 0
        %v3619 = vsel %vm1639, %v3529, 0
        %v3622 = vsel %vm1639, %v3530, 0
        %3624 = vmatpush.bf16.msra.mxu0 0
        %3625 = vmatpush.bf16.msra.mxu0 0
        %3626 = vmatpush.bf16.msra.mxu0 %v3575
        %3627 = vmatpush.bf16.msra.mxu0 %v3574
        %3628 = vmatpush.bf16.msra.mxu0 %v3573
        %3629 = vmatpush.bf16.msra.mxu0 %v3572
        %3630 = vmatpush.bf16.msra.mxu0 %v3571
        %3631 = vmatpush.bf16.msra.mxu0 %v3570
        %3632 = vmatmul.bf16.gmra.mxu0 %v3583
        %v3633 = vpop.f32.mrf.mxu0
        %v3634 = vadd.f32 %v3545, %v3633
        %v3635 = vpop.f32.mrf.mxu0
        %v3636 = vadd.f32 %v3545, %v3635
        %3637 = vmatmul.bf16.gmra.mxu0 %v3586
        %v3638 = vpop.f32.mrf.mxu0
        %v3639 = vadd.f32 %v3545, %v3638
        %v3640 = vpop.f32.mrf.mxu0
        %v3641 = vadd.f32 %v3545, %v3640
        %3642 = vmatmul.bf16.gmra.mxu0 %v3589
        %v3643 = vpop.f32.mrf.mxu0
        %v3644 = vadd.f32 %v3545, %v3643
        %v3645 = vpop.f32.mrf.mxu0
        %v3646 = vadd.f32 %v3545, %v3645
        %3647 = vmatmul.bf16.gmra.mxu0 %v3592
        %v3648 = vpop.f32.mrf.mxu0
        %v3649 = vadd.f32 %v3545, %v3648
        %v3650 = vpop.f32.mrf.mxu0
        %v3651 = vadd.f32 %v3545, %v3650
        %3652 = vmatmul.bf16.gmra.mxu0 %v3595
        %v3653 = vpop.f32.mrf.mxu0
        %v3654 = vadd.f32 %v3545, %v3653
        %v3655 = vpop.f32.mrf.mxu0
        %v3656 = vadd.f32 %v3545, %v3655
        %3657 = vmatmul.bf16.gmra.mxu0 %v3598
        %v3658 = vpop.f32.mrf.mxu0
        %v3659 = vadd.f32 %v3545, %v3658
        %v3660 = vpop.f32.mrf.mxu0
        %v3661 = vadd.f32 %v3545, %v3660
        %3662 = vmatmul.bf16.gmra.mxu0 %v3601
        %v3663 = vpop.f32.mrf.mxu0
        %v3664 = vadd.f32 %v3545, %v3663
        %v3665 = vpop.f32.mrf.mxu0
        %v3666 = vadd.f32 %v3545, %v3665
        %3667 = vmatmul.bf16.gmra.mxu0 %v3604
        %v3668 = vpop.f32.mrf.mxu0
        %v3669 = vadd.f32 %v3545, %v3668
        %v3670 = vpop.f32.mrf.mxu0
        %v3671 = vadd.f32 %v3545, %v3670
        %3672 = vmatmul.bf16.gmra.mxu0 %v3607
        %v3673 = vpop.f32.mrf.mxu0
        %v3674 = vadd.f32 %v3545, %v3673
        %v3675 = vpop.f32.mrf.mxu0
        %v3676 = vadd.f32 %v3545, %v3675
        %3677 = vmatmul.bf16.gmra.mxu0 %v3610
        %v3678 = vpop.f32.mrf.mxu0
        %v3679 = vadd.f32 %v3545, %v3678
        %v3680 = vpop.f32.mrf.mxu0
        %v3681 = vadd.f32 %v3545, %v3680
        %3682 = vmatmul.bf16.gmra.mxu0 %v3613
        %v3683 = vpop.f32.mrf.mxu0
        %v3684 = vadd.f32 %v3545, %v3683
        %v3685 = vpop.f32.mrf.mxu0
        %v3686 = vadd.f32 %v3545, %v3685
        %3687 = vmatmul.bf16.gmra.mxu0 %v3616
        %v3688 = vpop.f32.mrf.mxu0
        %v3689 = vadd.f32 %v3545, %v3688
        %v3690 = vpop.f32.mrf.mxu0
        %v3691 = vadd.f32 %v3545, %v3690
        %3692 = vmatmul.bf16.gmra.mxu0 %v3619
        %v3693 = vpop.f32.mrf.mxu0
        %v3694 = vadd.f32 %v3545, %v3693
        %v3695 = vpop.f32.mrf.mxu0
        %v3696 = vadd.f32 %v3545, %v3695
        %3697 = vmatmul.bf16.gmra.mxu0 %v3622
        %v3698 = vpop.f32.mrf.mxu0
        %v3699 = vadd.f32 %v3545, %v3698
        %v3700 = vpop.f32.mrf.mxu0
        %v3701 = vadd.f32 %v3545, %v3700
        %3702 = vdwg.mxu0
        %v3703 = vmax.f32 %v3634, 0.0
        %v3704 = vmax.f32 %v3636, 0.0
        %v3705 = vmax.f32 %v3639, 0.0
        %v3706 = vmax.f32 %v3641, 0.0
        %v3707 = vmax.f32 %v3644, 0.0
        %v3708 = vmax.f32 %v3646, 0.0
        %v3709 = vmax.f32 %v3649, 0.0
        %v3710 = vmax.f32 %v3651, 0.0
        %v3711 = vmax.f32 %v3654, 0.0
        %v3712 = vmax.f32 %v3656, 0.0
        %v3713 = vmax.f32 %v3659, 0.0
        %v3714 = vmax.f32 %v3661, 0.0
        %v3715 = vmax.f32 %v3664, 0.0
        %v3716 = vmax.f32 %v3666, 0.0
        %v3717 = vmax.f32 %v3669, 0.0
        %v3718 = vmax.f32 %v3671, 0.0
        %v3719 = vmax.f32 %v3674, 0.0
        %v3720 = vmax.f32 %v3676, 0.0
        %v3721 = vmax.f32 %v3679, 0.0
        %v3722 = vmax.f32 %v3681, 0.0
        %v3723 = vmax.f32 %v3684, 0.0
        %v3724 = vmax.f32 %v3686, 0.0
        %v3725 = vmax.f32 %v3689, 0.0
        %v3726 = vmax.f32 %v3691, 0.0
        %v3727 = vmax.f32 %v3694, 0.0
        %v3728 = vmax.f32 %v3696, 0.0
        %v3729 = vmax.f32 %v3699, 0.0
        %v3730 = vmax.f32 %v3701, 0.0
        %v3731 = vpack.c.bf16 %v3704, %v3703
        %v3732 = vpack.c.bf16 %v3706, %v3705
        %v3733 = vpack.c.bf16 %v3708, %v3707
        %v3734 = vpack.c.bf16 %v3710, %v3709
        %v3735 = vpack.c.bf16 %v3712, %v3711
        %v3736 = vpack.c.bf16 %v3714, %v3713
        %v3737 = vpack.c.bf16 %v3716, %v3715
        %v3738 = vpack.c.bf16 %v3718, %v3717
        %v3739 = vpack.c.bf16 %v3720, %v3719
        %v3740 = vpack.c.bf16 %v3722, %v3721
        %v3741 = vpack.c.bf16 %v3724, %v3723
        %v3742 = vpack.c.bf16 %v3726, %v3725
        %v3743 = vpack.c.bf16 %v3728, %v3727
        %v3744 = vpack.c.bf16 %v3730, %v3729
        %s3745 = scalar_lea.vmem %s4, 32
        %v3746 = vld [vmem:[%s3745] sm:$0xf]
        %v3747 = vld [vmem:[%s3745 + $0x4] sm:$0xf]
        %v3748 = vld [vmem:[%s3745 + $0x8] sm:$0xf]
        %v3749 = vld [vmem:[%s3745 + $0xc] sm:$0xf]
        %v3750 = vld [vmem:[%s5 + $0x5] sm:$0x1]
        %v3751 = vperm.slane %v3750, 0
        %v3756 = vunpack.c.l.b16 %v3746
        %v3757 = vunpack.c.l.b16 %v3747
        %v3758 = vunpack.c.l.b16 %v3748
        %v3759 = vunpack.c.l.b16 %v3749
        %v3760 = vpack.c.b16 %v3757, %v3756
        %v3761 = vpack.c.b16 %v3759, %v3758
        %v3765 = vsel %vm1494, %v3731, 0
        %v3768 = vsel %vm1494, %v3732, 0
        %v3771 = vsel %vm1494, %v3733, 0
        %v3774 = vsel %vm1494, %v3734, 0
        %v3777 = vsel %vm1494, %v3735, 0
        %v3780 = vsel %vm1494, %v3736, 0
        %v3783 = vsel %vm1494, %v3737, 0
        %v3786 = vsel %vm1494, %v3738, 0
        %v3789 = vsel %vm1494, %v3739, 0
        %v3792 = vsel %vm1494, %v3740, 0
        %v3795 = vsel %vm1494, %v3741, 0
        %v3798 = vsel %vm1494, %v3742, 0
        %v3801 = vsel %vm1494, %v3743, 0
        %v3804 = vsel %vm1494, %v3744, 0
        %3806 = vmatpush.bf16.msra.mxu0 0
        %3807 = vmatpush.bf16.msra.mxu0 0
        %3808 = vmatpush.bf16.msra.mxu0 0
        %3809 = vmatpush.bf16.msra.mxu0 0
        %3810 = vmatpush.bf16.msra.mxu0 0
        %3811 = vmatpush.bf16.msra.mxu0 0
        %3812 = vmatpush.bf16.msra.mxu0 %v3761
        %3813 = vmatpush.bf16.msra.mxu0 %v3760
        %3814 = vmatmul.bf16.gmra.mxu0 %v3765
        %v3815 = vpop.f32.mrf.mxu0
        %v3816 = vadd.f32 %v3751, %v3815
        %v3817 = vpop.f32.mrf.mxu0
        %v3818 = vadd.f32 %v3751, %v3817
        %3819 = vmatmul.bf16.gmra.mxu0 %v3768
        %v3820 = vpop.f32.mrf.mxu0
        %v3821 = vadd.f32 %v3751, %v3820
        %v3822 = vpop.f32.mrf.mxu0
        %v3823 = vadd.f32 %v3751, %v3822
        %3824 = vmatmul.bf16.gmra.mxu0 %v3771
        %v3825 = vpop.f32.mrf.mxu0
        %v3826 = vadd.f32 %v3751, %v3825
        %v3827 = vpop.f32.mrf.mxu0
        %v3828 = vadd.f32 %v3751, %v3827
        %3829 = vmatmul.bf16.gmra.mxu0 %v3774
        %v3830 = vpop.f32.mrf.mxu0
        %v3831 = vadd.f32 %v3751, %v3830
        %v3832 = vpop.f32.mrf.mxu0
        %v3833 = vadd.f32 %v3751, %v3832
        %3834 = vmatmul.bf16.gmra.mxu0 %v3777
        %v3835 = vpop.f32.mrf.mxu0
        %v3836 = vpop.f32.mrf.mxu0
        %3837 = vmatmul.bf16.gmra.mxu0 %v3780
        %v3838 = vpop.f32.mrf.mxu0
        %v3839 = vadd.f32 %v3751, %v3838
        %v3840 = vpop.f32.mrf.mxu0
        %v3841 = vadd.f32 %v3751, %v3840
        %3842 = vmatmul.bf16.gmra.mxu0 %v3783
        %v3843 = vpop.f32.mrf.mxu0
        %v3844 = vadd.f32 %v3751, %v3843
        %v3845 = vpop.f32.mrf.mxu0
        %v3846 = vadd.f32 %v3751, %v3845
        %3847 = vmatmul.bf16.gmra.mxu0 %v3786
        %v3848 = vpop.f32.mrf.mxu0
        %v3849 = vadd.f32 %v3751, %v3848
        %v3850 = vpop.f32.mrf.mxu0
        %v3851 = vadd.f32 %v3751, %v3850
        %3852 = vmatmul.bf16.gmra.mxu0 %v3789
        %v3853 = vpop.f32.mrf.mxu0
        %v3854 = vadd.f32 %v3751, %v3853
        %v3855 = vpop.f32.mrf.mxu0
        %v3856 = vadd.f32 %v3751, %v3855
        %3857 = vmatmul.bf16.gmra.mxu0 %v3792
        %v3858 = vpop.f32.mrf.mxu0
        %v3859 = vpop.f32.mrf.mxu0
        %3860 = vmatmul.bf16.gmra.mxu0 %v3795
        %v3861 = vpop.f32.mrf.mxu0
        %v3862 = vadd.f32 %v3751, %v3861
        %v3863 = vpop.f32.mrf.mxu0
        %v3864 = vadd.f32 %v3751, %v3863
        %3865 = vmatmul.bf16.gmra.mxu0 %v3798
        %v3866 = vpop.f32.mrf.mxu0
        %v3867 = vadd.f32 %v3751, %v3866
        %v3868 = vpop.f32.mrf.mxu0
        %v3869 = vadd.f32 %v3751, %v3868
        %3870 = vmatmul.bf16.gmra.mxu0 %v3801
        %v3871 = vpop.f32.mrf.mxu0
        %v3872 = vadd.f32 %v3751, %v3871
        %v3873 = vpop.f32.mrf.mxu0
        %v3874 = vadd.f32 %v3751, %v3873
        %3875 = vmatmul.bf16.gmra.mxu0 %v3804
        %v3876 = vpop.f32.mrf.mxu0
        %v3877 = vadd.f32 %v3751, %v3876
        %v3878 = vpop.f32.mrf.mxu0
        %v3879 = vadd.f32 %v3751, %v3878
        %3880 = vdwg.mxu0
        %v3881 = vmax.f32 %v3816, 0.0
        %v3882 = vmax.f32 %v3818, 0.0
        %v3883 = vmax.f32 %v3821, 0.0
        %v3884 = vmax.f32 %v3823, 0.0
        %v3885 = vmax.f32 %v3826, 0.0
        %v3886 = vmax.f32 %v3828, 0.0
        %v3887 = vmax.f32 %v3831, 0.0
        %v3888 = vmax.f32 %v3833, 0.0
        %v3889 = vmax.f32 %v3839, 0.0
        %v3890 = vmax.f32 %v3841, 0.0
        %v3891 = vmax.f32 %v3844, 0.0
        %v3892 = vmax.f32 %v3846, 0.0
        %v3893 = vmax.f32 %v3849, 0.0
        %v3894 = vmax.f32 %v3851, 0.0
        %v3895 = vmax.f32 %v3854, 0.0
        %v3896 = vmax.f32 %v3856, 0.0
        %v3897 = vmax.f32 %v3862, 0.0
        %v3898 = vmax.f32 %v3864, 0.0
        %v3899 = vmax.f32 %v3867, 0.0
        %v3900 = vmax.f32 %v3869, 0.0
        %v3901 = vmax.f32 %v3872, 0.0
        %v3902 = vmax.f32 %v3874, 0.0
        %v3903 = vmax.f32 %v3877, 0.0
        %v3904 = vmax.f32 %v3879, 0.0
        %v3929 = vadd.f32 %v3881, %v3179
        %v3930 = vadd.f32 %v3882, %v3181
        %v3931 = vadd.f32 %v3883, %v3183
        %v3932 = vadd.f32 %v3884, %v3185
        %v3933 = vadd.f32 %v3885, %v3187
        %v3934 = vadd.f32 %v3886, %v3189
        %v3935 = vadd.f32 %v3887, %v3191
        %v3936 = vadd.f32 %v3888, %v3193
        %v3937 = vadd.f32 %v3889, %v3199
        %v3938 = vadd.f32 %v3890, %v3201
        %v3939 = vadd.f32 %v3891, %v3203
        %v3940 = vadd.f32 %v3892, %v3205
        %v3941 = vadd.f32 %v3893, %v3207
        %v3942 = vadd.f32 %v3894, %v3209
        %v3943 = vadd.f32 %v3895, %v3211
        %v3944 = vadd.f32 %v3896, %v3213
        %v3945 = vadd.f32 %v3897, %v3219
        %v3946 = vadd.f32 %v3898, %v3221
        %v3947 = vadd.f32 %v3899, %v3223
        %v3948 = vadd.f32 %v3900, %v3225
        %v3949 = vadd.f32 %v3901, %v3227
        %v3950 = vadd.f32 %v3902, %v3229
        %v3951 = vadd.f32 %v3903, %v3231
        %v3952 = vadd.f32 %v3904, %v3230
        %v3961 = vrot.slane %v3937, 1
        %v3962 = vrot.slane %v3938, 1
        %v3963 = vsel %vm380, %v3961, %v3962
        %v3964 = vrot.slane %v3939, 1
        %v3965 = vsel %vm380, %v3962, %v3964
        %v3966 = vrot.slane %v3940, 1
        %v3967 = vsel %vm380, %v3964, %v3966
        %v3968 = vrot.slane %v3941, 1
        %v3969 = vsel %vm380, %v3966, %v3968
        %v3970 = vrot.slane %v3942, 1
        %v3971 = vsel %vm380, %v3968, %v3970
        %v3972 = vrot.slane %v3943, 1
        %v3973 = vsel %vm380, %v3970, %v3972
        %v3974 = vrot.slane %v3944, 1
        %v3975 = vsel %vm380, %v3972, %v3974
        %3976 = vrot.lane.b32.xlu0 %v3963, 32
        %v3977 = vpop.permute.xlu0 %3976
        %3978 = vrot.lane.b32.xlu0 %v3965, 32
        %v3979 = vpop.permute.xlu0 %3978
        %3980 = vrot.lane.b32.xlu0 %v3967, 32
        %v3981 = vpop.permute.xlu0 %3980
        %3982 = vrot.lane.b32.xlu0 %v3969, 32
        %v3983 = vpop.permute.xlu0 %3982
        %3984 = vrot.lane.b32.xlu0 %v3971, 32
        %v3985 = vpop.permute.xlu0 %3984
        %3986 = vrot.lane.b32.xlu0 %v3973, 32
        %v3987 = vpop.permute.xlu0 %3986
        %3988 = vrot.lane.b32.xlu0 %v3975, 32
        %v3989 = vpop.permute.xlu0 %3988
        %3990 = vrot.lane.b32.xlu0 %v3974, 32
        %v3991 = vpop.permute.xlu0 %3990
        %v4008 = vrot.slane %v3945, 2
        %v4009 = vrot.slane %v3946, 2
        %v4010 = vsel %vm570, %v4008, %v4009
        %v4011 = vrot.slane %v3947, 2
        %v4012 = vsel %vm570, %v4009, %v4011
        %v4013 = vrot.slane %v3948, 2
        %v4014 = vsel %vm570, %v4011, %v4013
        %v4015 = vrot.slane %v3949, 2
        %v4016 = vsel %vm570, %v4013, %v4015
        %v4017 = vrot.slane %v3950, 2
        %v4018 = vsel %vm570, %v4015, %v4017
        %v4019 = vrot.slane %v3951, 2
        %v4020 = vsel %vm570, %v4017, %v4019
        %v4021 = vrot.slane %v3952, 2
        %v4022 = vsel %vm570, %v4019, %v4021
        %4023 = vrot.lane.b32.xlu0 %v4010, 64
        %v4024 = vpop.permute.xlu0 %4023
        %4025 = vrot.lane.b32.xlu0 %v4012, 64
        %v4026 = vpop.permute.xlu0 %4025
        %4027 = vrot.lane.b32.xlu0 %v4014, 64
        %v4028 = vpop.permute.xlu0 %4027
        %4029 = vrot.lane.b32.xlu0 %v4016, 64
        %v4030 = vpop.permute.xlu0 %4029
        %4031 = vrot.lane.b32.xlu0 %v4018, 64
        %v4032 = vpop.permute.xlu0 %4031
        %4033 = vrot.lane.b32.xlu0 %v4020, 64
        %v4034 = vpop.permute.xlu0 %4033
        %4035 = vrot.lane.b32.xlu0 %v4022, 64
        %v4036 = vpop.permute.xlu0 %4035
        %4037 = vrot.lane.b32.xlu0 %v4021, 64
        %v4038 = vpop.permute.xlu0 %4037
        %v4047 = vsel %vm1494, %v3929, %v3977
        %v4048 = vsel %vm1494, %v3930, %v3979
        %v4049 = vsel %vm1494, %v3931, %v3981
        %v4050 = vsel %vm1494, %v3932, %v3983
        %v4051 = vsel %vm1494, %v3933, %v3985
        %v4052 = vsel %vm1494, %v3934, %v3987
        %v4053 = vsel %vm1494, %v3935, %v3989
        %v4054 = vsel %vm1494, %v3936, %v3991
        %v4055 = vsel %vm1532, %v4047, %v4024
        %v4056 = vsel %vm1532, %v4048, %v4026
        %v4057 = vsel %vm1532, %v4049, %v4028
        %v4058 = vsel %vm1532, %v4050, %v4030
        %v4059 = vsel %vm1532, %v4051, %v4032
        %v4060 = vsel %vm1532, %v4052, %v4034
        %v4061 = vsel %vm1532, %v4053, %v4036
        %v4062 = vsel %vm1532, %v4054, %v4038
        %v4063 = vpack.c.bf16 %v4056, %v4055
        %v4064 = vpack.c.bf16 %v4058, %v4057
        %v4065 = vpack.c.bf16 %v4060, %v4059
        %v4066 = vpack.c.bf16 %v4062, %v4061
        %s4067 = scalar_lea.vmem %s3, 144
        %v4068 = vld [vmem:[%s4067] sm:$0xf]
        %v4069 = vld [vmem:[%s4067 + $0x4] sm:$0xf]
        %v4070 = vld [vmem:[%s4067 + $0x8] sm:$0xf]
        %v4071 = vld [vmem:[%s4067 + $0xc] sm:$0xf]
        %v4072 = vld [vmem:[%s4067 + $0x10] sm:$0xf]
        %v4073 = vld [vmem:[%s4067 + $0x14] sm:$0xf]
        %v4074 = vld [vmem:[%s4067 + $0x18] sm:$0xf]
        %v4075 = vld [vmem:[%s4067 + $0x1c] sm:$0xf]
        %v4076 = vld [vmem:[%s4067 + $0x20] sm:$0xf]
        %v4077 = vld [vmem:[%s4067 + $0x24] sm:$0xf]
        %v4078 = vld [vmem:[%s4067 + $0x28] sm:$0xf]
        %v4079 = vld [vmem:[%s4067 + $0x2c] sm:$0xf]
        %v4080 = vld [vmem:[%s5 + $0x6] sm:$0x1]
        %v4081 = vperm.slane %v4080, 0
        %v4094 = vunpack.c.l.b16 %v4068
        %v4095 = vunpack.c.l.b16 %v4069
        %v4096 = vunpack.c.l.b16 %v4070
        %v4097 = vunpack.c.l.b16 %v4071
        %v4098 = vunpack.c.l.b16 %v4072
        %v4099 = vunpack.c.l.b16 %v4073
        %v4100 = vunpack.c.l.b16 %v4074
        %v4101 = vunpack.c.l.b16 %v4075
        %v4102 = vunpack.c.l.b16 %v4076
        %v4103 = vunpack.c.l.b16 %v4077
        %v4104 = vunpack.c.l.b16 %v4078
        %v4105 = vunpack.c.l.b16 %v4079
        %v4106 = vpack.c.b16 %v4095, %v4094
        %v4107 = vpack.c.b16 %v4097, %v4096
        %v4108 = vpack.c.b16 %v4099, %v4098
        %v4109 = vpack.c.b16 %v4101, %v4100
        %v4110 = vpack.c.b16 %v4103, %v4102
        %v4111 = vpack.c.b16 %v4105, %v4104
        %v4119 = vsel %vm1639, %v4063, 0
        %v4122 = vsel %vm1639, %v4064, 0
        %v4125 = vsel %vm1639, %v4065, 0
        %v4128 = vsel %vm1639, %v4066, 0
        %4130 = vmatpush.bf16.msra.mxu0 0
        %4131 = vmatpush.bf16.msra.mxu0 0
        %4132 = vmatpush.bf16.msra.mxu0 %v4111
        %4133 = vmatpush.bf16.msra.mxu0 %v4110
        %4134 = vmatpush.bf16.msra.mxu0 %v4109
        %4135 = vmatpush.bf16.msra.mxu0 %v4108
        %4136 = vmatpush.bf16.msra.mxu0 %v4107
        %4137 = vmatpush.bf16.msra.mxu0 %v4106
        %4138 = vmatmul.bf16.gmra.mxu0 %v4119
        %v4139 = vpop.f32.mrf.mxu0
        %v4140 = vadd.f32 %v4081, %v4139
        %v4141 = vpop.f32.mrf.mxu0
        %v4142 = vadd.f32 %v4081, %v4141
        %4143 = vmatmul.bf16.gmra.mxu0 %v4122
        %v4144 = vpop.f32.mrf.mxu0
        %v4145 = vadd.f32 %v4081, %v4144
        %v4146 = vpop.f32.mrf.mxu0
        %v4147 = vadd.f32 %v4081, %v4146
        %4148 = vmatmul.bf16.gmra.mxu0 %v4125
        %v4149 = vpop.f32.mrf.mxu0
        %v4150 = vadd.f32 %v4081, %v4149
        %v4151 = vpop.f32.mrf.mxu0
        %v4152 = vadd.f32 %v4081, %v4151
        %4153 = vmatmul.bf16.gmra.mxu0 %v4128
        %v4154 = vpop.f32.mrf.mxu0
        %v4155 = vadd.f32 %v4081, %v4154
        %v4156 = vpop.f32.mrf.mxu0
        %v4157 = vadd.f32 %v4081, %v4156
        %4158 = vdwg.mxu0
        %v4159 = vmax.f32 %v4140, 0.0
        %v4160 = vmax.f32 %v4142, 0.0
        %v4161 = vmax.f32 %v4145, 0.0
        %v4162 = vmax.f32 %v4147, 0.0
        %v4163 = vmax.f32 %v4150, 0.0
        %v4164 = vmax.f32 %v4152, 0.0
        %v4165 = vmax.f32 %v4155, 0.0
        %v4166 = vmax.f32 %v4157, 0.0
        %v4167 = vpack.c.bf16 %v4160, %v4159
        %v4168 = vpack.c.bf16 %v4162, %v4161
        %v4169 = vpack.c.bf16 %v4164, %v4163
        %v4170 = vpack.c.bf16 %v4166, %v4165
        %s4171 = scalar_lea.vmem %s4, 48
        %v4172 = vld [vmem:[%s4171] sm:$0xf]
        %v4173 = vld [vmem:[%s4171 + $0x4] sm:$0xf]
        %v4174 = vld [vmem:[%s4171 + $0x8] sm:$0xf]
        %v4175 = vld [vmem:[%s4171 + $0xc] sm:$0xf]
        %v4176 = vld [vmem:[%s5 + $0x7] sm:$0x1]
        %v4177 = vperm.slane %v4176, 0
        %v4182 = vunpack.c.l.b16 %v4172
        %v4183 = vunpack.c.l.b16 %v4173
        %v4184 = vunpack.c.l.b16 %v4174
        %v4185 = vunpack.c.l.b16 %v4175
        %v4186 = vpack.c.b16 %v4183, %v4182
        %v4187 = vpack.c.b16 %v4185, %v4184
        %v4191 = vsel %vm1494, %v4167, 0
        %v4194 = vsel %vm1494, %v4168, 0
        %v4197 = vsel %vm1494, %v4169, 0
        %v4200 = vsel %vm1494, %v4170, 0
        %4202 = vmatpush.bf16.msra.mxu0 0
        %4203 = vmatpush.bf16.msra.mxu0 0
        %4204 = vmatpush.bf16.msra.mxu0 0
        %4205 = vmatpush.bf16.msra.mxu0 0
        %4206 = vmatpush.bf16.msra.mxu0 0
        %4207 = vmatpush.bf16.msra.mxu0 0
        %4208 = vmatpush.bf16.msra.mxu0 %v4187
        %4209 = vmatpush.bf16.msra.mxu0 %v4186
        %4210 = vmatmul.bf16.gmra.mxu0 %v4191
        %v4211 = vpop.f32.mrf.mxu0
        %v4212 = vadd.f32 %v4177, %v4211
        %v4213 = vpop.f32.mrf.mxu0
        %v4214 = vadd.f32 %v4177, %v4213
        %4215 = vmatmul.bf16.gmra.mxu0 %v4194
        %v4216 = vpop.f32.mrf.mxu0
        %v4217 = vadd.f32 %v4177, %v4216
        %v4218 = vpop.f32.mrf.mxu0
        %v4219 = vadd.f32 %v4177, %v4218
        %4220 = vmatmul.bf16.gmra.mxu0 %v4197
        %v4221 = vpop.f32.mrf.mxu0
        %v4222 = vadd.f32 %v4177, %v4221
        %v4223 = vpop.f32.mrf.mxu0
        %v4224 = vadd.f32 %v4177, %v4223
        %4225 = vmatmul.bf16.gmra.mxu0 %v4200
        %v4226 = vpop.f32.mrf.mxu0
        %v4227 = vadd.f32 %v4177, %v4226
        %v4228 = vpop.f32.mrf.mxu0
        %v4229 = vadd.f32 %v4177, %v4228
        %4230 = vdwg.mxu0
        %v4231 = vmax.f32 %v4212, 0.0
        %v4232 = vmax.f32 %v4214, 0.0
        %v4233 = vmax.f32 %v4217, 0.0
        %v4234 = vmax.f32 %v4219, 0.0
        %v4235 = vmax.f32 %v4222, 0.0
        %v4236 = vmax.f32 %v4224, 0.0
        %v4237 = vmax.f32 %v4227, 0.0
        %v4238 = vmax.f32 %v4229, 0.0
        %v4247 = vadd.f32 %v4231, %v3963
        %v4248 = vadd.f32 %v4232, %v3965
        %v4249 = vadd.f32 %v4233, %v3967
        %v4250 = vadd.f32 %v4234, %v3969
        %v4251 = vadd.f32 %v4235, %v3971
        %v4252 = vadd.f32 %v4236, %v3973
        %v4253 = vadd.f32 %v4237, %v3975
        %v4254 = vadd.f32 %v4238, %v3974
        %v4255 = vsel %vm1494, %v4247, 0.0
        %v4256 = vsel %vm1494, %v4248, 0.0
        %v4257 = vadd.f32 %v4255, %v4256
        %v4258 = vsel %vm1494, %v4249, 0.0
        %v4259 = vadd.f32 %v4257, %v4258
        %v4260 = vsel %vm1494, %v4250, 0.0
        %v4261 = vadd.f32 %v4259, %v4260
        %v4262 = vsel %vm1494, %v4251, 0.0
        %v4263 = vadd.f32 %v4261, %v4262
        %v4264 = vsel %vm1494, %v4252, 0.0
        %v4265 = vadd.f32 %v4263, %v4264
        %v4266 = vsel %vm1494, %v4253, 0.0
        %v4267 = vadd.f32 %v4265, %v4266
        %vm4268 = vcmask 254976
        %v4269 = vsel %vm4268, %v4254, 0.0
        %v4270 = vadd.f32 %v4267, %v4269
        %v4271 = vrot.slane %v4270, 4
        %v4272 = vadd.f32 %v4270, %v4271
        %v4273 = vrot.slane %v4272, 2
        %v4274 = vadd.f32 %v4272, %v4273
        %v4275 = vrot.slane %v4274, 1
        %v4276 = vadd.f32 %v4274, %v4275
        %v4277 = vrcp.pop 58.0
        %v4278 = vmul.f32 58.0, %v4277
        %v4279 = vsub.f32 1.0, %v4278
        %v4280 = vmul.f32 %v4277, %v4279
        %v4281 = vadd.f32 %v4277, %v4280
        %vm4282 = vweird.f32 %v4277
        %v4283 = vsel %vm4282, %v4277, %v4281
        %v4284 = vmul.f32 %v4276, %v4283
        %v4285 = vld [vmem:[%s6] sm:$0xff]
        %v4286 = vld [vmem:[%s6 + $0x8] sm:$0xff]
        %v4287 = vld [vmem:[%s6 + $0x10] sm:$0xff]
        %v4288 = vld [vmem:[%s6 + $0x18] sm:$0xff]
        %v4289 = vld [vmem:[%s7] sm:$0x1]
        %v4291 = vsel %vm1494, %v4284, 0
        %4293 = vmatpush.msra.mxu0 0.0
        %4294 = vmatpush.msra.mxu0 0.0
        %4295 = vmatpush.msra.mxu0 0.0
        %4296 = vmatpush.msra.mxu0 0.0
        %4297 = vmatpush.msra.mxu0 0.0
        %4298 = vmatpush.msra.mxu0 0.0
        %4299 = vmatpush.msra.mxu0 0.0
        %4300 = vmatpush.msra.mxu0 0.0
        %4301 = vmatpush.msra.mxu0 0.0
        %4302 = vmatpush.msra.mxu0 0.0
        %4303 = vmatpush.msra.mxu0 0.0
        %4304 = vmatpush.msra.mxu0 0.0
        %4305 = vmatpush.msra.mxu0 %v4288
        %4306 = vmatpush.msra.mxu0 %v4287
        %4307 = vmatpush.msra.mxu0 %v4286
        %4308 = vmatpush.msra.mxu0 %v4285
        %4309 = vmatmul.f32.gmra.mxu0 %v4291
        %v4310 = vpop.f32.mrf.mxu0
        %v4311 = vadd.f32 %v4289, %v4310
        %4312 = vdwg.mxu0
        %vm4313 = vcmask 8192
        %4314 = vst.msk [vmem:[%s297] sm:$0x1] %vm4313, %v4311
        %s4315 = sand.u32 %s203, 1
        %s4316 = scalar_lea.sflag [#allocation3], %s4315
        %s4317 = sand.u32 %s203, 1
        %s4318 = scalar_lea.vmem [#allocation2], %s4317
        // Predicated region
        $region53: #{tpu_custom_call.1} parent=51 // pred_check
          %p4319 = pneg %p213
        $region54: #{tpu_custom_call.1} parent=51 // pred_check_branch
          %4321 = sbr.rel (%p4319) target = $region56
        $region55: #{tpu_custom_call.1} parent=51 // pred_region
          %4323 = vsyncadd %s4316, 0
          %s4324 = scalar_lea.hbm %s8, %s22
          %s4326 = sshll.u32 %s4318, 4
          %s4327 = int_to_ptr.vmem [resolvable:$true] %s4326
          %s4328 = sshll.u32 %s4324, 4
          %s4329 = int_to_ptr.hbm [resolvable:$true] %s4328
          %4331 = dma.vmem_to_hbm [thread:$0]  %s4327, 16, %s4329, %s4316
        $region56: #{tpu_custom_call.1} parent=51 // pred_fallthru
          _
      $region52: #{tpu_custom_call.1} parent=5 // pred_fallthru
        _
      %p4332 = scmp.le.s32.totalorder 2, %s17
      // Predicated region
      $region57: #{tpu_custom_call.1} parent=5 // pred_check
        %p4333 = pneg %p4332
      $region58: #{tpu_custom_call.1} parent=5 // pred_check_branch
        %4335 = sbr.rel (%p4333) target = $region60
      $region59: #{tpu_custom_call.1} parent=5 // pred_region
        %s4336 = ssub.s32 %s17, 2
        // Predicated region
        $region61: #{tpu_custom_call.1} parent=59 // pred_check
          %p4337 = pneg %p219
        $region62: #{tpu_custom_call.1} parent=59 // pred_check_branch
          %4339 = sbr.rel (%p4337) target = $region64
        $region63: #{tpu_custom_call.1} parent=59 // pred_region
          %s4340 = sand.u32 %s204, 1
          %s4341 = scalar_lea.sflag [#allocation3], %s4340
          %s4342 = sand.u32 %s204, 1
          %s4343 = scalar_lea.vmem [#allocation2], %s4342
          %4345 = dma.done %s4341, 16
        $region64: #{tpu_custom_call.1} parent=59 // pred_fallthru
          _
      $region60: #{tpu_custom_call.1} parent=5 // pred_fallthru
        _
    $region6: #{tpu_custom_call.1} parent=1 // loop_footer
      %s21 = sadd.s32 1, %s17
    $region7: #{tpu_custom_call.1} parent=1 // loop_footer_branch
      %16 = sbr.rel target = $region3
    $region8: #{tpu_custom_call.1} parent=1 // loop_exit
      _
    %4346 = vsyncpa [#allocation3], 1
    %s4347 = scalar_lea.sflag [#allocation3], 1
    %4348 = vsyncpa %s4347, 1

</llo_original>
